<compile_context>
chip_gen: v6e
topology: v6e:2x2x1
jax: 0.10.0
libtpu: 0.0.40
codegen_flags: <defaults>
</compile_context>

<pallas_src>
import jax
import jax.numpy as jnp
import numpy as np
from jax import lax
from jax.experimental import pallas as pl
from jax.experimental.pallas import tpu as pltpu

KERNEL_SIZES = (5, 9, 13)
BN_EPS = 1e-3
_PAD = 2  # halo for one 5-wide stride-1 "same" max pool


def _round_up(v, m):
    return -(-v // m) * m


# ---------------------------------------------------------------- kernel ----
def spp_kernel(x_ref, w1_ref, b1_ref, w2_ref, b2_ref, o_ref, pad_ref):
    # x_ref : (1, H, W, Cin)      w1_ref: (Cin, Ch)        b1_ref: (1, Ch) f32
    # w2_ref: (nb, Ch, Cout)                               b2_ref: (1, Cout) f32
    # o_ref : (1, H, W, Cout)
    # pad_ref: (H + 4, Wp, Ch) pooling scratch; rows [0,2)+[H+2,H+4) and
    #          columns [W, Wp) stay -inf; interior rows [2,H+2) x cols [0,W).
    _, H, W, Cin = x_ref.shape
    Ch = w1_ref.shape[1]
    Cout = w2_ref.shape[2]
    cd = w1_ref.dtype          # MXU operand dtype (f32 or bf16)
    pd = pad_ref.dtype         # pooling dtype (f32 on v5e even for bf16 path)
    Wp = pad_ref.shape[1]

    # Refresh the -inf halo (cheap, small stores; safe under megacore grid
    # sharding since it does not rely on program_id==0 having run first).
    pad_ref[pl.ds(0, _PAD), :, :] = jnp.full((_PAD, Wp, Ch), -jnp.inf, pd)
    pad_ref[pl.ds(H + _PAD, _PAD), :, :] = jnp.full((_PAD, Wp, Ch), -jnp.inf, pd)
    pad_ref[pl.ds(_PAD, H), pl.ds(W, Wp - W), :] = (
        jnp.full((H, Wp - W, Ch), -jnp.inf, pd))

    # conv1 (1x1, BN folded) — f32 accumulation, SiLU in f32 (EUP).
    x = x_ref[0].reshape(H * W, Cin).astype(cd)
    h = jnp.dot(x, w1_ref[...], preferred_element_type=jnp.float32) + b1_ref[...]
    h = h * jax.nn.sigmoid(h)

    # conv2 over the channel concat == sum over branches of branch @ W2[b];
    # branch 0 (identity) accumulates straight away, bias added at the end.
    y = jnp.dot(h.astype(cd), w2_ref[0], preferred_element_type=jnp.float32)
    cur = h.astype(pd).reshape(H, W, Ch)

    def pool5(t):
        # Separable 5x5 stride-1 "same" max pool:
        #  * store interior once (column offset 0 — sublane aligned start),
        #  * row pass: 5 full-width loads at leading-axis offsets (no relayout),
        #  * column pass: in-register sublane rolls (XLU) + maxes (VPU); the
        #    -inf columns [W, Wp) make circular wrap-around equal -inf padding.
        pad_ref[pl.ds(_PAD, H), pl.ds(0, W), :] = t
        rm = pad_ref[pl.ds(0, H), :, :]
        for d in range(1, 2 * _PAD + 1):
            rm = jnp.maximum(rm, pad_ref[pl.ds(d, H), :, :])
        cm = rm
        for d in range(1, _PAD + 1):
            cm = jnp.maximum(cm, pltpu.roll(rm, shift=d, axis=1))       # rm[w-d]
            cm = jnp.maximum(cm, pltpu.roll(rm, shift=Wp - d, axis=1))  # rm[w+d]
        return cm[:, :W, :]

    # SPPF cascade: pool5 applied 1x / 2x / 3x == max pools of size 5 / 9 / 13,
    # each branch dotted into the f32 accumulator and dropped immediately.
    for b in range(1, 4):
        cur = pool5(cur)
        y = y + jnp.dot(cur.reshape(H * W, Ch).astype(cd), w2_ref[b],
                        preferred_element_type=jnp.float32)

    y = y + b2_ref[...]
    y = y * jax.nn.sigmoid(y)                     # conv2 SiLU in f32
    o_ref[0] = y.reshape(H, W, Cout).astype(o_ref.dtype)


# --------------------------------------------------------------- helpers ----
def _pool_dtype_for(compute_dtype):
    """bf16 pooling on v6e/v7x; f32 pooling on v5e (no native bf16 VPU)."""
    if jnp.dtype(compute_dtype).itemsize >= 4:
        return jnp.dtype(compute_dtype)
    try:
        kind = jax.devices()[0].device_kind.lower()
    except Exception:
        kind = ""
    if "v5" in kind:
        return jnp.dtype(jnp.float32)
    return jnp.dtype(compute_dtype)


def _vmem_limit_bytes(est):
    """Raise the scoped-VMEM limit when needed, clamped to physical VMEM."""
    if est <= 16 * 1024 * 1024:          # below v5e's 16 MiB scoped default
        return None
    try:
        cap = int(pltpu.get_tpu_info().vmem_capacity_bytes)
    except Exception:
        cap = 64 * 1024 * 1024           # conservative (v7x physical VMEM)
    cap = (cap * 7) // 8                 # leave headroom for the compiler
    return max(32 * 1024 * 1024, min(int(est * 1.3), cap))


# --------------------------------------------------------------- wrapper ----
def spp_bottleneck_pallas_nhwc(x_nhwc, w1, b1, w2, b2, *, compute_dtype=None):
    """SPPBottleneck forward on an NHWC input (no layout transposes)."""
    if compute_dtype is None:
        compute_dtype = x_nhwc.dtype
    N, H, W, Cin = x_nhwc.shape
    Ch = w1.shape[1]
    nb, _, Cout = w2.shape

    pool_dtype = _pool_dtype_for(compute_dtype)
    pack = max(8, 32 // jnp.dtype(pool_dtype).itemsize)   # 8 f32, 16 bf16
    Wp = _round_up(W + _PAD, pack)                        # >= W + 2, aligned

    xc = x_nhwc.astype(compute_dtype)
    w1c = w1.astype(compute_dtype)
    w2c = w2.astype(compute_dtype)
    b1f = b1.astype(jnp.float32)
    b2f = b2.astype(jnp.float32)

    isz = jnp.dtype(compute_dtype).itemsize
    osz = jnp.dtype(x_nhwc.dtype).itemsize
    psz = jnp.dtype(pool_dtype).itemsize
    est = (2 * H * W * (Cin * isz + Cout * osz)        # double-buffered blocks
           + (H + 2 * _PAD) * Wp * Ch * psz            # pool scratch
           + H * W * (Ch + Cout) * 4                   # live f32 h / y
           + 2 * H * Wp * Ch * psz                     # live row/col maxes
           + 2 * (Cin * Ch + nb * Ch * Cout + Ch + Cout) * 4)   # weights/bias
    cp = dict(dimension_semantics=("parallel",))
    lim = _vmem_limit_bytes(est)
    if lim is not None:
        cp["vmem_limit_bytes"] = lim

    return pl.pallas_call(
        spp_kernel,
        out_shape=jax.ShapeDtypeStruct((N, H, W, Cout), x_nhwc.dtype),
        grid_spec=pltpu.PrefetchScalarGridSpec(
            num_scalar_prefetch=0,
            grid=(N,),
            in_specs=[
                pl.BlockSpec((1, H, W, Cin), lambda n: (n, 0, 0, 0)),
                pl.BlockSpec((Cin, Ch), lambda n: (0, 0)),
                pl.BlockSpec((1, Ch), lambda n: (0, 0)),
                pl.BlockSpec((nb, Ch, Cout), lambda n: (0, 0, 0)),
                pl.BlockSpec((1, Cout), lambda n: (0, 0)),
            ],
            out_specs=pl.BlockSpec((1, H, W, Cout), lambda n: (n, 0, 0, 0)),
            scratch_shapes=[pltpu.VMEM((H + 2 * _PAD, Wp, Ch), pool_dtype)],
        ),
        compiler_params=pltpu.CompilerParams(**cp),
    )(xc, w1c, b1f, w2c, b2f)


def spp_bottleneck_pallas(x_nchw, w1, b1, w2, b2, *, compute_dtype=None):
    """NCHW entry point (matches the PyTorch module's layout)."""
    x = jnp.transpose(x_nchw, (0, 2, 3, 1))           # NCHW -> NHWC
    out = spp_bottleneck_pallas_nhwc(x, w1, b1, w2, b2,
                                     compute_dtype=compute_dtype)
    return jnp.transpose(out, (0, 3, 1, 2))            # NHWC -> NCHW


# -------------------------------------------------------- params / check ----
def fold_bn(w_oi, gamma, beta, mean, var, eps=BN_EPS):
    """Fold eval-mode BatchNorm into a bias-free 1x1 conv.

    w_oi: (Cout, Cin) PyTorch-order weight.  Returns (Cin, Cout) weight and
    (1, Cout) bias for the NHWC matmul formulation.
    """
    scale = gamma / jnp.sqrt(var + eps)
    w_folded = (w_oi * scale[:, None]).T
    b_folded = (beta - mean * scale)[None, :]
    return w_folded, b_folded


def ref_spp(x_nchw, w1, b1, w2, b2, compute_dtype=jnp.float32):
    """Pure-JAX reference (independent 5/9/13 reduce_window pools + einsum)."""
    x = jnp.transpose(x_nchw, (0, 2, 3, 1)).astype(compute_dtype)
    h = jnp.einsum('nhwc,cd->nhwd', x, w1.astype(compute_dtype),
                   preferred_element_type=jnp.float32) + b1[0].astype(jnp.float32)
    h = h * jax.nn.sigmoid(h)
    h = h.astype(compute_dtype)

    def mp(a, ks):
        p = ks // 2
        return lax.reduce_window(a, jnp.array(-jnp.inf, a.dtype), lax.max,
                                 (1, ks, ks, 1), (1, 1, 1, 1),
                                 [(0, 0), (p, p), (p, p), (0, 0)])

    cat = jnp.concatenate([h] + [mp(h, ks) for ks in KERNEL_SIZES], axis=-1)
    w2_flat = w2.reshape(-1, w2.shape[-1]).astype(compute_dtype)
    y = jnp.einsum('nhwc,cd->nhwd', cat, w2_flat,
                   preferred_element_type=jnp.float32) + b2[0].astype(jnp.float32)
    y = y * jax.nn.sigmoid(y)
    return jnp.transpose(y, (0, 3, 1, 2))


if __name__ == "__main__":
    key = jax.random.PRNGKey(0)
    k_x, k_w1, k_w2 = jax.random.split(key, 3)

    # Small shapes consistent with SPPBottleneck(in_channels=4, out_channels=8)
    N, Cin, H, W = 2, 4, 16, 16
    Cout = 8
    Ch = Cin // 2                          # hidden_channels
    nb = 1 + len(KERNEL_SIZES)             # identity + 3 pools

    x = jax.random.normal(k_x, (N, Cin, H, W), jnp.float32)

    # conv1: 1x1 conv (Ch, Cin) + BatchNorm(Ch) — deterministic init, folded.
    w1_conv = jax.random.normal(k_w1, (Ch, Cin), jnp.float32) * 0.5
    gamma1 = 1.0 + 0.05 * jnp.arange(Ch, dtype=jnp.float32)
    beta1 = 0.02 * jnp.arange(Ch, dtype=jnp.float32)
    mean1 = 0.01 * jnp.arange(Ch, dtype=jnp.float32)
    var1 = 1.0 + 0.10 * jnp.arange(Ch, dtype=jnp.float32)
    w1, b1 = fold_bn(w1_conv, gamma1, beta1, mean1, var1)

    # conv2: 1x1 conv (Cout, 4*Ch) + BatchNorm(Cout) — deterministic, folded.
    c2_in = Ch * nb
    w2_conv = jax.random.normal(k_w2, (Cout, c2_in), jnp.float32) * 0.3
    gamma2 = 1.0 - 0.03 * jnp.arange(Cout, dtype=jnp.float32)
    beta2 = -0.01 * jnp.arange(Cout, dtype=jnp.float32)
    mean2 = 0.02 * jnp.arange(Cout, dtype=jnp.float32)
    var2 = 1.0 + 0.05 * jnp.arange(Cout, dtype=jnp.float32)
    w2_flat, b2 = fold_bn(w2_conv, gamma2, beta2, mean2, var2)   # (4*Ch, Cout)
    # Rows [b*Ch:(b+1)*Ch] act on concat branch b = (x, p5, p9, p13).
    w2 = w2_flat.reshape(nb, Ch, Cout)

    # f32 compute path — strict check (also validates the SPPF-cascade +
    # roll-based pooling against independent 5/9/13 reduce_window pools).
    out = spp_bottleneck_pallas(x, w1, b1, w2, b2)
    out = jax.block_until_ready(out)
    ref = ref_spp(x, w1, b1, w2, b2)
    assert out.shape == (N, Cout, H, W)
    np.testing.assert_allclose(np.asarray(out), np.asarray(ref),
                               rtol=1e-4, atol=1e-4)

    # bf16-operand path (bf16 into the MXU, f32 accumulation & SiLU; pooling
    # dtype chosen per chip generation).
    out_bf = spp_bottleneck_pallas(x, w1, b1, w2, b2,
                                   compute_dtype=jnp.bfloat16)
    out_bf = jax.block_until_ready(out_bf)
    ref_bf = ref_spp(x, w1, b1, w2, b2, compute_dtype=jnp.bfloat16)
    np.testing.assert_allclose(np.asarray(out_bf, dtype=np.float32),
                               np.asarray(ref_bf, dtype=np.float32),
                               rtol=2e-2, atol=2e-2)

    print("KERNEL_OK")
</pallas_src>

<mosaic_0001>
module attributes {stable_mosaic.version = 11 : i64} {
  func.func @spp_kernel(%arg0: i32, %arg1: memref<1x16x16x4xf32, #tpu.memory_space<vmem>>, %arg2: memref<4x2xf32, #tpu.memory_space<vmem>>, %arg3: memref<1x2xf32, #tpu.memory_space<vmem>>, %arg4: memref<4x2x8xf32, #tpu.memory_space<vmem>>, %arg5: memref<1x8xf32, #tpu.memory_space<vmem>>, %arg6: memref<1x16x16x8xf32, #tpu.memory_space<vmem>>, %arg7: memref<20x24x2xf32, #tpu.memory_space<vmem>>) attributes {dimension_semantics = [#tpu.dimension_semantics<parallel>], iteration_bounds = array<i64: 2>, scalar_prefetch = 0 : i64, scratch_operands = 1 : i64, tpu.core_type = #tpu.core_type<tc>, window_params = [{transform_indices = @transform_0, window_bounds = array<i64: 1, 16, 16, 4>}, {pipeline_mode = #tpu.pipeline_mode<synchronous>, transform_indices = @transform_1, window_bounds = array<i64: 4, 2>}, {pipeline_mode = #tpu.pipeline_mode<synchronous>, transform_indices = @transform_2, window_bounds = array<i64: 1, 2>}, {pipeline_mode = #tpu.pipeline_mode<synchronous>, transform_indices = @transform_3, window_bounds = array<i64: 4, 2, 8>}, {pipeline_mode = #tpu.pipeline_mode<synchronous>, transform_indices = @transform_4, window_bounds = array<i64: 1, 8>}, {transform_indices = @transform_5, window_bounds = array<i64: 1, 16, 16, 8>}]} {
    %cst = arith.constant 0xFF800000 : f32
    %0 = vector.broadcast %cst : f32 to vector<2x24x2xf32>
    %c0 = arith.constant 0 : index
    %c0_0 = arith.constant 0 : index
    %c0_1 = arith.constant 0 : index
    %1 = vector.load %arg7[%c0, %c0_0, %c0_1] : memref<20x24x2xf32, #tpu.memory_space<vmem>>, vector<2x24x2xf32>
    tpu.vector_store %arg7[%c0, %c0_0, %c0_1], %0 {strides = array<i32>} : memref<20x24x2xf32, #tpu.memory_space<vmem>>, vector<2x24x2xf32>,
    %cst_2 = arith.constant 0xFF800000 : f32
    %2 = vector.broadcast %cst_2 : f32 to vector<2x24x2xf32>
    %c18 = arith.constant 18 : index
    %c0_3 = arith.constant 0 : index
    %c0_4 = arith.constant 0 : index
    %3 = vector.load %arg7[%c18, %c0_3, %c0_4] : memref<20x24x2xf32, #tpu.memory_space<vmem>>, vector<2x24x2xf32>
    tpu.vector_store %arg7[%c18, %c0_3, %c0_4], %2 {strides = array<i32>} : memref<20x24x2xf32, #tpu.memory_space<vmem>>, vector<2x24x2xf32>,
    %cst_5 = arith.constant 0xFF800000 : f32
    %4 = vector.broadcast %cst_5 : f32 to vector<16x8x2xf32>
    %c2 = arith.constant 2 : index
    %c16 = arith.constant 16 : index
    %c0_6 = arith.constant 0 : index
    %5 = vector.load %arg7[%c2, %c16, %c0_6] : memref<20x24x2xf32, #tpu.memory_space<vmem>>, vector<16x8x2xf32>
    tpu.vector_store %arg7[%c2, %c16, %c0_6], %4 {strides = array<i32>} : memref<20x24x2xf32, #tpu.memory_space<vmem>>, vector<16x8x2xf32>,
    %c0_7 = arith.constant 0 : index
    %c0_8 = arith.constant 0 : index
    %c0_9 = arith.constant 0 : index
    %c0_10 = arith.constant 0 : index
    %6 = vector.load %arg1[%c0_7, %c0_8, %c0_9, %c0_10] : memref<1x16x16x4xf32, #tpu.memory_space<vmem>>, vector<1x16x16x4xf32>
    %7 = vector.shape_cast %6 : vector<1x16x16x4xf32> to vector<16x16x4xf32>
    %8 = vector.shape_cast %7 : vector<16x16x4xf32> to vector<256x4xf32>
    %c0_11 = arith.constant 0 : index
    %c0_12 = arith.constant 0 : index
    %9 = vector.load %arg2[%c0_11, %c0_12] : memref<4x2xf32, #tpu.memory_space<vmem>>, vector<4x2xf32>
    %cst_13 = arith.constant dense<0.000000e+00> : vector<256x2xf32>
    %10 = tpu.matmul %8, %9, %cst_13 {dimension_numbers = #tpu.dot_dimension_numbers<[1], [0], [0], [1], [0, 0, 1, 1], [], []>} : vector<256x4xf32>, vector<4x2xf32>, vector<256x2xf32> -> vector<256x2xf32>
    %c0_14 = arith.constant 0 : index
    %c0_15 = arith.constant 0 : index
    %11 = vector.load %arg3[%c0_14, %c0_15] : memref<1x2xf32, #tpu.memory_space<vmem>>, vector<1x2xf32>
    %12 = vector.broadcast %11 : vector<1x2xf32> to vector<256x2xf32>
    %13 = arith.addf %10, %12 : vector<256x2xf32>
    %14 = arith.negf %13 : vector<256x2xf32>
    %15 = math.exp %14 : vector<256x2xf32>
    %cst_16 = arith.constant 1.000000e+00 : f32
    %16 = vector.broadcast %cst_16 : f32 to vector<256x2xf32>
    %17 = arith.addf %16, %15 : vector<256x2xf32>
    %18 = arith.divf %16, %17 : vector<256x2xf32>
    %19 = arith.mulf %13, %18 : vector<256x2xf32>
    %c0_17 = arith.constant 0 : index
    %c0_18 = arith.constant 0 : index
    %c0_19 = arith.constant 0 : index
    %20 = vector.load %arg4[%c0_17, %c0_18, %c0_19] : memref<4x2x8xf32, #tpu.memory_space<vmem>>, vector<1x2x8xf32>
    %21 = vector.shape_cast %20 : vector<1x2x8xf32> to vector<2x8xf32>
    %cst_20 = arith.constant dense<0.000000e+00> : vector<256x8xf32>
    %22 = tpu.matmul %19, %21, %cst_20 {dimension_numbers = #tpu.dot_dimension_numbers<[1], [0], [0], [1], [0, 0, 1, 1], [], []>} : vector<256x2xf32>, vector<2x8xf32>, vector<256x8xf32> -> vector<256x8xf32>
    %23 = vector.shape_cast %19 : vector<256x2xf32> to vector<16x16x2xf32>
    %c2_21 = arith.constant 2 : index
    %c0_22 = arith.constant 0 : index
    %c0_23 = arith.constant 0 : index
    %24 = vector.load %arg7[%c2_21, %c0_22, %c0_23] : memref<20x24x2xf32, #tpu.memory_space<vmem>>, vector<16x16x2xf32>
    tpu.vector_store %arg7[%c2_21, %c0_22, %c0_23], %23 {strides = array<i32>} : memref<20x24x2xf32, #tpu.memory_space<vmem>>, vector<16x16x2xf32>,
    %c0_24 = arith.constant 0 : index
    %c0_25 = arith.constant 0 : index
    %c0_26 = arith.constant 0 : index
    %25 = vector.load %arg7[%c0_24, %c0_25, %c0_26] : memref<20x24x2xf32, #tpu.memory_space<vmem>>, vector<16x24x2xf32>
    %c1 = arith.constant 1 : index
    %c0_27 = arith.constant 0 : index
    %c0_28 = arith.constant 0 : index
    %26 = vector.load %arg7[%c1, %c0_27, %c0_28] : memref<20x24x2xf32, #tpu.memory_space<vmem>>, vector<16x24x2xf32>
    %27 = arith.maximumf %25, %26 : vector<16x24x2xf32>
    %c2_29 = arith.constant 2 : index
    %c0_30 = arith.constant 0 : index
    %c0_31 = arith.constant 0 : index
    %28 = vector.load %arg7[%c2_29, %c0_30, %c0_31] : memref<20x24x2xf32, #tpu.memory_space<vmem>>, vector<16x24x2xf32>
    %29 = arith.maximumf %27, %28 : vector<16x24x2xf32>
    %c3 = arith.constant 3 : index
    %c0_32 = arith.constant 0 : index
    %c0_33 = arith.constant 0 : index
    %30 = vector.load %arg7[%c3, %c0_32, %c0_33] : memref<20x24x2xf32, #tpu.memory_space<vmem>>, vector<16x24x2xf32>
    %31 = arith.maximumf %29, %30 : vector<16x24x2xf32>
    %c4 = arith.constant 4 : index
    %c0_34 = arith.constant 0 : index
    %c0_35 = arith.constant 0 : index
    %32 = vector.load %arg7[%c4, %c0_34, %c0_35] : memref<20x24x2xf32, #tpu.memory_space<vmem>>, vector<16x24x2xf32>
    %33 = arith.maximumf %31, %32 : vector<16x24x2xf32>
    %c1_i32 = arith.constant 1 : i32
    %34 = tpu.dynamic_rotate %33 by %c1_i32 dim 1 : vector<16x24x2xf32>, i32 -> vector<16x24x2xf32>
    %35 = arith.maximumf %33, %34 : vector<16x24x2xf32>
    %c23_i32 = arith.constant 23 : i32
    %36 = tpu.dynamic_rotate %33 by %c23_i32 dim 1 : vector<16x24x2xf32>, i32 -> vector<16x24x2xf32>
    %37 = arith.maximumf %35, %36 : vector<16x24x2xf32>
    %c2_i32 = arith.constant 2 : i32
    %38 = tpu.dynamic_rotate %33 by %c2_i32 dim 1 : vector<16x24x2xf32>, i32 -> vector<16x24x2xf32>
    %39 = arith.maximumf %37, %38 : vector<16x24x2xf32>
    %c22_i32 = arith.constant 22 : i32
    %40 = tpu.dynamic_rotate %33 by %c22_i32 dim 1 : vector<16x24x2xf32>, i32 -> vector<16x24x2xf32>
    %41 = arith.maximumf %39, %40 : vector<16x24x2xf32>
    %42 = vector.extract_strided_slice %41 {offsets = [0, 0, 0], sizes = [16, 16, 2], strides = [1, 1, 1]} : vector<16x24x2xf32> to vector<16x16x2xf32>
    %43 = vector.shape_cast %42 : vector<16x16x2xf32> to vector<256x2xf32>
    %c1_36 = arith.constant 1 : index
    %c0_37 = arith.constant 0 : index
    %c0_38 = arith.constant 0 : index
    %44 = vector.load %arg4[%c1_36, %c0_37, %c0_38] : memref<4x2x8xf32, #tpu.memory_space<vmem>>, vector<1x2x8xf32>
    %45 = vector.shape_cast %44 : vector<1x2x8xf32> to vector<2x8xf32>
    %cst_39 = arith.constant dense<0.000000e+00> : vector<256x8xf32>
    %46 = tpu.matmul %43, %45, %cst_39 {dimension_numbers = #tpu.dot_dimension_numbers<[1], [0], [0], [1], [0, 0, 1, 1], [], []>} : vector<256x2xf32>, vector<2x8xf32>, vector<256x8xf32> -> vector<256x8xf32>
    %47 = arith.addf %22, %46 : vector<256x8xf32>
    %c2_40 = arith.constant 2 : index
    %c0_41 = arith.constant 0 : index
    %c0_42 = arith.constant 0 : index
    %48 = vector.load %arg7[%c2_40, %c0_41, %c0_42] : memref<20x24x2xf32, #tpu.memory_space<vmem>>, vector<16x16x2xf32>
    tpu.vector_store %arg7[%c2_40, %c0_41, %c0_42], %42 {strides = array<i32>} : memref<20x24x2xf32, #tpu.memory_space<vmem>>, vector<16x16x2xf32>,
    %c0_43 = arith.constant 0 : index
    %c0_44 = arith.constant 0 : index
    %c0_45 = arith.constant 0 : index
    %49 = vector.load %arg7[%c0_43, %c0_44, %c0_45] : memref<20x24x2xf32, #tpu.memory_space<vmem>>, vector<16x24x2xf32>
    %c1_46 = arith.constant 1 : index
    %c0_47 = arith.constant 0 : index
    %c0_48 = arith.constant 0 : index
    %50 = vector.load %arg7[%c1_46, %c0_47, %c0_48] : memref<20x24x2xf32, #tpu.memory_space<vmem>>, vector<16x24x2xf32>
    %51 = arith.maximumf %49, %50 : vector<16x24x2xf32>
    %c2_49 = arith.constant 2 : index
    %c0_50 = arith.constant 0 : index
    %c0_51 = arith.constant 0 : index
    %52 = vector.load %arg7[%c2_49, %c0_50, %c0_51] : memref<20x24x2xf32, #tpu.memory_space<vmem>>, vector<16x24x2xf32>
    %53 = arith.maximumf %51, %52 : vector<16x24x2xf32>
    %c3_52 = arith.constant 3 : index
    %c0_53 = arith.constant 0 : index
    %c0_54 = arith.constant 0 : index
    %54 = vector.load %arg7[%c3_52, %c0_53, %c0_54] : memref<20x24x2xf32, #tpu.memory_space<vmem>>, vector<16x24x2xf32>
    %55 = arith.maximumf %53, %54 : vector<16x24x2xf32>
    %c4_55 = arith.constant 4 : index
    %c0_56 = arith.constant 0 : index
    %c0_57 = arith.constant 0 : index
    %56 = vector.load %arg7[%c4_55, %c0_56, %c0_57] : memref<20x24x2xf32, #tpu.memory_space<vmem>>, vector<16x24x2xf32>
    %57 = arith.maximumf %55, %56 : vector<16x24x2xf32>
    %c1_i32_58 = arith.constant 1 : i32
    %58 = tpu.dynamic_rotate %57 by %c1_i32_58 dim 1 : vector<16x24x2xf32>, i32 -> vector<16x24x2xf32>
    %59 = arith.maximumf %57, %58 : vector<16x24x2xf32>
    %c23_i32_59 = arith.constant 23 : i32
    %60 = tpu.dynamic_rotate %57 by %c23_i32_59 dim 1 : vector<16x24x2xf32>, i32 -> vector<16x24x2xf32>
    %61 = arith.maximumf %59, %60 : vector<16x24x2xf32>
    %c2_i32_60 = arith.constant 2 : i32
    %62 = tpu.dynamic_rotate %57 by %c2_i32_60 dim 1 : vector<16x24x2xf32>, i32 -> vector<16x24x2xf32>
    %63 = arith.maximumf %61, %62 : vector<16x24x2xf32>
    %c22_i32_61 = arith.constant 22 : i32
    %64 = tpu.dynamic_rotate %57 by %c22_i32_61 dim 1 : vector<16x24x2xf32>, i32 -> vector<16x24x2xf32>
    %65 = arith.maximumf %63, %64 : vector<16x24x2xf32>
    %66 = vector.extract_strided_slice %65 {offsets = [0, 0, 0], sizes = [16, 16, 2], strides = [1, 1, 1]} : vector<16x24x2xf32> to vector<16x16x2xf32>
    %67 = vector.shape_cast %66 : vector<16x16x2xf32> to vector<256x2xf32>
    %c2_62 = arith.constant 2 : index
    %c0_63 = arith.constant 0 : index
    %c0_64 = arith.constant 0 : index
    %68 = vector.load %arg4[%c2_62, %c0_63, %c0_64] : memref<4x2x8xf32, #tpu.memory_space<vmem>>, vector<1x2x8xf32>
    %69 = vector.shape_cast %68 : vector<1x2x8xf32> to vector<2x8xf32>
    %cst_65 = arith.constant dense<0.000000e+00> : vector<256x8xf32>
    %70 = tpu.matmul %67, %69, %cst_65 {dimension_numbers = #tpu.dot_dimension_numbers<[1], [0], [0], [1], [0, 0, 1, 1], [], []>} : vector<256x2xf32>, vector<2x8xf32>, vector<256x8xf32> -> vector<256x8xf32>
    %71 = arith.addf %47, %70 : vector<256x8xf32>
    %c2_66 = arith.constant 2 : index
    %c0_67 = arith.constant 0 : index
    %c0_68 = arith.constant 0 : index
    %72 = vector.load %arg7[%c2_66, %c0_67, %c0_68] : memref<20x24x2xf32, #tpu.memory_space<vmem>>, vector<16x16x2xf32>
    tpu.vector_store %arg7[%c2_66, %c0_67, %c0_68], %66 {strides = array<i32>} : memref<20x24x2xf32, #tpu.memory_space<vmem>>, vector<16x16x2xf32>,
    %c0_69 = arith.constant 0 : index
    %c0_70 = arith.constant 0 : index
    %c0_71 = arith.constant 0 : index
    %73 = vector.load %arg7[%c0_69, %c0_70, %c0_71] : memref<20x24x2xf32, #tpu.memory_space<vmem>>, vector<16x24x2xf32>
    %c1_72 = arith.constant 1 : index
    %c0_73 = arith.constant 0 : index
    %c0_74 = arith.constant 0 : index
    %74 = vector.load %arg7[%c1_72, %c0_73, %c0_74] : memref<20x24x2xf32, #tpu.memory_space<vmem>>, vector<16x24x2xf32>
    %75 = arith.maximumf %73, %74 : vector<16x24x2xf32>
    %c2_75 = arith.constant 2 : index
    %c0_76 = arith.constant 0 : index
    %c0_77 = arith.constant 0 : index
    %76 = vector.load %arg7[%c2_75, %c0_76, %c0_77] : memref<20x24x2xf32, #tpu.memory_space<vmem>>, vector<16x24x2xf32>
    %77 = arith.maximumf %75, %76 : vector<16x24x2xf32>
    %c3_78 = arith.constant 3 : index
    %c0_79 = arith.constant 0 : index
    %c0_80 = arith.constant 0 : index
    %78 = vector.load %arg7[%c3_78, %c0_79, %c0_80] : memref<20x24x2xf32, #tpu.memory_space<vmem>>, vector<16x24x2xf32>
    %79 = arith.maximumf %77, %78 : vector<16x24x2xf32>
    %c4_81 = arith.constant 4 : index
    %c0_82 = arith.constant 0 : index
    %c0_83 = arith.constant 0 : index
    %80 = vector.load %arg7[%c4_81, %c0_82, %c0_83] : memref<20x24x2xf32, #tpu.memory_space<vmem>>, vector<16x24x2xf32>
    %81 = arith.maximumf %79, %80 : vector<16x24x2xf32>
    %c1_i32_84 = arith.constant 1 : i32
    %82 = tpu.dynamic_rotate %81 by %c1_i32_84 dim 1 : vector<16x24x2xf32>, i32 -> vector<16x24x2xf32>
    %83 = arith.maximumf %81, %82 : vector<16x24x2xf32>
    %c23_i32_85 = arith.constant 23 : i32
    %84 = tpu.dynamic_rotate %81 by %c23_i32_85 dim 1 : vector<16x24x2xf32>, i32 -> vector<16x24x2xf32>
    %85 = arith.maximumf %83, %84 : vector<16x24x2xf32>
    %c2_i32_86 = arith.constant 2 : i32
    %86 = tpu.dynamic_rotate %81 by %c2_i32_86 dim 1 : vector<16x24x2xf32>, i32 -> vector<16x24x2xf32>
    %87 = arith.maximumf %85, %86 : vector<16x24x2xf32>
    %c22_i32_87 = arith.constant 22 : i32
    %88 = tpu.dynamic_rotate %81 by %c22_i32_87 dim 1 : vector<16x24x2xf32>, i32 -> vector<16x24x2xf32>
    %89 = arith.maximumf %87, %88 : vector<16x24x2xf32>
    %90 = vector.extract_strided_slice %89 {offsets = [0, 0, 0], sizes = [16, 16, 2], strides = [1, 1, 1]} : vector<16x24x2xf32> to vector<16x16x2xf32>
    %91 = vector.shape_cast %90 : vector<16x16x2xf32> to vector<256x2xf32>
    %c3_88 = arith.constant 3 : index
    %c0_89 = arith.constant 0 : index
    %c0_90 = arith.constant 0 : index
    %92 = vector.load %arg4[%c3_88, %c0_89, %c0_90] : memref<4x2x8xf32, #tpu.memory_space<vmem>>, vector<1x2x8xf32>
    %93 = vector.shape_cast %92 : vector<1x2x8xf32> to vector<2x8xf32>
    %cst_91 = arith.constant dense<0.000000e+00> : vector<256x8xf32>
    %94 = tpu.matmul %91, %93, %cst_91 {dimension_numbers = #tpu.dot_dimension_numbers<[1], [0], [0], [1], [0, 0, 1, 1], [], []>} : vector<256x2xf32>, vector<2x8xf32>, vector<256x8xf32> -> vector<256x8xf32>
    %95 = arith.addf %71, %94 : vector<256x8xf32>
    %c0_92 = arith.constant 0 : index
    %c0_93 = arith.constant 0 : index
    %96 = vector.load %arg5[%c0_92, %c0_93] : memref<1x8xf32, #tpu.memory_space<vmem>>, vector<1x8xf32>
    %97 = vector.broadcast %96 : vector<1x8xf32> to vector<256x8xf32>
    %98 = arith.addf %95, %97 : vector<256x8xf32>
    %99 = arith.negf %98 : vector<256x8xf32>
    %100 = math.exp %99 : vector<256x8xf32>
    %cst_94 = arith.constant 1.000000e+00 : f32
    %101 = vector.broadcast %cst_94 : f32 to vector<256x8xf32>
    %102 = arith.addf %101, %100 : vector<256x8xf32>
    %103 = arith.divf %101, %102 : vector<256x8xf32>
    %104 = arith.mulf %98, %103 : vector<256x8xf32>
    %105 = vector.shape_cast %104 : vector<256x8xf32> to vector<16x16x8xf32>
    %c0_95 = arith.constant 0 : index
    %c0_96 = arith.constant 0 : index
    %c0_97 = arith.constant 0 : index
    %c0_98 = arith.constant 0 : index
    %106 = vector.load %arg6[%c0_95, %c0_96, %c0_97, %c0_98] : memref<1x16x16x8xf32, #tpu.memory_space<vmem>>, vector<1x16x16x8xf32>
    %107 = vector.shape_cast %106 : vector<1x16x16x8xf32> to vector<16x16x8xf32>
    %108 = vector.shape_cast %105 : vector<16x16x8xf32> to vector<1x16x16x8xf32>
    tpu.vector_store %arg6[%c0_95, %c0_96, %c0_97, %c0_98], %108 {strides = array<i32>} : memref<1x16x16x8xf32, #tpu.memory_space<vmem>>, vector<1x16x16x8xf32>,
    return
  }
  func.func @transform_0(%arg0: i32) -> (i32, i32, i32, i32) {
    %c0_i32 = arith.constant 0 : i32
    %c0_i32_0 = arith.constant 0 : i32
    %c0_i32_1 = arith.constant 0 : i32
    %c0_i32_2 = arith.constant 0 : i32
    return %arg0, %c0_i32, %c0_i32_0, %c0_i32_1 : i32, i32, i32, i32
  }
  func.func @transform_1(%arg0: i32) -> (i32, i32) {
    %c0_i32 = arith.constant 0 : i32
    %c0_i32_0 = arith.constant 0 : i32
    %c0_i32_1 = arith.constant 0 : i32
    return %c0_i32, %c0_i32_0 : i32, i32
  }
  func.func @transform_2(%arg0: i32) -> (i32, i32) {
    %c0_i32 = arith.constant 0 : i32
    %c0_i32_0 = arith.constant 0 : i32
    %c0_i32_1 = arith.constant 0 : i32
    return %c0_i32, %c0_i32_0 : i32, i32
  }
  func.func @transform_3(%arg0: i32) -> (i32, i32, i32) {
    %c0_i32 = arith.constant 0 : i32
    %c0_i32_0 = arith.constant 0 : i32
    %c0_i32_1 = arith.constant 0 : i32
    %c0_i32_2 = arith.constant 0 : i32
    return %c0_i32, %c0_i32_0, %c0_i32_1 : i32, i32, i32
  }
  func.func @transform_4(%arg0: i32) -> (i32, i32) {
    %c0_i32 = arith.constant 0 : i32
    %c0_i32_0 = arith.constant 0 : i32
    %c0_i32_1 = arith.constant 0 : i32
    return %c0_i32, %c0_i32_0 : i32, i32
  }
  func.func @transform_5(%arg0: i32) -> (i32, i32, i32, i32) {
    %c0_i32 = arith.constant 0 : i32
    %c0_i32_0 = arith.constant 0 : i32
    %c0_i32_1 = arith.constant 0 : i32
    %c0_i32_2 = arith.constant 0 : i32
    return %arg0, %c0_i32, %c0_i32_0, %c0_i32_1 : i32, i32, i32, i32
  }
}

</mosaic_0001>

<llo_original>
// kernel: tpu_custom_call.1
$region0: #{tpu_custom_call.1}
  #allocation0 [shape = 'u32[]', space=smem, size = 0x4, offset = 0x4, fixed_abs, tag = 'smem constant byte address 0x4 - core index']
  #allocation1 [shape = 'u32[144,128]{1,0:T(1,128)}', space=vmem, size = 0x12000, scoped, tag = 'internal scratch']
  #allocation2 [shape = 'f32[20,24,2]{2,1,0:T(8,128)}', space=vmem, size = 0x3c000, scoped, tag = 'scratch operand']
  %s0 = inlined_call_operand.vmem [shape: f32[2,16,16,4], index: 0, kind: input, shape index: {}]
  %s1 = inlined_call_operand.vmem [shape: f32[4,2], index: 1, kind: input, shape index: {}]
  %s2 = inlined_call_operand.vmem [shape: f32[1,2], index: 2, kind: input, shape index: {}]
  %s3 = inlined_call_operand.vmem [shape: f32[4,2,8], index: 3, kind: input, shape index: {}]
  %s4 = inlined_call_operand.vmem [shape: f32[1,8], index: 4, kind: input, shape index: {}]
  %s5 = inlined_call_operand.vmem [shape: f32[2,16,16,8], index: 5, kind: output, shape index: {}]
  %s6 = sld [smem:[#allocation0]]
  $region53: #{tpu_custom_call.1} parent=0
    _
  %s8 = ssub.s32 1, %s6
  %s9 = scalar_select 0, %s8, %s6
  loop: start=0, step=1, limit=4
  $region2: #{tpu_custom_call.1} parent=0 // loop_pre_header
    _
  $region3: #{tpu_custom_call.1} parent=0 // loop_header
    %s11 = sphi 0, %s15
    %p12 = scmp.ge.s32.totalorder %s11, 4
    %s21 = sphi 0, %s23
    %s24 = sphi 0, %s21
    %s25 = sphi 0, %s24
    %s41 = sphi 0, %s25
    %s45 = sphi 0, %s45
    %s47 = sphi 0, %s45
    %s48 = sphi 0, %s47
    %s62 = sphi 0, %s48
    %s66 = sphi 0, %s66
    %s68 = sphi 0, %s66
    %s69 = sphi 0, %s68
    %s83 = sphi 0, %s69
    %s87 = sphi 0, %s87
    %s89 = sphi 0, %s87
    %s90 = sphi 0, %s89
    %s104 = sphi 0, %s90
    %s108 = sphi 0, %s108
    %s110 = sphi 0, %s108
    %s111 = sphi 0, %s110
    %s125 = sphi 0, %s111
    %s131 = sphi 0, %s133
    %s134 = sphi 0, %s131
    %s135 = sphi 0, %s134
    %s151 = sphi 0, %s135
  $region4: #{tpu_custom_call.1} parent=0 // loop_header_branch
    %14 = sbr.rel (%p12) target = $region8
  $region5: #{tpu_custom_call.1} parent=0 // loop_body
    %s16 = ssub.s32 %s11, 1
    %s17 = ssub.s32 %s11, 2
    %s18 = sadd.s32 %s11, 1
    %s19 = ssub.s32 %s11, %s18
    %p20 = scmp.eq.s32.totalorder %s19, 0
    %s22 = sadd.s32 %s21, 1
    %s23 = scalar_select %p20, %s21, %s22
    %p26 = pneg %p20
    %p27 = scmp.eq.s32.totalorder %s11, 1
    %p28 = por %p26, %p27
    %p29 = scmp.ne.s32.totalorder %s21, %s24
    %p30 = scmp.eq.s32.totalorder %s11, 0
    %p31 = por %p29, %p30
    %p32 = scmp.ne.s32.totalorder %s21, %s24
    %p33 = scmp.eq.s32.totalorder %s16, 1
    %p34 = por %p32, %p33
    %p35 = scmp.ne.s32.totalorder %s24, %s25
    %p36 = scmp.eq.s32.totalorder %s16, 0
    %p37 = por %p35, %p36
    %p38 = scmp.ne.s32.totalorder %s24, %s25
    %p39 = scmp.eq.s32.totalorder %s17, 1
    %p40 = por %p38, %p39
    %p42 = scmp.ne.s32.totalorder %s25, %s41
    %p43 = scmp.eq.s32.totalorder %s17, 0
    %p44 = por %p42, %p43
    %s46 = sadd.s32 %s45, 1
    %p49 = scmp.eq.s32.totalorder %s11, 1
    %p50 = scmp.ne.s32.totalorder %s45, %s47
    %p51 = scmp.eq.s32.totalorder %s11, 0
    %p52 = por %p50, %p51
    %p53 = scmp.ne.s32.totalorder %s45, %s47
    %p54 = scmp.eq.s32.totalorder %s16, 1
    %p55 = por %p53, %p54
    %p56 = scmp.ne.s32.totalorder %s47, %s48
    %p57 = scmp.eq.s32.totalorder %s16, 0
    %p58 = por %p56, %p57
    %p59 = scmp.ne.s32.totalorder %s47, %s48
    %p60 = scmp.eq.s32.totalorder %s17, 1
    %p61 = por %p59, %p60
    %p63 = scmp.ne.s32.totalorder %s48, %s62
    %p64 = scmp.eq.s32.totalorder %s17, 0
    %p65 = por %p63, %p64
    %s67 = sadd.s32 %s66, 1
    %p70 = scmp.eq.s32.totalorder %s11, 1
    %p71 = scmp.ne.s32.totalorder %s66, %s68
    %p72 = scmp.eq.s32.totalorder %s11, 0
    %p73 = por %p71, %p72
    %p74 = scmp.ne.s32.totalorder %s66, %s68
    %p75 = scmp.eq.s32.totalorder %s16, 1
    %p76 = por %p74, %p75
    %p77 = scmp.ne.s32.totalorder %s68, %s69
    %p78 = scmp.eq.s32.totalorder %s16, 0
    %p79 = por %p77, %p78
    %p80 = scmp.ne.s32.totalorder %s68, %s69
    %p81 = scmp.eq.s32.totalorder %s17, 1
    %p82 = por %p80, %p81
    %p84 = scmp.ne.s32.totalorder %s69, %s83
    %p85 = scmp.eq.s32.totalorder %s17, 0
    %p86 = por %p84, %p85
    %s88 = sadd.s32 %s87, 1
    %p91 = scmp.eq.s32.totalorder %s11, 1
    %p92 = scmp.ne.s32.totalorder %s87, %s89
    %p93 = scmp.eq.s32.totalorder %s11, 0
    %p94 = por %p92, %p93
    %p95 = scmp.ne.s32.totalorder %s87, %s89
    %p96 = scmp.eq.s32.totalorder %s16, 1
    %p97 = por %p95, %p96
    %p98 = scmp.ne.s32.totalorder %s89, %s90
    %p99 = scmp.eq.s32.totalorder %s16, 0
    %p100 = por %p98, %p99
    %p101 = scmp.ne.s32.totalorder %s89, %s90
    %p102 = scmp.eq.s32.totalorder %s17, 1
    %p103 = por %p101, %p102
    %p105 = scmp.ne.s32.totalorder %s90, %s104
    %p106 = scmp.eq.s32.totalorder %s17, 0
    %p107 = por %p105, %p106
    %s109 = sadd.s32 %s108, 1
    %p112 = scmp.eq.s32.totalorder %s11, 1
    %p113 = scmp.ne.s32.totalorder %s108, %s110
    %p114 = scmp.eq.s32.totalorder %s11, 0
    %p115 = por %p113, %p114
    %p116 = scmp.ne.s32.totalorder %s108, %s110
    %p117 = scmp.eq.s32.totalorder %s16, 1
    %p118 = por %p116, %p117
    %p119 = scmp.ne.s32.totalorder %s110, %s111
    %p120 = scmp.eq.s32.totalorder %s16, 0
    %p121 = por %p119, %p120
    %p122 = scmp.ne.s32.totalorder %s110, %s111
    %p123 = scmp.eq.s32.totalorder %s17, 1
    %p124 = por %p122, %p123
    %p126 = scmp.ne.s32.totalorder %s111, %s125
    %p127 = scmp.eq.s32.totalorder %s17, 0
    %p128 = por %p126, %p127
    %s129 = ssub.s32 %s11, %s18
    %p130 = scmp.eq.s32.totalorder %s129, 0
    %s132 = sadd.s32 %s131, 1
    %s133 = scalar_select %p130, %s131, %s132
    %p136 = pneg %p130
    %p137 = scmp.eq.s32.totalorder %s11, 1
    %p138 = por %p136, %p137
    %p139 = scmp.ne.s32.totalorder %s131, %s134
    %p140 = scmp.eq.s32.totalorder %s11, 0
    %p141 = por %p139, %p140
    %p142 = scmp.ne.s32.totalorder %s131, %s134
    %p143 = scmp.eq.s32.totalorder %s16, 1
    %p144 = por %p142, %p143
    %p145 = scmp.ne.s32.totalorder %s134, %s135
    %p146 = scmp.eq.s32.totalorder %s16, 0
    %p147 = por %p145, %p146
    %p148 = scmp.ne.s32.totalorder %s134, %s135
    %p149 = scmp.eq.s32.totalorder %s17, 1
    %p150 = por %p148, %p149
    %p152 = scmp.ne.s32.totalorder %s135, %s151
    %p153 = scmp.eq.s32.totalorder %s17, 0
    %p154 = por %p152, %p153
    %p155 = scmp.le.s32.totalorder 1, %s11
    %p156 = scmp.lt.s32.totalorder %s11, 3
    %p157 = pnand %p155, %p156
    %p158 = pneg %p157
    // Predicated region
    $region9: #{tpu_custom_call.1} parent=5 // pred_check
      _
    $region10: #{tpu_custom_call.1} parent=5 // pred_check_branch
      %160 = sbr.rel (%p157) target = $region12
    $region11: #{tpu_custom_call.1} parent=5 // pred_region
      %s161 = ssub.s32 %s11, 1
      // Predicated region
      $region13: #{tpu_custom_call.1} parent=11 // pred_check
        %p162 = pneg %p58
      $region14: #{tpu_custom_call.1} parent=11 // pred_check_branch
        %164 = sbr.rel (%p162) target = $region16
      $region15: #{tpu_custom_call.1} parent=11 // pred_region
        _
      $region16: #{tpu_custom_call.1} parent=11 // pred_fallthru
        _
      // Predicated region
      $region17: #{tpu_custom_call.1} parent=11 // pred_check
        %p165 = pneg %p79
      $region18: #{tpu_custom_call.1} parent=11 // pred_check_branch
        %167 = sbr.rel (%p165) target = $region20
      $region19: #{tpu_custom_call.1} parent=11 // pred_region
        _
      $region20: #{tpu_custom_call.1} parent=11 // pred_fallthru
        _
      // Predicated region
      $region21: #{tpu_custom_call.1} parent=11 // pred_check
        %p168 = pneg %p100
      $region22: #{tpu_custom_call.1} parent=11 // pred_check_branch
        %170 = sbr.rel (%p168) target = $region24
      $region23: #{tpu_custom_call.1} parent=11 // pred_region
        _
      $region24: #{tpu_custom_call.1} parent=11 // pred_fallthru
        _
      // Predicated region
      $region25: #{tpu_custom_call.1} parent=11 // pred_check
        %p171 = pneg %p121
      $region26: #{tpu_custom_call.1} parent=11 // pred_check_branch
        %173 = sbr.rel (%p171) target = $region28
      $region27: #{tpu_custom_call.1} parent=11 // pred_region
        _
      $region28: #{tpu_custom_call.1} parent=11 // pred_fallthru
        _
    $region12: #{tpu_custom_call.1} parent=5 // pred_fallthru
      _
    %p174 = scmp.lt.s32.totalorder %s11, 2
    // Predicated region
    $region29: #{tpu_custom_call.1} parent=5 // pred_check
      %p175 = pneg %p174
    $region30: #{tpu_custom_call.1} parent=5 // pred_check_branch
      %177 = sbr.rel (%p175) target = $region32
    $region31: #{tpu_custom_call.1} parent=5 // pred_region
      // Predicated region
      $region33: #{tpu_custom_call.1} parent=31 // pred_check
        %p178 = pneg %p31
      $region34: #{tpu_custom_call.1} parent=31 // pred_check_branch
        %180 = sbr.rel (%p178) target = $region36
      $region35: #{tpu_custom_call.1} parent=31 // pred_region
        %p181 = scmp.lt.s32.totalorder %s11, 1
        %s182 = scalar_select %p181, %s11, 1
        %s183 = smul.addr %s182, 32
        %s184 = smul.addr %s183, 8
        %s185 = scalar_lea.vmem %s0, %s184
      $region36: #{tpu_custom_call.1} parent=31 // pred_fallthru
        _
    $region32: #{tpu_custom_call.1} parent=5 // pred_fallthru
      _
    %p186 = scmp.le.s32.totalorder 1, %s11
    %p187 = scmp.lt.s32.totalorder %s11, 3
    %p188 = pnand %p186, %p187
    %p189 = pneg %p188
    // Predicated region
    $region37: #{tpu_custom_call.1} parent=5 // pred_check
      _
    $region38: #{tpu_custom_call.1} parent=5 // pred_check_branch
      %191 = sbr.rel (%p188) target = $region40
    $region39: #{tpu_custom_call.1} parent=5 // pred_region
      %s192 = ssub.s32 %s11, 1
      %p193 = scmp.lt.s32.totalorder %s16, 1
      %s194 = scalar_select %p193, %s16, 1
      %s195 = smul.addr %s194, 32
      %s196 = smul.addr %s195, 8
      %s197 = scalar_lea.vmem %s0, %s196
      %p198 = pneg %p37
      %p199 = pneg %p34
      %p200 = pneg %p58
      %p201 = pneg %p55
      %p202 = pneg %p79
      %p203 = pneg %p76
      %p204 = pneg %p100
      %p205 = pneg %p97
      %p206 = pneg %p121
      %p207 = pneg %p118
      %p208 = pneg %p147
      %p209 = pneg %p144
      %p210 = scmp.lt.s32.totalorder %s16, 1
      %s211 = scalar_select %p210, %s16, 1
      %s212 = smul.addr %s211, 32
      %s213 = smul.addr %s212, 8
      %s214 = scalar_lea.vmem %s5, %s213
      %p215 = scmp.lt.s32.totalorder %s16, 1
      %s216 = scalar_select %p215, %s16, 1
      %s217 = smul.addr %s216, 32
      %s218 = smul.addr %s217, 8
      %s219 = scalar_lea.vmem %s0, %s218
      %p220 = scmp.lt.s32.totalorder %s16, 1
      %s221 = scalar_select %p220, %s16, 1
      %s222 = smul.addr %s221, 32
      %s223 = smul.addr %s222, 8
      %s224 = scalar_lea.vmem %s5, %s223
      %vm225 = vcmask 15360
      %226 = vst.msk [vmem:[#allocation2] sm:$0xff] %vm225, -inf
      %227 = vst.msk [vmem:[#allocation2 + $0x8] sm:$0xff] %vm225, -inf
      %228 = vst.msk [vmem:[#allocation2 + $0x10] sm:$0xff] %vm225, -inf
      %229 = vst.msk [vmem:[#allocation2 + $0x18] sm:$0xff] %vm225, -inf
      %230 = vst.msk [vmem:[#allocation2 + $0x20] sm:$0xff] %vm225, -inf
      %231 = vst.msk [vmem:[#allocation2 + $0x28] sm:$0xff] %vm225, -inf
      %s232 = scalar_lea.vmem [#allocation2], 432
      %233 = vst.msk [vmem:[%s232] sm:$0xff] %vm225, -inf
      %234 = vst.msk [vmem:[%s232 + $0x8] sm:$0xff] %vm225, -inf
      %235 = vst.msk [vmem:[%s232 + $0x10] sm:$0xff] %vm225, -inf
      %236 = vst.msk [vmem:[%s232 + $0x18] sm:$0xff] %vm225, -inf
      %237 = vst.msk [vmem:[%s232 + $0x20] sm:$0xff] %vm225, -inf
      %238 = vst.msk [vmem:[%s232 + $0x28] sm:$0xff] %vm225, -inf
      %s239 = scalar_lea.vmem [#allocation2], 48
      %240 = vst.msk [vmem:[%s239 + $0x10] sm:$0xff] %vm225, -inf
      %241 = vst.msk [vmem:[%s239 + $0x28] sm:$0xff] %vm225, -inf
      %242 = vst.msk [vmem:[%s239 + $0x40] sm:$0xff] %vm225, -inf
      %243 = vst.msk [vmem:[%s239 + $0x58] sm:$0xff] %vm225, -inf
      %244 = vst.msk [vmem:[%s239 + $0x70] sm:$0xff] %vm225, -inf
      %245 = vst.msk [vmem:[%s239 + $0x88] sm:$0xff] %vm225, -inf
      %246 = vst.msk [vmem:[%s239 + $0xa0] sm:$0xff] %vm225, -inf
      %247 = vst.msk [vmem:[%s239 + $0xb8] sm:$0xff] %vm225, -inf
      %248 = vst.msk [vmem:[%s239 + $0xd0] sm:$0xff] %vm225, -inf
      %249 = vst.msk [vmem:[%s239 + $0xe8] sm:$0xff] %vm225, -inf
      %250 = vst.msk [vmem:[%s239 + $0x100] sm:$0xff] %vm225, -inf
      %251 = vst.msk [vmem:[%s239 + $0x118] sm:$0xff] %vm225, -inf
      %252 = vst.msk [vmem:[%s239 + $0x130] sm:$0xff] %vm225, -inf
      %253 = vst.msk [vmem:[%s239 + $0x148] sm:$0xff] %vm225, -inf
      %254 = vst.msk [vmem:[%s239 + $0x160] sm:$0xff] %vm225, -inf
      %255 = vst.msk [vmem:[%s239 + $0x178] sm:$0xff] %vm225, -inf
      %v256 = vld [vmem:[%s219] sm:$0xff]
      %v257 = vld [vmem:[%s219 + $0x8] sm:$0xff]
      %v258 = vld [vmem:[%s219 + $0x10] sm:$0xff]
      %v259 = vld [vmem:[%s219 + $0x18] sm:$0xff]
      %v260 = vld [vmem:[%s219 + $0x20] sm:$0xff]
      %v261 = vld [vmem:[%s219 + $0x28] sm:$0xff]
      %v262 = vld [vmem:[%s219 + $0x30] sm:$0xff]
      %v263 = vld [vmem:[%s219 + $0x38] sm:$0xff]
      %v264 = vld [vmem:[%s219 + $0x40] sm:$0xff]
      %v265 = vld [vmem:[%s219 + $0x48] sm:$0xff]
      %v266 = vld [vmem:[%s219 + $0x50] sm:$0xff]
      %v267 = vld [vmem:[%s219 + $0x58] sm:$0xff]
      %v268 = vld [vmem:[%s219 + $0x60] sm:$0xff]
      %v269 = vld [vmem:[%s219 + $0x68] sm:$0xff]
      %v270 = vld [vmem:[%s219 + $0x70] sm:$0xff]
      %v271 = vld [vmem:[%s219 + $0x78] sm:$0xff]
      %v272 = vld [vmem:[%s219 + $0x80] sm:$0xff]
      %v273 = vld [vmem:[%s219 + $0x88] sm:$0xff]
      %v274 = vld [vmem:[%s219 + $0x90] sm:$0xff]
      %v275 = vld [vmem:[%s219 + $0x98] sm:$0xff]
      %v276 = vld [vmem:[%s219 + $0xa0] sm:$0xff]
      %v277 = vld [vmem:[%s219 + $0xa8] sm:$0xff]
      %v278 = vld [vmem:[%s219 + $0xb0] sm:$0xff]
      %v279 = vld [vmem:[%s219 + $0xb8] sm:$0xff]
      %v280 = vld [vmem:[%s219 + $0xc0] sm:$0xff]
      %v281 = vld [vmem:[%s219 + $0xc8] sm:$0xff]
      %v282 = vld [vmem:[%s219 + $0xd0] sm:$0xff]
      %v283 = vld [vmem:[%s219 + $0xd8] sm:$0xff]
      %v284 = vld [vmem:[%s219 + $0xe0] sm:$0xff]
      %v285 = vld [vmem:[%s219 + $0xe8] sm:$0xff]
      %v286 = vld [vmem:[%s219 + $0xf0] sm:$0xff]
      %v287 = vld [vmem:[%s219 + $0xf8] sm:$0xff]
      %v288 = vld [vmem:[%s1] sm:$0xf]
      %v289 = vld [vmem:[%s2] sm:$0x1]
      %v291 = vlaneseq
      %v292 = vshrl.u32 %v291, 7
      %v293 = vsub.s32 0, %v292
      %v294 = vrot.slane %v289, %v293
      %vm296 = vcmask 31744
      %v298 = vsel %vm296, %v256, 0
      %v301 = vsel %vm296, %v257, 0
      %v304 = vsel %vm296, %v258, 0
      %v307 = vsel %vm296, %v259, 0
      %v310 = vsel %vm296, %v260, 0
      %v313 = vsel %vm296, %v261, 0
      %v316 = vsel %vm296, %v262, 0
      %v319 = vsel %vm296, %v263, 0
      %v322 = vsel %vm296, %v264, 0
      %v325 = vsel %vm296, %v265, 0
      %v328 = vsel %vm296, %v266, 0
      %v331 = vsel %vm296, %v267, 0
      %v334 = vsel %vm296, %v268, 0
      %v337 = vsel %vm296, %v269, 0
      %v340 = vsel %vm296, %v270, 0
      %v343 = vsel %vm296, %v271, 0
      %v346 = vsel %vm296, %v272, 0
      %v349 = vsel %vm296, %v273, 0
      %v352 = vsel %vm296, %v274, 0
      %v355 = vsel %vm296, %v275, 0
      %v358 = vsel %vm296, %v276, 0
      %v361 = vsel %vm296, %v277, 0
      %v364 = vsel %vm296, %v278, 0
      %v367 = vsel %vm296, %v279, 0
      %v370 = vsel %vm296, %v280, 0
      %v373 = vsel %vm296, %v281, 0
      %v376 = vsel %vm296, %v282, 0
      %v379 = vsel %vm296, %v283, 0
      %v382 = vsel %vm296, %v284, 0
      %v385 = vsel %vm296, %v285, 0
      %v388 = vsel %vm296, %v286, 0
      %v391 = vsel %vm296, %v287, 0
      %vm393 = vcmask 1043456
      %v395 = vsel %vm393, %v288, 0
      %397 = vmatprep.subr.mxu0 0.0
      %398 = vmatpush1.msra.mxu0 0.0
      %399 = vmatprep.subr.mxu0 0.0
      %400 = vmatpush1.msra.mxu0 0.0
      %401 = vmatprep.subr.mxu0 0.0
      %402 = vmatpush1.msra.mxu0 0.0
      %403 = vmatprep.subr.mxu0 0.0
      %404 = vmatpush1.msra.mxu0 0.0
      %405 = vmatprep.subr.mxu0 0.0
      %406 = vmatpush1.msra.mxu0 0.0
      %407 = vmatprep.subr.mxu0 0.0
      %408 = vmatpush1.msra.mxu0 0.0
      %409 = vmatprep.subr.mxu0 0.0
      %410 = vmatpush1.msra.mxu0 0.0
      %411 = vmatprep.subr.mxu0 0.0
      %412 = vmatpush1.msra.mxu0 0.0
      %413 = vmatprep.subr.mxu0 0.0
      %414 = vmatpush1.msra.mxu0 0.0
      %415 = vmatprep.subr.mxu0 0.0
      %416 = vmatpush1.msra.mxu0 0.0
      %417 = vmatprep.subr.mxu0 0.0
      %418 = vmatpush1.msra.mxu0 0.0
      %419 = vmatprep.subr.mxu0 0.0
      %420 = vmatpush1.msra.mxu0 0.0
      %421 = vmatprep.subr.mxu0 0.0
      %422 = vmatpush1.msra.mxu0 0.0
      %423 = vmatprep.subr.mxu0 0.0
      %424 = vmatpush1.msra.mxu0 0.0
      %425 = vmatprep.subr.mxu0 0.0
      %426 = vmatpush1.msra.mxu0 0.0
      %427 = vmatprep.subr.mxu0 0.0
      %428 = vmatpush1.msra.mxu0 %v395
      %429 = vmatprep.subr.mxu0 0.0
      %430 = vmatpush2.msra.mxu0 0.0
      %431 = vmatprep.subr.mxu0 0.0
      %432 = vmatpush2.msra.mxu0 0.0
      %433 = vmatprep.subr.mxu0 0.0
      %434 = vmatpush2.msra.mxu0 0.0
      %435 = vmatprep.subr.mxu0 0.0
      %436 = vmatpush2.msra.mxu0 0.0
      %437 = vmatprep.subr.mxu0 0.0
      %438 = vmatpush2.msra.mxu0 0.0
      %439 = vmatprep.subr.mxu0 0.0
      %440 = vmatpush2.msra.mxu0 0.0
      %441 = vmatprep.subr.mxu0 0.0
      %442 = vmatpush2.msra.mxu0 0.0
      %443 = vmatprep.subr.mxu0 0.0
      %444 = vmatpush2.msra.mxu0 0.0
      %445 = vmatprep.subr.mxu0 0.0
      %446 = vmatpush2.msra.mxu0 0.0
      %447 = vmatprep.subr.mxu0 0.0
      %448 = vmatpush2.msra.mxu0 0.0
      %449 = vmatprep.subr.mxu0 0.0
      %450 = vmatpush2.msra.mxu0 0.0
      %451 = vmatprep.subr.mxu0 0.0
      %452 = vmatpush2.msra.mxu0 0.0
      %453 = vmatprep.subr.mxu0 0.0
      %454 = vmatpush2.msra.mxu0 0.0
      %455 = vmatprep.subr.mxu0 0.0
      %456 = vmatpush2.msra.mxu0 0.0
      %457 = vmatprep.subr.mxu0 0.0
      %458 = vmatpush2.msra.mxu0 0.0
      %459 = vmatprep.subr.mxu0 0.0
      %460 = vmatpush2.msra.mxu0 0.0
      %461 = vmatprep.mubr.f32.mxu0 0.0
      %462 = vmatmul.mubr.f32.gmra.mxu0 %v298
      %v463 = vpop.f32.mrf.mxu0
      %v464 = vadd.f32 %v294, %v463
      %v465 = vpop.f32.mrf.mxu0
      %466 = vmatprep.mubr.f32.mxu0 0.0
      %467 = vmatmul.mubr.f32.gmra.mxu0 %v301
      %v468 = vpop.f32.mrf.mxu0
      %v469 = vadd.f32 %v294, %v468
      %v470 = vpop.f32.mrf.mxu0
      %471 = vmatprep.mubr.f32.mxu0 0.0
      %472 = vmatmul.mubr.f32.gmra.mxu0 %v304
      %v473 = vpop.f32.mrf.mxu0
      %v474 = vadd.f32 %v294, %v473
      %v475 = vpop.f32.mrf.mxu0
      %476 = vmatprep.mubr.f32.mxu0 0.0
      %477 = vmatmul.mubr.f32.gmra.mxu0 %v307
      %v478 = vpop.f32.mrf.mxu0
      %v479 = vadd.f32 %v294, %v478
      %v480 = vpop.f32.mrf.mxu0
      %481 = vmatprep.mubr.f32.mxu0 0.0
      %482 = vmatmul.mubr.f32.gmra.mxu0 %v310
      %v483 = vpop.f32.mrf.mxu0
      %v484 = vadd.f32 %v294, %v483
      %v485 = vpop.f32.mrf.mxu0
      %486 = vmatprep.mubr.f32.mxu0 0.0
      %487 = vmatmul.mubr.f32.gmra.mxu0 %v313
      %v488 = vpop.f32.mrf.mxu0
      %v489 = vadd.f32 %v294, %v488
      %v490 = vpop.f32.mrf.mxu0
      %491 = vmatprep.mubr.f32.mxu0 0.0
      %492 = vmatmul.mubr.f32.gmra.mxu0 %v316
      %v493 = vpop.f32.mrf.mxu0
      %v494 = vadd.f32 %v294, %v493
      %v495 = vpop.f32.mrf.mxu0
      %496 = vmatprep.mubr.f32.mxu0 0.0
      %497 = vmatmul.mubr.f32.gmra.mxu0 %v319
      %v498 = vpop.f32.mrf.mxu0
      %v499 = vadd.f32 %v294, %v498
      %v500 = vpop.f32.mrf.mxu0
      %501 = vmatprep.mubr.f32.mxu0 0.0
      %502 = vmatmul.mubr.f32.gmra.mxu0 %v322
      %v503 = vpop.f32.mrf.mxu0
      %v504 = vadd.f32 %v294, %v503
      %v505 = vpop.f32.mrf.mxu0
      %506 = vmatprep.mubr.f32.mxu0 0.0
      %507 = vmatmul.mubr.f32.gmra.mxu0 %v325
      %v508 = vpop.f32.mrf.mxu0
      %v509 = vadd.f32 %v294, %v508
      %v510 = vpop.f32.mrf.mxu0
      %511 = vmatprep.mubr.f32.mxu0 0.0
      %512 = vmatmul.mubr.f32.gmra.mxu0 %v328
      %v513 = vpop.f32.mrf.mxu0
      %v514 = vadd.f32 %v294, %v513
      %v515 = vpop.f32.mrf.mxu0
      %516 = vmatprep.mubr.f32.mxu0 0.0
      %517 = vmatmul.mubr.f32.gmra.mxu0 %v331
      %v518 = vpop.f32.mrf.mxu0
      %v519 = vadd.f32 %v294, %v518
      %v520 = vpop.f32.mrf.mxu0
      %521 = vmatprep.mubr.f32.mxu0 0.0
      %522 = vmatmul.mubr.f32.gmra.mxu0 %v334
      %v523 = vpop.f32.mrf.mxu0
      %v524 = vadd.f32 %v294, %v523
      %v525 = vpop.f32.mrf.mxu0
      %526 = vmatprep.mubr.f32.mxu0 0.0
      %527 = vmatmul.mubr.f32.gmra.mxu0 %v337
      %v528 = vpop.f32.mrf.mxu0
      %v529 = vadd.f32 %v294, %v528
      %v530 = vpop.f32.mrf.mxu0
      %531 = vmatprep.mubr.f32.mxu0 0.0
      %532 = vmatmul.mubr.f32.gmra.mxu0 %v340
      %v533 = vpop.f32.mrf.mxu0
      %v534 = vadd.f32 %v294, %v533
      %v535 = vpop.f32.mrf.mxu0
      %536 = vmatprep.mubr.f32.mxu0 0.0
      %537 = vmatmul.mubr.f32.gmra.mxu0 %v343
      %v538 = vpop.f32.mrf.mxu0
      %v539 = vadd.f32 %v294, %v538
      %v540 = vpop.f32.mrf.mxu0
      %541 = vmatprep.mubr.f32.mxu0 0.0
      %542 = vmatmul.mubr.f32.gmra.mxu0 %v346
      %v543 = vpop.f32.mrf.mxu0
      %v544 = vadd.f32 %v294, %v543
      %v545 = vpop.f32.mrf.mxu0
      %546 = vmatprep.mubr.f32.mxu0 0.0
      %547 = vmatmul.mubr.f32.gmra.mxu0 %v349
      %v548 = vpop.f32.mrf.mxu0
      %v549 = vadd.f32 %v294, %v548
      %v550 = vpop.f32.mrf.mxu0
      %551 = vmatprep.mubr.f32.mxu0 0.0
      %552 = vmatmul.mubr.f32.gmra.mxu0 %v352
      %v553 = vpop.f32.mrf.mxu0
      %v554 = vadd.f32 %v294, %v553
      %v555 = vpop.f32.mrf.mxu0
      %556 = vmatprep.mubr.f32.mxu0 0.0
      %557 = vmatmul.mubr.f32.gmra.mxu0 %v355
      %v558 = vpop.f32.mrf.mxu0
      %v559 = vadd.f32 %v294, %v558
      %v560 = vpop.f32.mrf.mxu0
      %561 = vmatprep.mubr.f32.mxu0 0.0
      %562 = vmatmul.mubr.f32.gmra.mxu0 %v358
      %v563 = vpop.f32.mrf.mxu0
      %v564 = vadd.f32 %v294, %v563
      %v565 = vpop.f32.mrf.mxu0
      %566 = vmatprep.mubr.f32.mxu0 0.0
      %567 = vmatmul.mubr.f32.gmra.mxu0 %v361
      %v568 = vpop.f32.mrf.mxu0
      %v569 = vadd.f32 %v294, %v568
      %v570 = vpop.f32.mrf.mxu0
      %571 = vmatprep.mubr.f32.mxu0 0.0
      %572 = vmatmul.mubr.f32.gmra.mxu0 %v364
      %v573 = vpop.f32.mrf.mxu0
      %v574 = vadd.f32 %v294, %v573
      %v575 = vpop.f32.mrf.mxu0
      %576 = vmatprep.mubr.f32.mxu0 0.0
      %577 = vmatmul.mubr.f32.gmra.mxu0 %v367
      %v578 = vpop.f32.mrf.mxu0
      %v579 = vadd.f32 %v294, %v578
      %v580 = vpop.f32.mrf.mxu0
      %581 = vmatprep.mubr.f32.mxu0 0.0
      %582 = vmatmul.mubr.f32.gmra.mxu0 %v370
      %v583 = vpop.f32.mrf.mxu0
      %v584 = vadd.f32 %v294, %v583
      %v585 = vpop.f32.mrf.mxu0
      %586 = vmatprep.mubr.f32.mxu0 0.0
      %587 = vmatmul.mubr.f32.gmra.mxu0 %v373
      %v588 = vpop.f32.mrf.mxu0
      %v589 = vadd.f32 %v294, %v588
      %v590 = vpop.f32.mrf.mxu0
      %591 = vmatprep.mubr.f32.mxu0 0.0
      %592 = vmatmul.mubr.f32.gmra.mxu0 %v376
      %v593 = vpop.f32.mrf.mxu0
      %v594 = vadd.f32 %v294, %v593
      %v595 = vpop.f32.mrf.mxu0
      %596 = vmatprep.mubr.f32.mxu0 0.0
      %597 = vmatmul.mubr.f32.gmra.mxu0 %v379
      %v598 = vpop.f32.mrf.mxu0
      %v599 = vadd.f32 %v294, %v598
      %v600 = vpop.f32.mrf.mxu0
      %601 = vmatprep.mubr.f32.mxu0 0.0
      %602 = vmatmul.mubr.f32.gmra.mxu0 %v382
      %v603 = vpop.f32.mrf.mxu0
      %v604 = vadd.f32 %v294, %v603
      %v605 = vpop.f32.mrf.mxu0
      %606 = vmatprep.mubr.f32.mxu0 0.0
      %607 = vmatmul.mubr.f32.gmra.mxu0 %v385
      %v608 = vpop.f32.mrf.mxu0
      %v609 = vadd.f32 %v294, %v608
      %v610 = vpop.f32.mrf.mxu0
      %611 = vmatprep.mubr.f32.mxu0 0.0
      %612 = vmatmul.mubr.f32.gmra.mxu0 %v388
      %v613 = vpop.f32.mrf.mxu0
      %v614 = vadd.f32 %v294, %v613
      %v615 = vpop.f32.mrf.mxu0
      %616 = vmatprep.mubr.f32.mxu0 0.0
      %617 = vmatmul.mubr.f32.gmra.mxu0 %v391
      %v618 = vpop.f32.mrf.mxu0
      %v619 = vadd.f32 %v294, %v618
      %v620 = vpop.f32.mrf.mxu0
      %621 = vdwg.mxu0
      %v622 = vxor.u32 %v464, 2147483648
      %v623 = vxor.u32 %v469, 2147483648
      %v624 = vxor.u32 %v474, 2147483648
      %v625 = vxor.u32 %v479, 2147483648
      %v626 = vxor.u32 %v484, 2147483648
      %v627 = vxor.u32 %v489, 2147483648
      %v628 = vxor.u32 %v494, 2147483648
      %v629 = vxor.u32 %v499, 2147483648
      %v630 = vxor.u32 %v504, 2147483648
      %v631 = vxor.u32 %v509, 2147483648
      %v632 = vxor.u32 %v514, 2147483648
      %v633 = vxor.u32 %v519, 2147483648
      %v634 = vxor.u32 %v524, 2147483648
      %v635 = vxor.u32 %v529, 2147483648
      %v636 = vxor.u32 %v534, 2147483648
      %v637 = vxor.u32 %v539, 2147483648
      %v638 = vxor.u32 %v544, 2147483648
      %v639 = vxor.u32 %v549, 2147483648
      %v640 = vxor.u32 %v554, 2147483648
      %v641 = vxor.u32 %v559, 2147483648
      %v642 = vxor.u32 %v564, 2147483648
      %v643 = vxor.u32 %v569, 2147483648
      %v644 = vxor.u32 %v574, 2147483648
      %v645 = vxor.u32 %v579, 2147483648
      %v646 = vxor.u32 %v584, 2147483648
      %v647 = vxor.u32 %v589, 2147483648
      %v648 = vxor.u32 %v594, 2147483648
      %v649 = vxor.u32 %v599, 2147483648
      %v650 = vxor.u32 %v604, 2147483648
      %v651 = vxor.u32 %v609, 2147483648
      %v652 = vxor.u32 %v614, 2147483648
      %v653 = vxor.u32 %v619, 2147483648
      %v654 = vmul.f32 %v622, 1.442695
      %v655 = vpow.pop %v654
      %v656 = vmul.f32 %v623, 1.442695
      %v657 = vpow.pop %v656
      %v658 = vmul.f32 %v624, 1.442695
      %v659 = vpow.pop %v658
      %v660 = vmul.f32 %v625, 1.442695
      %v661 = vpow.pop %v660
      %v662 = vmul.f32 %v626, 1.442695
      %v663 = vpow.pop %v662
      %v664 = vmul.f32 %v627, 1.442695
      %v665 = vpow.pop %v664
      %v666 = vmul.f32 %v628, 1.442695
      %v667 = vpow.pop %v666
      %v668 = vmul.f32 %v629, 1.442695
      %v669 = vpow.pop %v668
      %v670 = vmul.f32 %v630, 1.442695
      %v671 = vpow.pop %v670
      %v672 = vmul.f32 %v631, 1.442695
      %v673 = vpow.pop %v672
      %v674 = vmul.f32 %v632, 1.442695
      %v675 = vpow.pop %v674
      %v676 = vmul.f32 %v633, 1.442695
      %v677 = vpow.pop %v676
      %v678 = vmul.f32 %v634, 1.442695
      %v679 = vpow.pop %v678
      %v680 = vmul.f32 %v635, 1.442695
      %v681 = vpow.pop %v680
      %v682 = vmul.f32 %v636, 1.442695
      %v683 = vpow.pop %v682
      %v684 = vmul.f32 %v637, 1.442695
      %v685 = vpow.pop %v684
      %v686 = vmul.f32 %v638, 1.442695
      %v687 = vpow.pop %v686
      %v688 = vmul.f32 %v639, 1.442695
      %v689 = vpow.pop %v688
      %v690 = vmul.f32 %v640, 1.442695
      %v691 = vpow.pop %v690
      %v692 = vmul.f32 %v641, 1.442695
      %v693 = vpow.pop %v692
      %v694 = vmul.f32 %v642, 1.442695
      %v695 = vpow.pop %v694
      %v696 = vmul.f32 %v643, 1.442695
      %v697 = vpow.pop %v696
      %v698 = vmul.f32 %v644, 1.442695
      %v699 = vpow.pop %v698
      %v700 = vmul.f32 %v645, 1.442695
      %v701 = vpow.pop %v700
      %v702 = vmul.f32 %v646, 1.442695
      %v703 = vpow.pop %v702
      %v704 = vmul.f32 %v647, 1.442695
      %v705 = vpow.pop %v704
      %v706 = vmul.f32 %v648, 1.442695
      %v707 = vpow.pop %v706
      %v708 = vmul.f32 %v649, 1.442695
      %v709 = vpow.pop %v708
      %v710 = vmul.f32 %v650, 1.442695
      %v711 = vpow.pop %v710
      %v712 = vmul.f32 %v651, 1.442695
      %v713 = vpow.pop %v712
      %v714 = vmul.f32 %v652, 1.442695
      %v715 = vpow.pop %v714
      %v716 = vmul.f32 %v653, 1.442695
      %v717 = vpow.pop %v716
      %v718 = vadd.f32 %v655, 1.0
      %v719 = vadd.f32 %v657, 1.0
      %v720 = vadd.f32 %v659, 1.0
      %v721 = vadd.f32 %v661, 1.0
      %v722 = vadd.f32 %v663, 1.0
      %v723 = vadd.f32 %v665, 1.0
      %v724 = vadd.f32 %v667, 1.0
      %v725 = vadd.f32 %v669, 1.0
      %v726 = vadd.f32 %v671, 1.0
      %v727 = vadd.f32 %v673, 1.0
      %v728 = vadd.f32 %v675, 1.0
      %v729 = vadd.f32 %v677, 1.0
      %v730 = vadd.f32 %v679, 1.0
      %v731 = vadd.f32 %v681, 1.0
      %v732 = vadd.f32 %v683, 1.0
      %v733 = vadd.f32 %v685, 1.0
      %v734 = vadd.f32 %v687, 1.0
      %v735 = vadd.f32 %v689, 1.0
      %v736 = vadd.f32 %v691, 1.0
      %v737 = vadd.f32 %v693, 1.0
      %v738 = vadd.f32 %v695, 1.0
      %v739 = vadd.f32 %v697, 1.0
      %v740 = vadd.f32 %v699, 1.0
      %v741 = vadd.f32 %v701, 1.0
      %v742 = vadd.f32 %v703, 1.0
      %v743 = vadd.f32 %v705, 1.0
      %v744 = vadd.f32 %v707, 1.0
      %v745 = vadd.f32 %v709, 1.0
      %v746 = vadd.f32 %v711, 1.0
      %v747 = vadd.f32 %v713, 1.0
      %v748 = vadd.f32 %v715, 1.0
      %v749 = vadd.f32 %v717, 1.0
      %v750 = vrcp.pop %v718
      %v751 = vmul.f32 1.0, %v750
      %v752 = vrcp.pop %v719
      %v753 = vmul.f32 1.0, %v752
      %v754 = vrcp.pop %v720
      %v755 = vmul.f32 1.0, %v754
      %v756 = vrcp.pop %v721
      %v757 = vmul.f32 1.0, %v756
      %v758 = vrcp.pop %v722
      %v759 = vmul.f32 1.0, %v758
      %v760 = vrcp.pop %v723
      %v761 = vmul.f32 1.0, %v760
      %v762 = vrcp.pop %v724
      %v763 = vmul.f32 1.0, %v762
      %v764 = vrcp.pop %v725
      %v765 = vmul.f32 1.0, %v764
      %v766 = vrcp.pop %v726
      %v767 = vmul.f32 1.0, %v766
      %v768 = vrcp.pop %v727
      %v769 = vmul.f32 1.0, %v768
      %v770 = vrcp.pop %v728
      %v771 = vmul.f32 1.0, %v770
      %v772 = vrcp.pop %v729
      %v773 = vmul.f32 1.0, %v772
      %v774 = vrcp.pop %v730
      %v775 = vmul.f32 1.0, %v774
      %v776 = vrcp.pop %v731
      %v777 = vmul.f32 1.0, %v776
      %v778 = vrcp.pop %v732
      %v779 = vmul.f32 1.0, %v778
      %v780 = vrcp.pop %v733
      %v781 = vmul.f32 1.0, %v780
      %v782 = vrcp.pop %v734
      %v783 = vmul.f32 1.0, %v782
      %v784 = vrcp.pop %v735
      %v785 = vmul.f32 1.0, %v784
      %v786 = vrcp.pop %v736
      %v787 = vmul.f32 1.0, %v786
      %v788 = vrcp.pop %v737
      %v789 = vmul.f32 1.0, %v788
      %v790 = vrcp.pop %v738
      %v791 = vmul.f32 1.0, %v790
      %v792 = vrcp.pop %v739
      %v793 = vmul.f32 1.0, %v792
      %v794 = vrcp.pop %v740
      %v795 = vmul.f32 1.0, %v794
      %v796 = vrcp.pop %v741
      %v797 = vmul.f32 1.0, %v796
      %v798 = vrcp.pop %v742
      %v799 = vmul.f32 1.0, %v798
      %v800 = vrcp.pop %v743
      %v801 = vmul.f32 1.0, %v800
      %v802 = vrcp.pop %v744
      %v803 = vmul.f32 1.0, %v802
      %v804 = vrcp.pop %v745
      %v805 = vmul.f32 1.0, %v804
      %v806 = vrcp.pop %v746
      %v807 = vmul.f32 1.0, %v806
      %v808 = vrcp.pop %v747
      %v809 = vmul.f32 1.0, %v808
      %v810 = vrcp.pop %v748
      %v811 = vmul.f32 1.0, %v810
      %v812 = vrcp.pop %v749
      %v813 = vmul.f32 1.0, %v812
      %v814 = vmul.f32 %v464, %v751
      %v815 = vmul.f32 %v469, %v753
      %v816 = vmul.f32 %v474, %v755
      %v817 = vmul.f32 %v479, %v757
      %v818 = vmul.f32 %v484, %v759
      %v819 = vmul.f32 %v489, %v761
      %v820 = vmul.f32 %v494, %v763
      %v821 = vmul.f32 %v499, %v765
      %v822 = vmul.f32 %v504, %v767
      %v823 = vmul.f32 %v509, %v769
      %v824 = vmul.f32 %v514, %v771
      %v825 = vmul.f32 %v519, %v773
      %v826 = vmul.f32 %v524, %v775
      %v827 = vmul.f32 %v529, %v777
      %v828 = vmul.f32 %v534, %v779
      %v829 = vmul.f32 %v539, %v781
      %v830 = vmul.f32 %v544, %v783
      %v831 = vmul.f32 %v549, %v785
      %v832 = vmul.f32 %v554, %v787
      %v833 = vmul.f32 %v559, %v789
      %v834 = vmul.f32 %v564, %v791
      %v835 = vmul.f32 %v569, %v793
      %v836 = vmul.f32 %v574, %v795
      %v837 = vmul.f32 %v579, %v797
      %v838 = vmul.f32 %v584, %v799
      %v839 = vmul.f32 %v589, %v801
      %v840 = vmul.f32 %v594, %v803
      %v841 = vmul.f32 %v599, %v805
      %v842 = vmul.f32 %v604, %v807
      %v843 = vmul.f32 %v609, %v809
      %v844 = vmul.f32 %v614, %v811
      %v845 = vmul.f32 %v619, %v813
      %v846 = vld [vmem:[%s3] sm:$0x3]
      %847 = vst.msk [vmem:[%s239] sm:$0xff] %vm225, %v814
      %848 = vst.msk [vmem:[%s239 + $0x8] sm:$0xff] %vm225, %v815
      %849 = vst.msk [vmem:[%s239 + $0x18] sm:$0xff] %vm225, %v816
      %850 = vst.msk [vmem:[%s239 + $0x20] sm:$0xff] %vm225, %v817
      %851 = vst.msk [vmem:[%s239 + $0x30] sm:$0xff] %vm225, %v818
      %852 = vst.msk [vmem:[%s239 + $0x38] sm:$0xff] %vm225, %v819
      %853 = vst.msk [vmem:[%s239 + $0x48] sm:$0xff] %vm225, %v820
      %854 = vst.msk [vmem:[%s239 + $0x50] sm:$0xff] %vm225, %v821
      %855 = vst.msk [vmem:[%s239 + $0x60] sm:$0xff] %vm225, %v822
      %856 = vst.msk [vmem:[%s239 + $0x68] sm:$0xff] %vm225, %v823
      %857 = vst.msk [vmem:[%s239 + $0x78] sm:$0xff] %vm225, %v824
      %858 = vst.msk [vmem:[%s239 + $0x80] sm:$0xff] %vm225, %v825
      %859 = vst.msk [vmem:[%s239 + $0x90] sm:$0xff] %vm225, %v826
      %860 = vst.msk [vmem:[%s239 + $0x98] sm:$0xff] %vm225, %v827
      %861 = vst.msk [vmem:[%s239 + $0xa8] sm:$0xff] %vm225, %v828
      %862 = vst.msk [vmem:[%s239 + $0xb0] sm:$0xff] %vm225, %v829
      %863 = vst.msk [vmem:[%s239 + $0xc0] sm:$0xff] %vm225, %v830
      %864 = vst.msk [vmem:[%s239 + $0xc8] sm:$0xff] %vm225, %v831
      %865 = vst.msk [vmem:[%s239 + $0xd8] sm:$0xff] %vm225, %v832
      %866 = vst.msk [vmem:[%s239 + $0xe0] sm:$0xff] %vm225, %v833
      %867 = vst.msk [vmem:[%s239 + $0xf0] sm:$0xff] %vm225, %v834
      %868 = vst.msk [vmem:[%s239 + $0xf8] sm:$0xff] %vm225, %v835
      %869 = vst.msk [vmem:[%s239 + $0x108] sm:$0xff] %vm225, %v836
      %870 = vst.msk [vmem:[%s239 + $0x110] sm:$0xff] %vm225, %v837
      %871 = vst.msk [vmem:[%s239 + $0x120] sm:$0xff] %vm225, %v838
      %872 = vst.msk [vmem:[%s239 + $0x128] sm:$0xff] %vm225, %v839
      %873 = vst.msk [vmem:[%s239 + $0x138] sm:$0xff] %vm225, %v840
      %874 = vst.msk [vmem:[%s239 + $0x140] sm:$0xff] %vm225, %v841
      %875 = vst.msk [vmem:[%s239 + $0x150] sm:$0xff] %vm225, %v842
      %876 = vst.msk [vmem:[%s239 + $0x158] sm:$0xff] %vm225, %v843
      %877 = vst.msk [vmem:[%s239 + $0x168] sm:$0xff] %vm225, %v844
      %878 = vst.msk [vmem:[%s239 + $0x170] sm:$0xff] %vm225, %v845
      %v879 = vld [vmem:[#allocation2] sm:$0xff]
      %v880 = vld [vmem:[#allocation2 + $0x8] sm:$0xff]
      %v881 = vld [vmem:[#allocation2 + $0x10] sm:$0xff]
      %v882 = vld [vmem:[#allocation2 + $0x18] sm:$0xff]
      %v883 = vld [vmem:[#allocation2 + $0x20] sm:$0xff]
      %v884 = vld [vmem:[#allocation2 + $0x28] sm:$0xff]
      %v885 = vld [vmem:[#allocation2 + $0x30] sm:$0xff]
      %v886 = vld [vmem:[#allocation2 + $0x38] sm:$0xff]
      %v887 = vld [vmem:[#allocation2 + $0x40] sm:$0xff]
      %v888 = vld [vmem:[#allocation2 + $0x48] sm:$0xff]
      %v889 = vld [vmem:[#allocation2 + $0x50] sm:$0xff]
      %v890 = vld [vmem:[#allocation2 + $0x58] sm:$0xff]
      %v891 = vld [vmem:[#allocation2 + $0x60] sm:$0xff]
      %v892 = vld [vmem:[#allocation2 + $0x68] sm:$0xff]
      %v893 = vld [vmem:[#allocation2 + $0x70] sm:$0xff]
      %v894 = vld [vmem:[#allocation2 + $0x78] sm:$0xff]
      %v895 = vld [vmem:[#allocation2 + $0x80] sm:$0xff]
      %v896 = vld [vmem:[#allocation2 + $0x88] sm:$0xff]
      %v897 = vld [vmem:[#allocation2 + $0x90] sm:$0xff]
      %v898 = vld [vmem:[#allocation2 + $0x98] sm:$0xff]
      %v899 = vld [vmem:[#allocation2 + $0xa0] sm:$0xff]
      %v900 = vld [vmem:[#allocation2 + $0xa8] sm:$0xff]
      %v901 = vld [vmem:[#allocation2 + $0xb0] sm:$0xff]
      %v902 = vld [vmem:[#allocation2 + $0xb8] sm:$0xff]
      %v903 = vld [vmem:[#allocation2 + $0xc0] sm:$0xff]
      %v904 = vld [vmem:[#allocation2 + $0xc8] sm:$0xff]
      %v905 = vld [vmem:[#allocation2 + $0xd0] sm:$0xff]
      %v906 = vld [vmem:[#allocation2 + $0xd8] sm:$0xff]
      %v907 = vld [vmem:[#allocation2 + $0xe0] sm:$0xff]
      %v908 = vld [vmem:[#allocation2 + $0xe8] sm:$0xff]
      %v909 = vld [vmem:[#allocation2 + $0xf0] sm:$0xff]
      %v910 = vld [vmem:[#allocation2 + $0xf8] sm:$0xff]
      %v911 = vld [vmem:[#allocation2 + $0x100] sm:$0xff]
      %v912 = vld [vmem:[#allocation2 + $0x108] sm:$0xff]
      %v913 = vld [vmem:[#allocation2 + $0x110] sm:$0xff]
      %v914 = vld [vmem:[#allocation2 + $0x118] sm:$0xff]
      %v915 = vld [vmem:[#allocation2 + $0x120] sm:$0xff]
      %v916 = vld [vmem:[#allocation2 + $0x128] sm:$0xff]
      %v917 = vld [vmem:[#allocation2 + $0x130] sm:$0xff]
      %v918 = vld [vmem:[#allocation2 + $0x138] sm:$0xff]
      %v919 = vld [vmem:[#allocation2 + $0x140] sm:$0xff]
      %v920 = vld [vmem:[#allocation2 + $0x148] sm:$0xff]
      %v921 = vld [vmem:[#allocation2 + $0x150] sm:$0xff]
      %v922 = vld [vmem:[#allocation2 + $0x158] sm:$0xff]
      %v923 = vld [vmem:[#allocation2 + $0x160] sm:$0xff]
      %v924 = vld [vmem:[#allocation2 + $0x168] sm:$0xff]
      %v925 = vld [vmem:[#allocation2 + $0x170] sm:$0xff]
      %v926 = vld [vmem:[#allocation2 + $0x178] sm:$0xff]
      %s927 = scalar_lea.vmem [#allocation2], 24
      %v928 = vld [vmem:[%s927] sm:$0xff]
      %v929 = vld [vmem:[%s927 + $0x8] sm:$0xff]
      %v930 = vld [vmem:[%s927 + $0x10] sm:$0xff]
      %v931 = vld [vmem:[%s927 + $0x18] sm:$0xff]
      %v932 = vld [vmem:[%s927 + $0x20] sm:$0xff]
      %v933 = vld [vmem:[%s927 + $0x28] sm:$0xff]
      %v934 = vld [vmem:[%s927 + $0x30] sm:$0xff]
      %v935 = vld [vmem:[%s927 + $0x38] sm:$0xff]
      %v936 = vld [vmem:[%s927 + $0x40] sm:$0xff]
      %v937 = vld [vmem:[%s927 + $0x48] sm:$0xff]
      %v938 = vld [vmem:[%s927 + $0x50] sm:$0xff]
      %v939 = vld [vmem:[%s927 + $0x58] sm:$0xff]
      %v940 = vld [vmem:[%s927 + $0x60] sm:$0xff]
      %v941 = vld [vmem:[%s927 + $0x68] sm:$0xff]
      %v942 = vld [vmem:[%s927 + $0x70] sm:$0xff]
      %v943 = vld [vmem:[%s927 + $0x78] sm:$0xff]
      %v944 = vld [vmem:[%s927 + $0x80] sm:$0xff]
      %v945 = vld [vmem:[%s927 + $0x88] sm:$0xff]
      %v946 = vld [vmem:[%s927 + $0x90] sm:$0xff]
      %v947 = vld [vmem:[%s927 + $0x98] sm:$0xff]
      %v948 = vld [vmem:[%s927 + $0xa0] sm:$0xff]
      %v949 = vld [vmem:[%s927 + $0xa8] sm:$0xff]
      %v950 = vld [vmem:[%s927 + $0xb0] sm:$0xff]
      %v951 = vld [vmem:[%s927 + $0xb8] sm:$0xff]
      %v952 = vld [vmem:[%s927 + $0xc0] sm:$0xff]
      %v953 = vld [vmem:[%s927 + $0xc8] sm:$0xff]
      %v954 = vld [vmem:[%s927 + $0xd0] sm:$0xff]
      %v955 = vld [vmem:[%s927 + $0xd8] sm:$0xff]
      %v956 = vld [vmem:[%s927 + $0xe0] sm:$0xff]
      %v957 = vld [vmem:[%s927 + $0xe8] sm:$0xff]
      %v958 = vld [vmem:[%s927 + $0xf0] sm:$0xff]
      %v959 = vld [vmem:[%s927 + $0xf8] sm:$0xff]
      %v960 = vld [vmem:[%s927 + $0x100] sm:$0xff]
      %v961 = vld [vmem:[%s927 + $0x108] sm:$0xff]
      %v962 = vld [vmem:[%s927 + $0x110] sm:$0xff]
      %v963 = vld [vmem:[%s927 + $0x118] sm:$0xff]
      %v964 = vld [vmem:[%s927 + $0x120] sm:$0xff]
      %v965 = vld [vmem:[%s927 + $0x128] sm:$0xff]
      %v966 = vld [vmem:[%s927 + $0x130] sm:$0xff]
      %v967 = vld [vmem:[%s927 + $0x138] sm:$0xff]
      %v968 = vld [vmem:[%s927 + $0x140] sm:$0xff]
      %v969 = vld [vmem:[%s927 + $0x148] sm:$0xff]
      %v970 = vld [vmem:[%s927 + $0x150] sm:$0xff]
      %v971 = vld [vmem:[%s927 + $0x158] sm:$0xff]
      %v972 = vld [vmem:[%s927 + $0x160] sm:$0xff]
      %v973 = vld [vmem:[%s927 + $0x168] sm:$0xff]
      %v974 = vld [vmem:[%s927 + $0x170] sm:$0xff]
      %v975 = vld [vmem:[%s927 + $0x178] sm:$0xff]
      %v976 = vmax.f32 %v879, %v928
      %v977 = vmax.f32 %v880, %v929
      %v978 = vmax.f32 %v881, %v930
      %v979 = vmax.f32 %v882, %v931
      %v980 = vmax.f32 %v883, %v932
      %v981 = vmax.f32 %v884, %v933
      %v982 = vmax.f32 %v885, %v934
      %v983 = vmax.f32 %v886, %v935
      %v984 = vmax.f32 %v887, %v936
      %v985 = vmax.f32 %v888, %v937
      %v986 = vmax.f32 %v889, %v938
      %v987 = vmax.f32 %v890, %v939
      %v988 = vmax.f32 %v891, %v940
      %v989 = vmax.f32 %v892, %v941
      %v990 = vmax.f32 %v893, %v942
      %v991 = vmax.f32 %v894, %v943
      %v992 = vmax.f32 %v895, %v944
      %v993 = vmax.f32 %v896, %v945
      %v994 = vmax.f32 %v897, %v946
      %v995 = vmax.f32 %v898, %v947
      %v996 = vmax.f32 %v899, %v948
      %v997 = vmax.f32 %v900, %v949
      %v998 = vmax.f32 %v901, %v950
      %v999 = vmax.f32 %v902, %v951
      %v1000 = vmax.f32 %v903, %v952
      %v1001 = vmax.f32 %v904, %v953
      %v1002 = vmax.f32 %v905, %v954
      %v1003 = vmax.f32 %v906, %v955
      %v1004 = vmax.f32 %v907, %v956
      %v1005 = vmax.f32 %v908, %v957
      %v1006 = vmax.f32 %v909, %v958
      %v1007 = vmax.f32 %v910, %v959
      %v1008 = vmax.f32 %v911, %v960
      %v1009 = vmax.f32 %v912, %v961
      %v1010 = vmax.f32 %v913, %v962
      %v1011 = vmax.f32 %v914, %v963
      %v1012 = vmax.f32 %v915, %v964
      %v1013 = vmax.f32 %v916, %v965
      %v1014 = vmax.f32 %v917, %v966
      %v1015 = vmax.f32 %v918, %v967
      %v1016 = vmax.f32 %v919, %v968
      %v1017 = vmax.f32 %v920, %v969
      %v1018 = vmax.f32 %v921, %v970
      %v1019 = vmax.f32 %v922, %v971
      %v1020 = vmax.f32 %v923, %v972
      %v1021 = vmax.f32 %v924, %v973
      %v1022 = vmax.f32 %v925, %v974
      %v1023 = vmax.f32 %v926, %v975
      %v1024 = vld [vmem:[%s239] sm:$0xff]
      %v1025 = vld [vmem:[%s239 + $0x8] sm:$0xff]
      %v1026 = vld [vmem:[%s239 + $0x10] sm:$0xff]
      %v1027 = vld [vmem:[%s239 + $0x18] sm:$0xff]
      %v1028 = vld [vmem:[%s239 + $0x20] sm:$0xff]
      %v1029 = vld [vmem:[%s239 + $0x28] sm:$0xff]
      %v1030 = vld [vmem:[%s239 + $0x30] sm:$0xff]
      %v1031 = vld [vmem:[%s239 + $0x38] sm:$0xff]
      %v1032 = vld [vmem:[%s239 + $0x40] sm:$0xff]
      %v1033 = vld [vmem:[%s239 + $0x48] sm:$0xff]
      %v1034 = vld [vmem:[%s239 + $0x50] sm:$0xff]
      %v1035 = vld [vmem:[%s239 + $0x58] sm:$0xff]
      %v1036 = vld [vmem:[%s239 + $0x60] sm:$0xff]
      %v1037 = vld [vmem:[%s239 + $0x68] sm:$0xff]
      %v1038 = vld [vmem:[%s239 + $0x70] sm:$0xff]
      %v1039 = vld [vmem:[%s239 + $0x78] sm:$0xff]
      %v1040 = vld [vmem:[%s239 + $0x80] sm:$0xff]
      %v1041 = vld [vmem:[%s239 + $0x88] sm:$0xff]
      %v1042 = vld [vmem:[%s239 + $0x90] sm:$0xff]
      %v1043 = vld [vmem:[%s239 + $0x98] sm:$0xff]
      %v1044 = vld [vmem:[%s239 + $0xa0] sm:$0xff]
      %v1045 = vld [vmem:[%s239 + $0xa8] sm:$0xff]
      %v1046 = vld [vmem:[%s239 + $0xb0] sm:$0xff]
      %v1047 = vld [vmem:[%s239 + $0xb8] sm:$0xff]
      %v1048 = vld [vmem:[%s239 + $0xc0] sm:$0xff]
      %v1049 = vld [vmem:[%s239 + $0xc8] sm:$0xff]
      %v1050 = vld [vmem:[%s239 + $0xd0] sm:$0xff]
      %v1051 = vld [vmem:[%s239 + $0xd8] sm:$0xff]
      %v1052 = vld [vmem:[%s239 + $0xe0] sm:$0xff]
      %v1053 = vld [vmem:[%s239 + $0xe8] sm:$0xff]
      %v1054 = vld [vmem:[%s239 + $0xf0] sm:$0xff]
      %v1055 = vld [vmem:[%s239 + $0xf8] sm:$0xff]
      %v1056 = vld [vmem:[%s239 + $0x100] sm:$0xff]
      %v1057 = vld [vmem:[%s239 + $0x108] sm:$0xff]
      %v1058 = vld [vmem:[%s239 + $0x110] sm:$0xff]
      %v1059 = vld [vmem:[%s239 + $0x118] sm:$0xff]
      %v1060 = vld [vmem:[%s239 + $0x120] sm:$0xff]
      %v1061 = vld [vmem:[%s239 + $0x128] sm:$0xff]
      %v1062 = vld [vmem:[%s239 + $0x130] sm:$0xff]
      %v1063 = vld [vmem:[%s239 + $0x138] sm:$0xff]
      %v1064 = vld [vmem:[%s239 + $0x140] sm:$0xff]
      %v1065 = vld [vmem:[%s239 + $0x148] sm:$0xff]
      %v1066 = vld [vmem:[%s239 + $0x150] sm:$0xff]
      %v1067 = vld [vmem:[%s239 + $0x158] sm:$0xff]
      %v1068 = vld [vmem:[%s239 + $0x160] sm:$0xff]
      %v1069 = vld [vmem:[%s239 + $0x168] sm:$0xff]
      %v1070 = vld [vmem:[%s239 + $0x170] sm:$0xff]
      %v1071 = vld [vmem:[%s239 + $0x178] sm:$0xff]
      %v1072 = vmax.f32 %v976, %v1024
      %v1073 = vmax.f32 %v977, %v1025
      %v1074 = vmax.f32 %v978, %v1026
      %v1075 = vmax.f32 %v979, %v1027
      %v1076 = vmax.f32 %v980, %v1028
      %v1077 = vmax.f32 %v981, %v1029
      %v1078 = vmax.f32 %v982, %v1030
      %v1079 = vmax.f32 %v983, %v1031
      %v1080 = vmax.f32 %v984, %v1032
      %v1081 = vmax.f32 %v985, %v1033
      %v1082 = vmax.f32 %v986, %v1034
      %v1083 = vmax.f32 %v987, %v1035
      %v1084 = vmax.f32 %v988, %v1036
      %v1085 = vmax.f32 %v989, %v1037
      %v1086 = vmax.f32 %v990, %v1038
      %v1087 = vmax.f32 %v991, %v1039
      %v1088 = vmax.f32 %v992, %v1040
      %v1089 = vmax.f32 %v993, %v1041
      %v1090 = vmax.f32 %v994, %v1042
      %v1091 = vmax.f32 %v995, %v1043
      %v1092 = vmax.f32 %v996, %v1044
      %v1093 = vmax.f32 %v997, %v1045
      %v1094 = vmax.f32 %v998, %v1046
      %v1095 = vmax.f32 %v999, %v1047
      %v1096 = vmax.f32 %v1000, %v1048
      %v1097 = vmax.f32 %v1001, %v1049
      %v1098 = vmax.f32 %v1002, %v1050
      %v1099 = vmax.f32 %v1003, %v1051
      %v1100 = vmax.f32 %v1004, %v1052
      %v1101 = vmax.f32 %v1005, %v1053
      %v1102 = vmax.f32 %v1006, %v1054
      %v1103 = vmax.f32 %v1007, %v1055
      %v1104 = vmax.f32 %v1008, %v1056
      %v1105 = vmax.f32 %v1009, %v1057
      %v1106 = vmax.f32 %v1010, %v1058
      %v1107 = vmax.f32 %v1011, %v1059
      %v1108 = vmax.f32 %v1012, %v1060
      %v1109 = vmax.f32 %v1013, %v1061
      %v1110 = vmax.f32 %v1014, %v1062
      %v1111 = vmax.f32 %v1015, %v1063
      %v1112 = vmax.f32 %v1016, %v1064
      %v1113 = vmax.f32 %v1017, %v1065
      %v1114 = vmax.f32 %v1018, %v1066
      %v1115 = vmax.f32 %v1019, %v1067
      %v1116 = vmax.f32 %v1020, %v1068
      %v1117 = vmax.f32 %v1021, %v1069
      %v1118 = vmax.f32 %v1022, %v1070
      %v1119 = vmax.f32 %v1023, %v1071
      %s1120 = scalar_lea.vmem [#allocation2], 72
      %v1121 = vld [vmem:[%s1120] sm:$0xff]
      %v1122 = vld [vmem:[%s1120 + $0x8] sm:$0xff]
      %v1123 = vld [vmem:[%s1120 + $0x10] sm:$0xff]
      %v1124 = vld [vmem:[%s1120 + $0x18] sm:$0xff]
      %v1125 = vld [vmem:[%s1120 + $0x20] sm:$0xff]
      %v1126 = vld [vmem:[%s1120 + $0x28] sm:$0xff]
      %v1127 = vld [vmem:[%s1120 + $0x30] sm:$0xff]
      %v1128 = vld [vmem:[%s1120 + $0x38] sm:$0xff]
      %v1129 = vld [vmem:[%s1120 + $0x40] sm:$0xff]
      %v1130 = vld [vmem:[%s1120 + $0x48] sm:$0xff]
      %v1131 = vld [vmem:[%s1120 + $0x50] sm:$0xff]
      %v1132 = vld [vmem:[%s1120 + $0x58] sm:$0xff]
      %v1133 = vld [vmem:[%s1120 + $0x60] sm:$0xff]
      %v1134 = vld [vmem:[%s1120 + $0x68] sm:$0xff]
      %v1135 = vld [vmem:[%s1120 + $0x70] sm:$0xff]
      %v1136 = vld [vmem:[%s1120 + $0x78] sm:$0xff]
      %v1137 = vld [vmem:[%s1120 + $0x80] sm:$0xff]
      %v1138 = vld [vmem:[%s1120 + $0x88] sm:$0xff]
      %v1139 = vld [vmem:[%s1120 + $0x90] sm:$0xff]
      %v1140 = vld [vmem:[%s1120 + $0x98] sm:$0xff]
      %v1141 = vld [vmem:[%s1120 + $0xa0] sm:$0xff]
      %v1142 = vld [vmem:[%s1120 + $0xa8] sm:$0xff]
      %v1143 = vld [vmem:[%s1120 + $0xb0] sm:$0xff]
      %v1144 = vld [vmem:[%s1120 + $0xb8] sm:$0xff]
      %v1145 = vld [vmem:[%s1120 + $0xc0] sm:$0xff]
      %v1146 = vld [vmem:[%s1120 + $0xc8] sm:$0xff]
      %v1147 = vld [vmem:[%s1120 + $0xd0] sm:$0xff]
      %v1148 = vld [vmem:[%s1120 + $0xd8] sm:$0xff]
      %v1149 = vld [vmem:[%s1120 + $0xe0] sm:$0xff]
      %v1150 = vld [vmem:[%s1120 + $0xe8] sm:$0xff]
      %v1151 = vld [vmem:[%s1120 + $0xf0] sm:$0xff]
      %v1152 = vld [vmem:[%s1120 + $0xf8] sm:$0xff]
      %v1153 = vld [vmem:[%s1120 + $0x100] sm:$0xff]
      %v1154 = vld [vmem:[%s1120 + $0x108] sm:$0xff]
      %v1155 = vld [vmem:[%s1120 + $0x110] sm:$0xff]
      %v1156 = vld [vmem:[%s1120 + $0x118] sm:$0xff]
      %v1157 = vld [vmem:[%s1120 + $0x120] sm:$0xff]
      %v1158 = vld [vmem:[%s1120 + $0x128] sm:$0xff]
      %v1159 = vld [vmem:[%s1120 + $0x130] sm:$0xff]
      %v1160 = vld [vmem:[%s1120 + $0x138] sm:$0xff]
      %v1161 = vld [vmem:[%s1120 + $0x140] sm:$0xff]
      %v1162 = vld [vmem:[%s1120 + $0x148] sm:$0xff]
      %v1163 = vld [vmem:[%s1120 + $0x150] sm:$0xff]
      %v1164 = vld [vmem:[%s1120 + $0x158] sm:$0xff]
      %v1165 = vld [vmem:[%s1120 + $0x160] sm:$0xff]
      %v1166 = vld [vmem:[%s1120 + $0x168] sm:$0xff]
      %v1167 = vld [vmem:[%s1120 + $0x170] sm:$0xff]
      %v1168 = vld [vmem:[%s1120 + $0x178] sm:$0xff]
      %v1169 = vmax.f32 %v1072, %v1121
      %v1170 = vmax.f32 %v1073, %v1122
      %v1171 = vmax.f32 %v1074, %v1123
      %v1172 = vmax.f32 %v1075, %v1124
      %v1173 = vmax.f32 %v1076, %v1125
      %v1174 = vmax.f32 %v1077, %v1126
      %v1175 = vmax.f32 %v1078, %v1127
      %v1176 = vmax.f32 %v1079, %v1128
      %v1177 = vmax.f32 %v1080, %v1129
      %v1178 = vmax.f32 %v1081, %v1130
      %v1179 = vmax.f32 %v1082, %v1131
      %v1180 = vmax.f32 %v1083, %v1132
      %v1181 = vmax.f32 %v1084, %v1133
      %v1182 = vmax.f32 %v1085, %v1134
      %v1183 = vmax.f32 %v1086, %v1135
      %v1184 = vmax.f32 %v1087, %v1136
      %v1185 = vmax.f32 %v1088, %v1137
      %v1186 = vmax.f32 %v1089, %v1138
      %v1187 = vmax.f32 %v1090, %v1139
      %v1188 = vmax.f32 %v1091, %v1140
      %v1189 = vmax.f32 %v1092, %v1141
      %v1190 = vmax.f32 %v1093, %v1142
      %v1191 = vmax.f32 %v1094, %v1143
      %v1192 = vmax.f32 %v1095, %v1144
      %v1193 = vmax.f32 %v1096, %v1145
      %v1194 = vmax.f32 %v1097, %v1146
      %v1195 = vmax.f32 %v1098, %v1147
      %v1196 = vmax.f32 %v1099, %v1148
      %v1197 = vmax.f32 %v1100, %v1149
      %v1198 = vmax.f32 %v1101, %v1150
      %v1199 = vmax.f32 %v1102, %v1151
      %v1200 = vmax.f32 %v1103, %v1152
      %v1201 = vmax.f32 %v1104, %v1153
      %v1202 = vmax.f32 %v1105, %v1154
      %v1203 = vmax.f32 %v1106, %v1155
      %v1204 = vmax.f32 %v1107, %v1156
      %v1205 = vmax.f32 %v1108, %v1157
      %v1206 = vmax.f32 %v1109, %v1158
      %v1207 = vmax.f32 %v1110, %v1159
      %v1208 = vmax.f32 %v1111, %v1160
      %v1209 = vmax.f32 %v1112, %v1161
      %v1210 = vmax.f32 %v1113, %v1162
      %v1211 = vmax.f32 %v1114, %v1163
      %v1212 = vmax.f32 %v1115, %v1164
      %v1213 = vmax.f32 %v1116, %v1165
      %v1214 = vmax.f32 %v1117, %v1166
      %v1215 = vmax.f32 %v1118, %v1167
      %v1216 = vmax.f32 %v1119, %v1168
      %s1217 = scalar_lea.vmem [#allocation2], 96
      %v1218 = vld [vmem:[%s1217] sm:$0xff]
      %v1219 = vld [vmem:[%s1217 + $0x8] sm:$0xff]
      %v1220 = vld [vmem:[%s1217 + $0x10] sm:$0xff]
      %v1221 = vld [vmem:[%s1217 + $0x18] sm:$0xff]
      %v1222 = vld [vmem:[%s1217 + $0x20] sm:$0xff]
      %v1223 = vld [vmem:[%s1217 + $0x28] sm:$0xff]
      %v1224 = vld [vmem:[%s1217 + $0x30] sm:$0xff]
      %v1225 = vld [vmem:[%s1217 + $0x38] sm:$0xff]
      %v1226 = vld [vmem:[%s1217 + $0x40] sm:$0xff]
      %v1227 = vld [vmem:[%s1217 + $0x48] sm:$0xff]
      %v1228 = vld [vmem:[%s1217 + $0x50] sm:$0xff]
      %v1229 = vld [vmem:[%s1217 + $0x58] sm:$0xff]
      %v1230 = vld [vmem:[%s1217 + $0x60] sm:$0xff]
      %v1231 = vld [vmem:[%s1217 + $0x68] sm:$0xff]
      %v1232 = vld [vmem:[%s1217 + $0x70] sm:$0xff]
      %v1233 = vld [vmem:[%s1217 + $0x78] sm:$0xff]
      %v1234 = vld [vmem:[%s1217 + $0x80] sm:$0xff]
      %v1235 = vld [vmem:[%s1217 + $0x88] sm:$0xff]
      %v1236 = vld [vmem:[%s1217 + $0x90] sm:$0xff]
      %v1237 = vld [vmem:[%s1217 + $0x98] sm:$0xff]
      %v1238 = vld [vmem:[%s1217 + $0xa0] sm:$0xff]
      %v1239 = vld [vmem:[%s1217 + $0xa8] sm:$0xff]
      %v1240 = vld [vmem:[%s1217 + $0xb0] sm:$0xff]
      %v1241 = vld [vmem:[%s1217 + $0xb8] sm:$0xff]
      %v1242 = vld [vmem:[%s1217 + $0xc0] sm:$0xff]
      %v1243 = vld [vmem:[%s1217 + $0xc8] sm:$0xff]
      %v1244 = vld [vmem:[%s1217 + $0xd0] sm:$0xff]
      %v1245 = vld [vmem:[%s1217 + $0xd8] sm:$0xff]
      %v1246 = vld [vmem:[%s1217 + $0xe0] sm:$0xff]
      %v1247 = vld [vmem:[%s1217 + $0xe8] sm:$0xff]
      %v1248 = vld [vmem:[%s1217 + $0xf0] sm:$0xff]
      %v1249 = vld [vmem:[%s1217 + $0xf8] sm:$0xff]
      %v1250 = vld [vmem:[%s1217 + $0x100] sm:$0xff]
      %v1251 = vld [vmem:[%s1217 + $0x108] sm:$0xff]
      %v1252 = vld [vmem:[%s1217 + $0x110] sm:$0xff]
      %v1253 = vld [vmem:[%s1217 + $0x118] sm:$0xff]
      %v1254 = vld [vmem:[%s1217 + $0x120] sm:$0xff]
      %v1255 = vld [vmem:[%s1217 + $0x128] sm:$0xff]
      %v1256 = vld [vmem:[%s1217 + $0x130] sm:$0xff]
      %v1257 = vld [vmem:[%s1217 + $0x138] sm:$0xff]
      %v1258 = vld [vmem:[%s1217 + $0x140] sm:$0xff]
      %v1259 = vld [vmem:[%s1217 + $0x148] sm:$0xff]
      %v1260 = vld [vmem:[%s1217 + $0x150] sm:$0xff]
      %v1261 = vld [vmem:[%s1217 + $0x158] sm:$0xff]
      %v1262 = vld [vmem:[%s1217 + $0x160] sm:$0xff]
      %v1263 = vld [vmem:[%s1217 + $0x168] sm:$0xff]
      %v1264 = vld [vmem:[%s1217 + $0x170] sm:$0xff]
      %v1265 = vld [vmem:[%s1217 + $0x178] sm:$0xff]
      %v1266 = vmax.f32 %v1169, %v1218
      %v1267 = vmax.f32 %v1170, %v1219
      %v1268 = vmax.f32 %v1171, %v1220
      %v1269 = vmax.f32 %v1172, %v1221
      %v1270 = vmax.f32 %v1173, %v1222
      %v1271 = vmax.f32 %v1174, %v1223
      %v1272 = vmax.f32 %v1175, %v1224
      %v1273 = vmax.f32 %v1176, %v1225
      %v1274 = vmax.f32 %v1177, %v1226
      %v1275 = vmax.f32 %v1178, %v1227
      %v1276 = vmax.f32 %v1179, %v1228
      %v1277 = vmax.f32 %v1180, %v1229
      %v1278 = vmax.f32 %v1181, %v1230
      %v1279 = vmax.f32 %v1182, %v1231
      %v1280 = vmax.f32 %v1183, %v1232
      %v1281 = vmax.f32 %v1184, %v1233
      %v1282 = vmax.f32 %v1185, %v1234
      %v1283 = vmax.f32 %v1186, %v1235
      %v1284 = vmax.f32 %v1187, %v1236
      %v1285 = vmax.f32 %v1188, %v1237
      %v1286 = vmax.f32 %v1189, %v1238
      %v1287 = vmax.f32 %v1190, %v1239
      %v1288 = vmax.f32 %v1191, %v1240
      %v1289 = vmax.f32 %v1192, %v1241
      %v1290 = vmax.f32 %v1193, %v1242
      %v1291 = vmax.f32 %v1194, %v1243
      %v1292 = vmax.f32 %v1195, %v1244
      %v1293 = vmax.f32 %v1196, %v1245
      %v1294 = vmax.f32 %v1197, %v1246
      %v1295 = vmax.f32 %v1198, %v1247
      %v1296 = vmax.f32 %v1199, %v1248
      %v1297 = vmax.f32 %v1200, %v1249
      %v1298 = vmax.f32 %v1201, %v1250
      %v1299 = vmax.f32 %v1202, %v1251
      %v1300 = vmax.f32 %v1203, %v1252
      %v1301 = vmax.f32 %v1204, %v1253
      %v1302 = vmax.f32 %v1205, %v1254
      %v1303 = vmax.f32 %v1206, %v1255
      %v1304 = vmax.f32 %v1207, %v1256
      %v1305 = vmax.f32 %v1208, %v1257
      %v1306 = vmax.f32 %v1209, %v1258
      %v1307 = vmax.f32 %v1210, %v1259
      %v1308 = vmax.f32 %v1211, %v1260
      %v1309 = vmax.f32 %v1212, %v1261
      %v1310 = vmax.f32 %v1213, %v1262
      %v1311 = vmax.f32 %v1214, %v1263
      %v1312 = vmax.f32 %v1215, %v1264
      %v1313 = vmax.f32 %v1216, %v1265
      %v1314 = vrot.slane %v1266, 7
      %v1315 = vrot.slane %v1269, 7
      %v1316 = vrot.slane %v1272, 7
      %v1317 = vrot.slane %v1275, 7
      %v1318 = vrot.slane %v1278, 7
      %v1319 = vrot.slane %v1281, 7
      %v1320 = vrot.slane %v1284, 7
      %v1321 = vrot.slane %v1287, 7
      %v1322 = vrot.slane %v1290, 7
      %v1323 = vrot.slane %v1293, 7
      %v1324 = vrot.slane %v1296, 7
      %v1325 = vrot.slane %v1299, 7
      %v1326 = vrot.slane %v1302, 7
      %v1327 = vrot.slane %v1305, 7
      %v1328 = vrot.slane %v1308, 7
      %v1329 = vrot.slane %v1311, 7
      %v1330 = vrot.slane %v1267, 7
      %v1331 = vrot.slane %v1270, 7
      %v1332 = vrot.slane %v1273, 7
      %v1333 = vrot.slane %v1276, 7
      %v1334 = vrot.slane %v1279, 7
      %v1335 = vrot.slane %v1282, 7
      %v1336 = vrot.slane %v1285, 7
      %v1337 = vrot.slane %v1288, 7
      %v1338 = vrot.slane %v1291, 7
      %v1339 = vrot.slane %v1294, 7
      %v1340 = vrot.slane %v1297, 7
      %v1341 = vrot.slane %v1300, 7
      %v1342 = vrot.slane %v1303, 7
      %v1343 = vrot.slane %v1306, 7
      %v1344 = vrot.slane %v1309, 7
      %v1345 = vrot.slane %v1312, 7
      %v1346 = vrot.slane %v1268, 7
      %v1347 = vrot.slane %v1271, 7
      %v1348 = vrot.slane %v1274, 7
      %v1349 = vrot.slane %v1277, 7
      %v1350 = vrot.slane %v1280, 7
      %v1351 = vrot.slane %v1283, 7
      %v1352 = vrot.slane %v1286, 7
      %v1353 = vrot.slane %v1289, 7
      %v1354 = vrot.slane %v1292, 7
      %v1355 = vrot.slane %v1295, 7
      %v1356 = vrot.slane %v1298, 7
      %v1357 = vrot.slane %v1301, 7
      %v1358 = vrot.slane %v1304, 7
      %v1359 = vrot.slane %v1307, 7
      %v1360 = vrot.slane %v1310, 7
      %v1361 = vrot.slane %v1313, 7
      %v1362 = vlaneseq
      %v1363 = vshrl.u32 %v1362, 7
      %vm1364 = vcmp.lt.s32.totalorder %v1363, 1
      %v1365 = vsel %vm1364, %v1314, %v1330
      %v1366 = vsel %vm1364, %v1315, %v1331
      %v1367 = vsel %vm1364, %v1316, %v1332
      %v1368 = vsel %vm1364, %v1317, %v1333
      %v1369 = vsel %vm1364, %v1318, %v1334
      %v1370 = vsel %vm1364, %v1319, %v1335
      %v1371 = vsel %vm1364, %v1320, %v1336
      %v1372 = vsel %vm1364, %v1321, %v1337
      %v1373 = vsel %vm1364, %v1322, %v1338
      %v1374 = vsel %vm1364, %v1323, %v1339
      %v1375 = vsel %vm1364, %v1324, %v1340
      %v1376 = vsel %vm1364, %v1325, %v1341
      %v1377 = vsel %vm1364, %v1326, %v1342
      %v1378 = vsel %vm1364, %v1327, %v1343
      %v1379 = vsel %vm1364, %v1328, %v1344
      %v1380 = vsel %vm1364, %v1329, %v1345
      %v1381 = vsel %vm1364, %v1346, %v1314
      %v1382 = vsel %vm1364, %v1347, %v1315
      %v1383 = vsel %vm1364, %v1348, %v1316
      %v1384 = vsel %vm1364, %v1349, %v1317
      %v1385 = vsel %vm1364, %v1350, %v1318
      %v1386 = vsel %vm1364, %v1351, %v1319
      %v1387 = vsel %vm1364, %v1352, %v1320
      %v1388 = vsel %vm1364, %v1353, %v1321
      %v1389 = vsel %vm1364, %v1354, %v1322
      %v1390 = vsel %vm1364, %v1355, %v1323
      %v1391 = vsel %vm1364, %v1356, %v1324
      %v1392 = vsel %vm1364, %v1357, %v1325
      %v1393 = vsel %vm1364, %v1358, %v1326
      %v1394 = vsel %vm1364, %v1359, %v1327
      %v1395 = vsel %vm1364, %v1360, %v1328
      %v1396 = vsel %vm1364, %v1361, %v1329
      %v1397 = vmax.f32 %v1266, %v1381
      %v1398 = vmax.f32 %v1267, %v1365
      %v1399 = vmax.f32 %v1269, %v1382
      %v1400 = vmax.f32 %v1270, %v1366
      %v1401 = vmax.f32 %v1272, %v1383
      %v1402 = vmax.f32 %v1273, %v1367
      %v1403 = vmax.f32 %v1275, %v1384
      %v1404 = vmax.f32 %v1276, %v1368
      %v1405 = vmax.f32 %v1278, %v1385
      %v1406 = vmax.f32 %v1279, %v1369
      %v1407 = vmax.f32 %v1281, %v1386
      %v1408 = vmax.f32 %v1282, %v1370
      %v1409 = vmax.f32 %v1284, %v1387
      %v1410 = vmax.f32 %v1285, %v1371
      %v1411 = vmax.f32 %v1287, %v1388
      %v1412 = vmax.f32 %v1288, %v1372
      %v1413 = vmax.f32 %v1290, %v1389
      %v1414 = vmax.f32 %v1291, %v1373
      %v1415 = vmax.f32 %v1293, %v1390
      %v1416 = vmax.f32 %v1294, %v1374
      %v1417 = vmax.f32 %v1296, %v1391
      %v1418 = vmax.f32 %v1297, %v1375
      %v1419 = vmax.f32 %v1299, %v1392
      %v1420 = vmax.f32 %v1300, %v1376
      %v1421 = vmax.f32 %v1302, %v1393
      %v1422 = vmax.f32 %v1303, %v1377
      %v1423 = vmax.f32 %v1305, %v1394
      %v1424 = vmax.f32 %v1306, %v1378
      %v1425 = vmax.f32 %v1308, %v1395
      %v1426 = vmax.f32 %v1309, %v1379
      %v1427 = vmax.f32 %v1311, %v1396
      %v1428 = vmax.f32 %v1312, %v1380
      %v1429 = vrot.slane %v1266, 1
      %v1430 = vrot.slane %v1269, 1
      %v1431 = vrot.slane %v1272, 1
      %v1432 = vrot.slane %v1275, 1
      %v1433 = vrot.slane %v1278, 1
      %v1434 = vrot.slane %v1281, 1
      %v1435 = vrot.slane %v1284, 1
      %v1436 = vrot.slane %v1287, 1
      %v1437 = vrot.slane %v1290, 1
      %v1438 = vrot.slane %v1293, 1
      %v1439 = vrot.slane %v1296, 1
      %v1440 = vrot.slane %v1299, 1
      %v1441 = vrot.slane %v1302, 1
      %v1442 = vrot.slane %v1305, 1
      %v1443 = vrot.slane %v1308, 1
      %v1444 = vrot.slane %v1311, 1
      %v1445 = vrot.slane %v1267, 1
      %v1446 = vrot.slane %v1270, 1
      %v1447 = vrot.slane %v1273, 1
      %v1448 = vrot.slane %v1276, 1
      %v1449 = vrot.slane %v1279, 1
      %v1450 = vrot.slane %v1282, 1
      %v1451 = vrot.slane %v1285, 1
      %v1452 = vrot.slane %v1288, 1
      %v1453 = vrot.slane %v1291, 1
      %v1454 = vrot.slane %v1294, 1
      %v1455 = vrot.slane %v1297, 1
      %v1456 = vrot.slane %v1300, 1
      %v1457 = vrot.slane %v1303, 1
      %v1458 = vrot.slane %v1306, 1
      %v1459 = vrot.slane %v1309, 1
      %v1460 = vrot.slane %v1312, 1
      %v1461 = vrot.slane %v1268, 1
      %v1462 = vrot.slane %v1271, 1
      %v1463 = vrot.slane %v1274, 1
      %v1464 = vrot.slane %v1277, 1
      %v1465 = vrot.slane %v1280, 1
      %v1466 = vrot.slane %v1283, 1
      %v1467 = vrot.slane %v1286, 1
      %v1468 = vrot.slane %v1289, 1
      %v1469 = vrot.slane %v1292, 1
      %v1470 = vrot.slane %v1295, 1
      %v1471 = vrot.slane %v1298, 1
      %v1472 = vrot.slane %v1301, 1
      %v1473 = vrot.slane %v1304, 1
      %v1474 = vrot.slane %v1307, 1
      %v1475 = vrot.slane %v1310, 1
      %v1476 = vrot.slane %v1313, 1
      %vm1477 = vcmp.lt.s32.totalorder %v1363, 7
      %v1478 = vsel %vm1477, %v1445, %v1461
      %v1479 = vsel %vm1477, %v1446, %v1462
      %v1480 = vsel %vm1477, %v1447, %v1463
      %v1481 = vsel %vm1477, %v1448, %v1464
      %v1482 = vsel %vm1477, %v1449, %v1465
      %v1483 = vsel %vm1477, %v1450, %v1466
      %v1484 = vsel %vm1477, %v1451, %v1467
      %v1485 = vsel %vm1477, %v1452, %v1468
      %v1486 = vsel %vm1477, %v1453, %v1469
      %v1487 = vsel %vm1477, %v1454, %v1470
      %v1488 = vsel %vm1477, %v1455, %v1471
      %v1489 = vsel %vm1477, %v1456, %v1472
      %v1490 = vsel %vm1477, %v1457, %v1473
      %v1491 = vsel %vm1477, %v1458, %v1474
      %v1492 = vsel %vm1477, %v1459, %v1475
      %v1493 = vsel %vm1477, %v1460, %v1476
      %v1494 = vsel %vm1477, %v1429, %v1445
      %v1495 = vsel %vm1477, %v1430, %v1446
      %v1496 = vsel %vm1477, %v1431, %v1447
      %v1497 = vsel %vm1477, %v1432, %v1448
      %v1498 = vsel %vm1477, %v1433, %v1449
      %v1499 = vsel %vm1477, %v1434, %v1450
      %v1500 = vsel %vm1477, %v1435, %v1451
      %v1501 = vsel %vm1477, %v1436, %v1452
      %v1502 = vsel %vm1477, %v1437, %v1453
      %v1503 = vsel %vm1477, %v1438, %v1454
      %v1504 = vsel %vm1477, %v1439, %v1455
      %v1505 = vsel %vm1477, %v1440, %v1456
      %v1506 = vsel %vm1477, %v1441, %v1457
      %v1507 = vsel %vm1477, %v1442, %v1458
      %v1508 = vsel %vm1477, %v1443, %v1459
      %v1509 = vsel %vm1477, %v1444, %v1460
      %v1510 = vmax.f32 %v1397, %v1494
      %v1511 = vmax.f32 %v1398, %v1478
      %v1512 = vmax.f32 %v1399, %v1495
      %v1513 = vmax.f32 %v1400, %v1479
      %v1514 = vmax.f32 %v1401, %v1496
      %v1515 = vmax.f32 %v1402, %v1480
      %v1516 = vmax.f32 %v1403, %v1497
      %v1517 = vmax.f32 %v1404, %v1481
      %v1518 = vmax.f32 %v1405, %v1498
      %v1519 = vmax.f32 %v1406, %v1482
      %v1520 = vmax.f32 %v1407, %v1499
      %v1521 = vmax.f32 %v1408, %v1483
      %v1522 = vmax.f32 %v1409, %v1500
      %v1523 = vmax.f32 %v1410, %v1484
      %v1524 = vmax.f32 %v1411, %v1501
      %v1525 = vmax.f32 %v1412, %v1485
      %v1526 = vmax.f32 %v1413, %v1502
      %v1527 = vmax.f32 %v1414, %v1486
      %v1528 = vmax.f32 %v1415, %v1503
      %v1529 = vmax.f32 %v1416, %v1487
      %v1530 = vmax.f32 %v1417, %v1504
      %v1531 = vmax.f32 %v1418, %v1488
      %v1532 = vmax.f32 %v1419, %v1505
      %v1533 = vmax.f32 %v1420, %v1489
      %v1534 = vmax.f32 %v1421, %v1506
      %v1535 = vmax.f32 %v1422, %v1490
      %v1536 = vmax.f32 %v1423, %v1507
      %v1537 = vmax.f32 %v1424, %v1491
      %v1538 = vmax.f32 %v1425, %v1508
      %v1539 = vmax.f32 %v1426, %v1492
      %v1540 = vmax.f32 %v1427, %v1509
      %v1541 = vmax.f32 %v1428, %v1493
      %v1542 = vrot.slane %v1266, 6
      %v1543 = vrot.slane %v1269, 6
      %v1544 = vrot.slane %v1272, 6
      %v1545 = vrot.slane %v1275, 6
      %v1546 = vrot.slane %v1278, 6
      %v1547 = vrot.slane %v1281, 6
      %v1548 = vrot.slane %v1284, 6
      %v1549 = vrot.slane %v1287, 6
      %v1550 = vrot.slane %v1290, 6
      %v1551 = vrot.slane %v1293, 6
      %v1552 = vrot.slane %v1296, 6
      %v1553 = vrot.slane %v1299, 6
      %v1554 = vrot.slane %v1302, 6
      %v1555 = vrot.slane %v1305, 6
      %v1556 = vrot.slane %v1308, 6
      %v1557 = vrot.slane %v1311, 6
      %v1558 = vrot.slane %v1267, 6
      %v1559 = vrot.slane %v1270, 6
      %v1560 = vrot.slane %v1273, 6
      %v1561 = vrot.slane %v1276, 6
      %v1562 = vrot.slane %v1279, 6
      %v1563 = vrot.slane %v1282, 6
      %v1564 = vrot.slane %v1285, 6
      %v1565 = vrot.slane %v1288, 6
      %v1566 = vrot.slane %v1291, 6
      %v1567 = vrot.slane %v1294, 6
      %v1568 = vrot.slane %v1297, 6
      %v1569 = vrot.slane %v1300, 6
      %v1570 = vrot.slane %v1303, 6
      %v1571 = vrot.slane %v1306, 6
      %v1572 = vrot.slane %v1309, 6
      %v1573 = vrot.slane %v1312, 6
      %v1574 = vrot.slane %v1268, 6
      %v1575 = vrot.slane %v1271, 6
      %v1576 = vrot.slane %v1274, 6
      %v1577 = vrot.slane %v1277, 6
      %v1578 = vrot.slane %v1280, 6
      %v1579 = vrot.slane %v1283, 6
      %v1580 = vrot.slane %v1286, 6
      %v1581 = vrot.slane %v1289, 6
      %v1582 = vrot.slane %v1292, 6
      %v1583 = vrot.slane %v1295, 6
      %v1584 = vrot.slane %v1298, 6
      %v1585 = vrot.slane %v1301, 6
      %v1586 = vrot.slane %v1304, 6
      %v1587 = vrot.slane %v1307, 6
      %v1588 = vrot.slane %v1310, 6
      %v1589 = vrot.slane %v1313, 6
      %vm1590 = vcmp.lt.s32.totalorder %v1363, 2
      %v1591 = vsel %vm1590, %v1542, %v1558
      %v1592 = vsel %vm1590, %v1543, %v1559
      %v1593 = vsel %vm1590, %v1544, %v1560
      %v1594 = vsel %vm1590, %v1545, %v1561
      %v1595 = vsel %vm1590, %v1546, %v1562
      %v1596 = vsel %vm1590, %v1547, %v1563
      %v1597 = vsel %vm1590, %v1548, %v1564
      %v1598 = vsel %vm1590, %v1549, %v1565
      %v1599 = vsel %vm1590, %v1550, %v1566
      %v1600 = vsel %vm1590, %v1551, %v1567
      %v1601 = vsel %vm1590, %v1552, %v1568
      %v1602 = vsel %vm1590, %v1553, %v1569
      %v1603 = vsel %vm1590, %v1554, %v1570
      %v1604 = vsel %vm1590, %v1555, %v1571
      %v1605 = vsel %vm1590, %v1556, %v1572
      %v1606 = vsel %vm1590, %v1557, %v1573
      %v1607 = vsel %vm1590, %v1574, %v1542
      %v1608 = vsel %vm1590, %v1575, %v1543
      %v1609 = vsel %vm1590, %v1576, %v1544
      %v1610 = vsel %vm1590, %v1577, %v1545
      %v1611 = vsel %vm1590, %v1578, %v1546
      %v1612 = vsel %vm1590, %v1579, %v1547
      %v1613 = vsel %vm1590, %v1580, %v1548
      %v1614 = vsel %vm1590, %v1581, %v1549
      %v1615 = vsel %vm1590, %v1582, %v1550
      %v1616 = vsel %vm1590, %v1583, %v1551
      %v1617 = vsel %vm1590, %v1584, %v1552
      %v1618 = vsel %vm1590, %v1585, %v1553
      %v1619 = vsel %vm1590, %v1586, %v1554
      %v1620 = vsel %vm1590, %v1587, %v1555
      %v1621 = vsel %vm1590, %v1588, %v1556
      %v1622 = vsel %vm1590, %v1589, %v1557
      %v1623 = vmax.f32 %v1510, %v1607
      %v1624 = vmax.f32 %v1511, %v1591
      %v1625 = vmax.f32 %v1512, %v1608
      %v1626 = vmax.f32 %v1513, %v1592
      %v1627 = vmax.f32 %v1514, %v1609
      %v1628 = vmax.f32 %v1515, %v1593
      %v1629 = vmax.f32 %v1516, %v1610
      %v1630 = vmax.f32 %v1517, %v1594
      %v1631 = vmax.f32 %v1518, %v1611
      %v1632 = vmax.f32 %v1519, %v1595
      %v1633 = vmax.f32 %v1520, %v1612
      %v1634 = vmax.f32 %v1521, %v1596
      %v1635 = vmax.f32 %v1522, %v1613
      %v1636 = vmax.f32 %v1523, %v1597
      %v1637 = vmax.f32 %v1524, %v1614
      %v1638 = vmax.f32 %v1525, %v1598
      %v1639 = vmax.f32 %v1526, %v1615
      %v1640 = vmax.f32 %v1527, %v1599
      %v1641 = vmax.f32 %v1528, %v1616
      %v1642 = vmax.f32 %v1529, %v1600
      %v1643 = vmax.f32 %v1530, %v1617
      %v1644 = vmax.f32 %v1531, %v1601
      %v1645 = vmax.f32 %v1532, %v1618
      %v1646 = vmax.f32 %v1533, %v1602
      %v1647 = vmax.f32 %v1534, %v1619
      %v1648 = vmax.f32 %v1535, %v1603
      %v1649 = vmax.f32 %v1536, %v1620
      %v1650 = vmax.f32 %v1537, %v1604
      %v1651 = vmax.f32 %v1538, %v1621
      %v1652 = vmax.f32 %v1539, %v1605
      %v1653 = vmax.f32 %v1540, %v1622
      %v1654 = vmax.f32 %v1541, %v1606
      %v1655 = vrot.slane %v1266, 2
      %v1656 = vrot.slane %v1269, 2
      %v1657 = vrot.slane %v1272, 2
      %v1658 = vrot.slane %v1275, 2
      %v1659 = vrot.slane %v1278, 2
      %v1660 = vrot.slane %v1281, 2
      %v1661 = vrot.slane %v1284, 2
      %v1662 = vrot.slane %v1287, 2
      %v1663 = vrot.slane %v1290, 2
      %v1664 = vrot.slane %v1293, 2
      %v1665 = vrot.slane %v1296, 2
      %v1666 = vrot.slane %v1299, 2
      %v1667 = vrot.slane %v1302, 2
      %v1668 = vrot.slane %v1305, 2
      %v1669 = vrot.slane %v1308, 2
      %v1670 = vrot.slane %v1311, 2
      %v1671 = vrot.slane %v1267, 2
      %v1672 = vrot.slane %v1270, 2
      %v1673 = vrot.slane %v1273, 2
      %v1674 = vrot.slane %v1276, 2
      %v1675 = vrot.slane %v1279, 2
      %v1676 = vrot.slane %v1282, 2
      %v1677 = vrot.slane %v1285, 2
      %v1678 = vrot.slane %v1288, 2
      %v1679 = vrot.slane %v1291, 2
      %v1680 = vrot.slane %v1294, 2
      %v1681 = vrot.slane %v1297, 2
      %v1682 = vrot.slane %v1300, 2
      %v1683 = vrot.slane %v1303, 2
      %v1684 = vrot.slane %v1306, 2
      %v1685 = vrot.slane %v1309, 2
      %v1686 = vrot.slane %v1312, 2
      %v1687 = vrot.slane %v1268, 2
      %v1688 = vrot.slane %v1271, 2
      %v1689 = vrot.slane %v1274, 2
      %v1690 = vrot.slane %v1277, 2
      %v1691 = vrot.slane %v1280, 2
      %v1692 = vrot.slane %v1283, 2
      %v1693 = vrot.slane %v1286, 2
      %v1694 = vrot.slane %v1289, 2
      %v1695 = vrot.slane %v1292, 2
      %v1696 = vrot.slane %v1295, 2
      %v1697 = vrot.slane %v1298, 2
      %v1698 = vrot.slane %v1301, 2
      %v1699 = vrot.slane %v1304, 2
      %v1700 = vrot.slane %v1307, 2
      %v1701 = vrot.slane %v1310, 2
      %v1702 = vrot.slane %v1313, 2
      %vm1703 = vcmp.lt.s32.totalorder %v1363, 6
      %v1704 = vsel %vm1703, %v1671, %v1687
      %v1705 = vsel %vm1703, %v1672, %v1688
      %v1706 = vsel %vm1703, %v1673, %v1689
      %v1707 = vsel %vm1703, %v1674, %v1690
      %v1708 = vsel %vm1703, %v1675, %v1691
      %v1709 = vsel %vm1703, %v1676, %v1692
      %v1710 = vsel %vm1703, %v1677, %v1693
      %v1711 = vsel %vm1703, %v1678, %v1694
      %v1712 = vsel %vm1703, %v1679, %v1695
      %v1713 = vsel %vm1703, %v1680, %v1696
      %v1714 = vsel %vm1703, %v1681, %v1697
      %v1715 = vsel %vm1703, %v1682, %v1698
      %v1716 = vsel %vm1703, %v1683, %v1699
      %v1717 = vsel %vm1703, %v1684, %v1700
      %v1718 = vsel %vm1703, %v1685, %v1701
      %v1719 = vsel %vm1703, %v1686, %v1702
      %v1720 = vsel %vm1703, %v1655, %v1671
      %v1721 = vsel %vm1703, %v1656, %v1672
      %v1722 = vsel %vm1703, %v1657, %v1673
      %v1723 = vsel %vm1703, %v1658, %v1674
      %v1724 = vsel %vm1703, %v1659, %v1675
      %v1725 = vsel %vm1703, %v1660, %v1676
      %v1726 = vsel %vm1703, %v1661, %v1677
      %v1727 = vsel %vm1703, %v1662, %v1678
      %v1728 = vsel %vm1703, %v1663, %v1679
      %v1729 = vsel %vm1703, %v1664, %v1680
      %v1730 = vsel %vm1703, %v1665, %v1681
      %v1731 = vsel %vm1703, %v1666, %v1682
      %v1732 = vsel %vm1703, %v1667, %v1683
      %v1733 = vsel %vm1703, %v1668, %v1684
      %v1734 = vsel %vm1703, %v1669, %v1685
      %v1735 = vsel %vm1703, %v1670, %v1686
      %v1736 = vmax.f32 %v1623, %v1720
      %v1737 = vmax.f32 %v1624, %v1704
      %v1738 = vmax.f32 %v1625, %v1721
      %v1739 = vmax.f32 %v1626, %v1705
      %v1740 = vmax.f32 %v1627, %v1722
      %v1741 = vmax.f32 %v1628, %v1706
      %v1742 = vmax.f32 %v1629, %v1723
      %v1743 = vmax.f32 %v1630, %v1707
      %v1744 = vmax.f32 %v1631, %v1724
      %v1745 = vmax.f32 %v1632, %v1708
      %v1746 = vmax.f32 %v1633, %v1725
      %v1747 = vmax.f32 %v1634, %v1709
      %v1748 = vmax.f32 %v1635, %v1726
      %v1749 = vmax.f32 %v1636, %v1710
      %v1750 = vmax.f32 %v1637, %v1727
      %v1751 = vmax.f32 %v1638, %v1711
      %v1752 = vmax.f32 %v1639, %v1728
      %v1753 = vmax.f32 %v1640, %v1712
      %v1754 = vmax.f32 %v1641, %v1729
      %v1755 = vmax.f32 %v1642, %v1713
      %v1756 = vmax.f32 %v1643, %v1730
      %v1757 = vmax.f32 %v1644, %v1714
      %v1758 = vmax.f32 %v1645, %v1731
      %v1759 = vmax.f32 %v1646, %v1715
      %v1760 = vmax.f32 %v1647, %v1732
      %v1761 = vmax.f32 %v1648, %v1716
      %v1762 = vmax.f32 %v1649, %v1733
      %v1763 = vmax.f32 %v1650, %v1717
      %v1764 = vmax.f32 %v1651, %v1734
      %v1765 = vmax.f32 %v1652, %v1718
      %v1766 = vmax.f32 %v1653, %v1735
      %v1767 = vmax.f32 %v1654, %v1719
      %s1768 = scalar_lea.vmem %s3, 2
      %v1769 = vld [vmem:[%s1768] sm:$0x3]
      %v1771 = vsel %vm225, %v1736, 0
      %v1774 = vsel %vm225, %v1737, 0
      %v1777 = vsel %vm225, %v1738, 0
      %v1780 = vsel %vm225, %v1739, 0
      %v1783 = vsel %vm225, %v1740, 0
      %v1786 = vsel %vm225, %v1741, 0
      %v1789 = vsel %vm225, %v1742, 0
      %v1792 = vsel %vm225, %v1743, 0
      %v1795 = vsel %vm225, %v1744, 0
      %v1798 = vsel %vm225, %v1745, 0
      %v1801 = vsel %vm225, %v1746, 0
      %v1804 = vsel %vm225, %v1747, 0
      %v1807 = vsel %vm225, %v1748, 0
      %v1810 = vsel %vm225, %v1749, 0
      %v1813 = vsel %vm225, %v1750, 0
      %v1816 = vsel %vm225, %v1751, 0
      %v1819 = vsel %vm225, %v1752, 0
      %v1822 = vsel %vm225, %v1753, 0
      %v1825 = vsel %vm225, %v1754, 0
      %v1828 = vsel %vm225, %v1755, 0
      %v1831 = vsel %vm225, %v1756, 0
      %v1834 = vsel %vm225, %v1757, 0
      %v1837 = vsel %vm225, %v1758, 0
      %v1840 = vsel %vm225, %v1759, 0
      %v1843 = vsel %vm225, %v1760, 0
      %v1846 = vsel %vm225, %v1761, 0
      %v1849 = vsel %vm225, %v1762, 0
      %v1852 = vsel %vm225, %v1763, 0
      %v1855 = vsel %vm225, %v1764, 0
      %v1858 = vsel %vm225, %v1765, 0
      %v1861 = vsel %vm225, %v1766, 0
      %v1864 = vsel %vm225, %v1767, 0
      %vm1866 = vcmask 1041408
      %v1868 = vsel %vm1866, %v1769, 0
      %1870 = vmatprep.subr.mxu0 0.0
      %1871 = vmatpush1.msra.mxu0 0.0
      %1872 = vmatprep.subr.mxu0 0.0
      %1873 = vmatpush1.msra.mxu0 0.0
      %1874 = vmatprep.subr.mxu0 0.0
      %1875 = vmatpush1.msra.mxu0 0.0
      %1876 = vmatprep.subr.mxu0 0.0
      %1877 = vmatpush1.msra.mxu0 0.0
      %1878 = vmatprep.subr.mxu0 0.0
      %1879 = vmatpush1.msra.mxu0 0.0
      %1880 = vmatprep.subr.mxu0 0.0
      %1881 = vmatpush1.msra.mxu0 0.0
      %1882 = vmatprep.subr.mxu0 0.0
      %1883 = vmatpush1.msra.mxu0 0.0
      %1884 = vmatprep.subr.mxu0 0.0
      %1885 = vmatpush1.msra.mxu0 0.0
      %1886 = vmatprep.subr.mxu0 0.0
      %1887 = vmatpush1.msra.mxu0 0.0
      %1888 = vmatprep.subr.mxu0 0.0
      %1889 = vmatpush1.msra.mxu0 0.0
      %1890 = vmatprep.subr.mxu0 0.0
      %1891 = vmatpush1.msra.mxu0 0.0
      %1892 = vmatprep.subr.mxu0 0.0
      %1893 = vmatpush1.msra.mxu0 0.0
      %1894 = vmatprep.subr.mxu0 0.0
      %1895 = vmatpush1.msra.mxu0 0.0
      %1896 = vmatprep.subr.mxu0 0.0
      %1897 = vmatpush1.msra.mxu0 0.0
      %1898 = vmatprep.subr.mxu0 0.0
      %1899 = vmatpush1.msra.mxu0 0.0
      %1900 = vmatprep.subr.mxu0 0.0
      %1901 = vmatpush1.msra.mxu0 %v1868
      %1902 = vmatprep.subr.mxu0 0.0
      %1903 = vmatpush2.msra.mxu0 0.0
      %1904 = vmatprep.subr.mxu0 0.0
      %1905 = vmatpush2.msra.mxu0 0.0
      %1906 = vmatprep.subr.mxu0 0.0
      %1907 = vmatpush2.msra.mxu0 0.0
      %1908 = vmatprep.subr.mxu0 0.0
      %1909 = vmatpush2.msra.mxu0 0.0
      %1910 = vmatprep.subr.mxu0 0.0
      %1911 = vmatpush2.msra.mxu0 0.0
      %1912 = vmatprep.subr.mxu0 0.0
      %1913 = vmatpush2.msra.mxu0 0.0
      %1914 = vmatprep.subr.mxu0 0.0
      %1915 = vmatpush2.msra.mxu0 0.0
      %1916 = vmatprep.subr.mxu0 0.0
      %1917 = vmatpush2.msra.mxu0 0.0
      %1918 = vmatprep.subr.mxu0 0.0
      %1919 = vmatpush2.msra.mxu0 0.0
      %1920 = vmatprep.subr.mxu0 0.0
      %1921 = vmatpush2.msra.mxu0 0.0
      %1922 = vmatprep.subr.mxu0 0.0
      %1923 = vmatpush2.msra.mxu0 0.0
      %1924 = vmatprep.subr.mxu0 0.0
      %1925 = vmatpush2.msra.mxu0 0.0
      %1926 = vmatprep.subr.mxu0 0.0
      %1927 = vmatpush2.msra.mxu0 0.0
      %1928 = vmatprep.subr.mxu0 0.0
      %1929 = vmatpush2.msra.mxu0 0.0
      %1930 = vmatprep.subr.mxu0 0.0
      %1931 = vmatpush2.msra.mxu0 0.0
      %1932 = vmatprep.subr.mxu0 0.0
      %1933 = vmatpush2.msra.mxu0 0.0
      %1934 = vmatprep.mubr.f32.mxu0 0.0
      %1935 = vmatmul.mubr.f32.gmra.mxu0 %v1771
      %v1936 = vpop.f32.mrf.mxu0
      %v1937 = vadd.f32 0.0, %v1936
      %v1938 = vpop.f32.mrf.mxu0
      %1939 = vmatprep.mubr.f32.mxu0 0.0
      %1940 = vmatmul.mubr.f32.gmra.mxu0 %v1774
      %v1941 = vpop.f32.mrf.mxu0
      %v1942 = vadd.f32 0.0, %v1941
      %v1943 = vpop.f32.mrf.mxu0
      %1944 = vmatprep.mubr.f32.mxu0 0.0
      %1945 = vmatmul.mubr.f32.gmra.mxu0 %v1777
      %v1946 = vpop.f32.mrf.mxu0
      %v1947 = vadd.f32 0.0, %v1946
      %v1948 = vpop.f32.mrf.mxu0
      %1949 = vmatprep.mubr.f32.mxu0 0.0
      %1950 = vmatmul.mubr.f32.gmra.mxu0 %v1780
      %v1951 = vpop.f32.mrf.mxu0
      %v1952 = vadd.f32 0.0, %v1951
      %v1953 = vpop.f32.mrf.mxu0
      %1954 = vmatprep.mubr.f32.mxu0 0.0
      %1955 = vmatmul.mubr.f32.gmra.mxu0 %v1783
      %v1956 = vpop.f32.mrf.mxu0
      %v1957 = vadd.f32 0.0, %v1956
      %v1958 = vpop.f32.mrf.mxu0
      %1959 = vmatprep.mubr.f32.mxu0 0.0
      %1960 = vmatmul.mubr.f32.gmra.mxu0 %v1786
      %v1961 = vpop.f32.mrf.mxu0
      %v1962 = vadd.f32 0.0, %v1961
      %v1963 = vpop.f32.mrf.mxu0
      %1964 = vmatprep.mubr.f32.mxu0 0.0
      %1965 = vmatmul.mubr.f32.gmra.mxu0 %v1789
      %v1966 = vpop.f32.mrf.mxu0
      %v1967 = vadd.f32 0.0, %v1966
      %v1968 = vpop.f32.mrf.mxu0
      %1969 = vmatprep.mubr.f32.mxu0 0.0
      %1970 = vmatmul.mubr.f32.gmra.mxu0 %v1792
      %v1971 = vpop.f32.mrf.mxu0
      %v1972 = vadd.f32 0.0, %v1971
      %v1973 = vpop.f32.mrf.mxu0
      %1974 = vmatprep.mubr.f32.mxu0 0.0
      %1975 = vmatmul.mubr.f32.gmra.mxu0 %v1795
      %v1976 = vpop.f32.mrf.mxu0
      %v1977 = vadd.f32 0.0, %v1976
      %v1978 = vpop.f32.mrf.mxu0
      %1979 = vmatprep.mubr.f32.mxu0 0.0
      %1980 = vmatmul.mubr.f32.gmra.mxu0 %v1798
      %v1981 = vpop.f32.mrf.mxu0
      %v1982 = vadd.f32 0.0, %v1981
      %v1983 = vpop.f32.mrf.mxu0
      %1984 = vmatprep.mubr.f32.mxu0 0.0
      %1985 = vmatmul.mubr.f32.gmra.mxu0 %v1801
      %v1986 = vpop.f32.mrf.mxu0
      %v1987 = vadd.f32 0.0, %v1986
      %v1988 = vpop.f32.mrf.mxu0
      %1989 = vmatprep.mubr.f32.mxu0 0.0
      %1990 = vmatmul.mubr.f32.gmra.mxu0 %v1804
      %v1991 = vpop.f32.mrf.mxu0
      %v1992 = vadd.f32 0.0, %v1991
      %v1993 = vpop.f32.mrf.mxu0
      %1994 = vmatprep.mubr.f32.mxu0 0.0
      %1995 = vmatmul.mubr.f32.gmra.mxu0 %v1807
      %v1996 = vpop.f32.mrf.mxu0
      %v1997 = vadd.f32 0.0, %v1996
      %v1998 = vpop.f32.mrf.mxu0
      %1999 = vmatprep.mubr.f32.mxu0 0.0
      %2000 = vmatmul.mubr.f32.gmra.mxu0 %v1810
      %v2001 = vpop.f32.mrf.mxu0
      %v2002 = vadd.f32 0.0, %v2001
      %v2003 = vpop.f32.mrf.mxu0
      %2004 = vmatprep.mubr.f32.mxu0 0.0
      %2005 = vmatmul.mubr.f32.gmra.mxu0 %v1813
      %v2006 = vpop.f32.mrf.mxu0
      %v2007 = vadd.f32 0.0, %v2006
      %v2008 = vpop.f32.mrf.mxu0
      %2009 = vmatprep.mubr.f32.mxu0 0.0
      %2010 = vmatmul.mubr.f32.gmra.mxu0 %v1816
      %v2011 = vpop.f32.mrf.mxu0
      %v2012 = vadd.f32 0.0, %v2011
      %v2013 = vpop.f32.mrf.mxu0
      %2014 = vmatprep.mubr.f32.mxu0 0.0
      %2015 = vmatmul.mubr.f32.gmra.mxu0 %v1819
      %v2016 = vpop.f32.mrf.mxu0
      %v2017 = vadd.f32 0.0, %v2016
      %v2018 = vpop.f32.mrf.mxu0
      %2019 = vmatprep.mubr.f32.mxu0 0.0
      %2020 = vmatmul.mubr.f32.gmra.mxu0 %v1822
      %v2021 = vpop.f32.mrf.mxu0
      %v2022 = vadd.f32 0.0, %v2021
      %v2023 = vpop.f32.mrf.mxu0
      %2024 = vmatprep.mubr.f32.mxu0 0.0
      %2025 = vmatmul.mubr.f32.gmra.mxu0 %v1825
      %v2026 = vpop.f32.mrf.mxu0
      %v2027 = vadd.f32 0.0, %v2026
      %v2028 = vpop.f32.mrf.mxu0
      %2029 = vmatprep.mubr.f32.mxu0 0.0
      %2030 = vmatmul.mubr.f32.gmra.mxu0 %v1828
      %v2031 = vpop.f32.mrf.mxu0
      %v2032 = vadd.f32 0.0, %v2031
      %v2033 = vpop.f32.mrf.mxu0
      %2034 = vmatprep.mubr.f32.mxu0 0.0
      %2035 = vmatmul.mubr.f32.gmra.mxu0 %v1831
      %v2036 = vpop.f32.mrf.mxu0
      %v2037 = vadd.f32 0.0, %v2036
      %v2038 = vpop.f32.mrf.mxu0
      %2039 = vmatprep.mubr.f32.mxu0 0.0
      %2040 = vmatmul.mubr.f32.gmra.mxu0 %v1834
      %v2041 = vpop.f32.mrf.mxu0
      %v2042 = vadd.f32 0.0, %v2041
      %v2043 = vpop.f32.mrf.mxu0
      %2044 = vmatprep.mubr.f32.mxu0 0.0
      %2045 = vmatmul.mubr.f32.gmra.mxu0 %v1837
      %v2046 = vpop.f32.mrf.mxu0
      %v2047 = vadd.f32 0.0, %v2046
      %v2048 = vpop.f32.mrf.mxu0
      %2049 = vmatprep.mubr.f32.mxu0 0.0
      %2050 = vmatmul.mubr.f32.gmra.mxu0 %v1840
      %v2051 = vpop.f32.mrf.mxu0
      %v2052 = vadd.f32 0.0, %v2051
      %v2053 = vpop.f32.mrf.mxu0
      %2054 = vmatprep.mubr.f32.mxu0 0.0
      %2055 = vmatmul.mubr.f32.gmra.mxu0 %v1843
      %v2056 = vpop.f32.mrf.mxu0
      %v2057 = vadd.f32 0.0, %v2056
      %v2058 = vpop.f32.mrf.mxu0
      %2059 = vmatprep.mubr.f32.mxu0 0.0
      %2060 = vmatmul.mubr.f32.gmra.mxu0 %v1846
      %v2061 = vpop.f32.mrf.mxu0
      %v2062 = vadd.f32 0.0, %v2061
      %v2063 = vpop.f32.mrf.mxu0
      %2064 = vmatprep.mubr.f32.mxu0 0.0
      %2065 = vmatmul.mubr.f32.gmra.mxu0 %v1849
      %v2066 = vpop.f32.mrf.mxu0
      %v2067 = vadd.f32 0.0, %v2066
      %v2068 = vpop.f32.mrf.mxu0
      %2069 = vmatprep.mubr.f32.mxu0 0.0
      %2070 = vmatmul.mubr.f32.gmra.mxu0 %v1852
      %v2071 = vpop.f32.mrf.mxu0
      %v2072 = vadd.f32 0.0, %v2071
      %v2073 = vpop.f32.mrf.mxu0
      %2074 = vmatprep.mubr.f32.mxu0 0.0
      %2075 = vmatmul.mubr.f32.gmra.mxu0 %v1855
      %v2076 = vpop.f32.mrf.mxu0
      %v2077 = vadd.f32 0.0, %v2076
      %v2078 = vpop.f32.mrf.mxu0
      %2079 = vmatprep.mubr.f32.mxu0 0.0
      %2080 = vmatmul.mubr.f32.gmra.mxu0 %v1858
      %v2081 = vpop.f32.mrf.mxu0
      %v2082 = vadd.f32 0.0, %v2081
      %v2083 = vpop.f32.mrf.mxu0
      %2084 = vmatprep.mubr.f32.mxu0 0.0
      %2085 = vmatmul.mubr.f32.gmra.mxu0 %v1861
      %v2086 = vpop.f32.mrf.mxu0
      %v2087 = vadd.f32 0.0, %v2086
      %v2088 = vpop.f32.mrf.mxu0
      %2089 = vmatprep.mubr.f32.mxu0 0.0
      %2090 = vmatmul.mubr.f32.gmra.mxu0 %v1864
      %v2091 = vpop.f32.mrf.mxu0
      %v2092 = vadd.f32 0.0, %v2091
      %v2093 = vpop.f32.mrf.mxu0
      %2094 = vdwg.mxu0
      %v2096 = vsel %vm225, %v814, 0
      %v2099 = vsel %vm225, %v815, 0
      %v2102 = vsel %vm225, %v816, 0
      %v2105 = vsel %vm225, %v817, 0
      %v2108 = vsel %vm225, %v818, 0
      %v2111 = vsel %vm225, %v819, 0
      %v2114 = vsel %vm225, %v820, 0
      %v2117 = vsel %vm225, %v821, 0
      %v2120 = vsel %vm225, %v822, 0
      %v2123 = vsel %vm225, %v823, 0
      %v2126 = vsel %vm225, %v824, 0
      %v2129 = vsel %vm225, %v825, 0
      %v2132 = vsel %vm225, %v826, 0
      %v2135 = vsel %vm225, %v827, 0
      %v2138 = vsel %vm225, %v828, 0
      %v2141 = vsel %vm225, %v829, 0
      %v2144 = vsel %vm225, %v830, 0
      %v2147 = vsel %vm225, %v831, 0
      %v2150 = vsel %vm225, %v832, 0
      %v2153 = vsel %vm225, %v833, 0
      %v2156 = vsel %vm225, %v834, 0
      %v2159 = vsel %vm225, %v835, 0
      %v2162 = vsel %vm225, %v836, 0
      %v2165 = vsel %vm225, %v837, 0
      %v2168 = vsel %vm225, %v838, 0
      %v2171 = vsel %vm225, %v839, 0
      %v2174 = vsel %vm225, %v840, 0
      %v2177 = vsel %vm225, %v841, 0
      %v2180 = vsel %vm225, %v842, 0
      %v2183 = vsel %vm225, %v843, 0
      %v2186 = vsel %vm225, %v844, 0
      %v2189 = vsel %vm225, %v845, 0
      %v2192 = vsel %vm1866, %v846, 0
      %2194 = vmatprep.subr.mxu0 0.0
      %2195 = vmatpush1.msra.mxu0 0.0
      %2196 = vmatprep.subr.mxu0 0.0
      %2197 = vmatpush1.msra.mxu0 0.0
      %2198 = vmatprep.subr.mxu0 0.0
      %2199 = vmatpush1.msra.mxu0 0.0
      %2200 = vmatprep.subr.mxu0 0.0
      %2201 = vmatpush1.msra.mxu0 0.0
      %2202 = vmatprep.subr.mxu0 0.0
      %2203 = vmatpush1.msra.mxu0 0.0
      %2204 = vmatprep.subr.mxu0 0.0
      %2205 = vmatpush1.msra.mxu0 0.0
      %2206 = vmatprep.subr.mxu0 0.0
      %2207 = vmatpush1.msra.mxu0 0.0
      %2208 = vmatprep.subr.mxu0 0.0
      %2209 = vmatpush1.msra.mxu0 0.0
      %2210 = vmatprep.subr.mxu0 0.0
      %2211 = vmatpush1.msra.mxu0 0.0
      %2212 = vmatprep.subr.mxu0 0.0
      %2213 = vmatpush1.msra.mxu0 0.0
      %2214 = vmatprep.subr.mxu0 0.0
      %2215 = vmatpush1.msra.mxu0 0.0
      %2216 = vmatprep.subr.mxu0 0.0
      %2217 = vmatpush1.msra.mxu0 0.0
      %2218 = vmatprep.subr.mxu0 0.0
      %2219 = vmatpush1.msra.mxu0 0.0
      %2220 = vmatprep.subr.mxu0 0.0
      %2221 = vmatpush1.msra.mxu0 0.0
      %2222 = vmatprep.subr.mxu0 0.0
      %2223 = vmatpush1.msra.mxu0 0.0
      %2224 = vmatprep.subr.mxu0 0.0
      %2225 = vmatpush1.msra.mxu0 %v2192
      %2226 = vmatprep.subr.mxu0 0.0
      %2227 = vmatpush2.msra.mxu0 0.0
      %2228 = vmatprep.subr.mxu0 0.0
      %2229 = vmatpush2.msra.mxu0 0.0
      %2230 = vmatprep.subr.mxu0 0.0
      %2231 = vmatpush2.msra.mxu0 0.0
      %2232 = vmatprep.subr.mxu0 0.0
      %2233 = vmatpush2.msra.mxu0 0.0
      %2234 = vmatprep.subr.mxu0 0.0
      %2235 = vmatpush2.msra.mxu0 0.0
      %2236 = vmatprep.subr.mxu0 0.0
      %2237 = vmatpush2.msra.mxu0 0.0
      %2238 = vmatprep.subr.mxu0 0.0
      %2239 = vmatpush2.msra.mxu0 0.0
      %2240 = vmatprep.subr.mxu0 0.0
      %2241 = vmatpush2.msra.mxu0 0.0
      %2242 = vmatprep.subr.mxu0 0.0
      %2243 = vmatpush2.msra.mxu0 0.0
      %2244 = vmatprep.subr.mxu0 0.0
      %2245 = vmatpush2.msra.mxu0 0.0
      %2246 = vmatprep.subr.mxu0 0.0
      %2247 = vmatpush2.msra.mxu0 0.0
      %2248 = vmatprep.subr.mxu0 0.0
      %2249 = vmatpush2.msra.mxu0 0.0
      %2250 = vmatprep.subr.mxu0 0.0
      %2251 = vmatpush2.msra.mxu0 0.0
      %2252 = vmatprep.subr.mxu0 0.0
      %2253 = vmatpush2.msra.mxu0 0.0
      %2254 = vmatprep.subr.mxu0 0.0
      %2255 = vmatpush2.msra.mxu0 0.0
      %2256 = vmatprep.subr.mxu0 0.0
      %2257 = vmatpush2.msra.mxu0 0.0
      %2258 = vmatprep.mubr.f32.mxu0 0.0
      %2259 = vmatmul.mubr.f32.gmra.mxu0 %v2096
      %v2260 = vpop.f32.mrf.mxu0
      %v2261 = vadd.f32 %v1937, %v2260
      %v2262 = vpop.f32.mrf.mxu0
      %2263 = vmatprep.mubr.f32.mxu0 0.0
      %2264 = vmatmul.mubr.f32.gmra.mxu0 %v2099
      %v2265 = vpop.f32.mrf.mxu0
      %v2266 = vadd.f32 %v1942, %v2265
      %v2267 = vpop.f32.mrf.mxu0
      %2268 = vmatprep.mubr.f32.mxu0 0.0
      %2269 = vmatmul.mubr.f32.gmra.mxu0 %v2102
      %v2270 = vpop.f32.mrf.mxu0
      %v2271 = vadd.f32 %v1947, %v2270
      %v2272 = vpop.f32.mrf.mxu0
      %2273 = vmatprep.mubr.f32.mxu0 0.0
      %2274 = vmatmul.mubr.f32.gmra.mxu0 %v2105
      %v2275 = vpop.f32.mrf.mxu0
      %v2276 = vadd.f32 %v1952, %v2275
      %v2277 = vpop.f32.mrf.mxu0
      %2278 = vmatprep.mubr.f32.mxu0 0.0
      %2279 = vmatmul.mubr.f32.gmra.mxu0 %v2108
      %v2280 = vpop.f32.mrf.mxu0
      %v2281 = vadd.f32 %v1957, %v2280
      %v2282 = vpop.f32.mrf.mxu0
      %2283 = vmatprep.mubr.f32.mxu0 0.0
      %2284 = vmatmul.mubr.f32.gmra.mxu0 %v2111
      %v2285 = vpop.f32.mrf.mxu0
      %v2286 = vadd.f32 %v1962, %v2285
      %v2287 = vpop.f32.mrf.mxu0
      %2288 = vmatprep.mubr.f32.mxu0 0.0
      %2289 = vmatmul.mubr.f32.gmra.mxu0 %v2114
      %v2290 = vpop.f32.mrf.mxu0
      %v2291 = vadd.f32 %v1967, %v2290
      %v2292 = vpop.f32.mrf.mxu0
      %2293 = vmatprep.mubr.f32.mxu0 0.0
      %2294 = vmatmul.mubr.f32.gmra.mxu0 %v2117
      %v2295 = vpop.f32.mrf.mxu0
      %v2296 = vadd.f32 %v1972, %v2295
      %v2297 = vpop.f32.mrf.mxu0
      %2298 = vmatprep.mubr.f32.mxu0 0.0
      %2299 = vmatmul.mubr.f32.gmra.mxu0 %v2120
      %v2300 = vpop.f32.mrf.mxu0
      %v2301 = vadd.f32 %v1977, %v2300
      %v2302 = vpop.f32.mrf.mxu0
      %2303 = vmatprep.mubr.f32.mxu0 0.0
      %2304 = vmatmul.mubr.f32.gmra.mxu0 %v2123
      %v2305 = vpop.f32.mrf.mxu0
      %v2306 = vadd.f32 %v1982, %v2305
      %v2307 = vpop.f32.mrf.mxu0
      %2308 = vmatprep.mubr.f32.mxu0 0.0
      %2309 = vmatmul.mubr.f32.gmra.mxu0 %v2126
      %v2310 = vpop.f32.mrf.mxu0
      %v2311 = vadd.f32 %v1987, %v2310
      %v2312 = vpop.f32.mrf.mxu0
      %2313 = vmatprep.mubr.f32.mxu0 0.0
      %2314 = vmatmul.mubr.f32.gmra.mxu0 %v2129
      %v2315 = vpop.f32.mrf.mxu0
      %v2316 = vadd.f32 %v1992, %v2315
      %v2317 = vpop.f32.mrf.mxu0
      %2318 = vmatprep.mubr.f32.mxu0 0.0
      %2319 = vmatmul.mubr.f32.gmra.mxu0 %v2132
      %v2320 = vpop.f32.mrf.mxu0
      %v2321 = vadd.f32 %v1997, %v2320
      %v2322 = vpop.f32.mrf.mxu0
      %2323 = vmatprep.mubr.f32.mxu0 0.0
      %2324 = vmatmul.mubr.f32.gmra.mxu0 %v2135
      %v2325 = vpop.f32.mrf.mxu0
      %v2326 = vadd.f32 %v2002, %v2325
      %v2327 = vpop.f32.mrf.mxu0
      %2328 = vmatprep.mubr.f32.mxu0 0.0
      %2329 = vmatmul.mubr.f32.gmra.mxu0 %v2138
      %v2330 = vpop.f32.mrf.mxu0
      %v2331 = vadd.f32 %v2007, %v2330
      %v2332 = vpop.f32.mrf.mxu0
      %2333 = vmatprep.mubr.f32.mxu0 0.0
      %2334 = vmatmul.mubr.f32.gmra.mxu0 %v2141
      %v2335 = vpop.f32.mrf.mxu0
      %v2336 = vadd.f32 %v2012, %v2335
      %v2337 = vpop.f32.mrf.mxu0
      %2338 = vmatprep.mubr.f32.mxu0 0.0
      %2339 = vmatmul.mubr.f32.gmra.mxu0 %v2144
      %v2340 = vpop.f32.mrf.mxu0
      %v2341 = vadd.f32 %v2017, %v2340
      %v2342 = vpop.f32.mrf.mxu0
      %2343 = vmatprep.mubr.f32.mxu0 0.0
      %2344 = vmatmul.mubr.f32.gmra.mxu0 %v2147
      %v2345 = vpop.f32.mrf.mxu0
      %v2346 = vadd.f32 %v2022, %v2345
      %v2347 = vpop.f32.mrf.mxu0
      %2348 = vmatprep.mubr.f32.mxu0 0.0
      %2349 = vmatmul.mubr.f32.gmra.mxu0 %v2150
      %v2350 = vpop.f32.mrf.mxu0
      %v2351 = vadd.f32 %v2027, %v2350
      %v2352 = vpop.f32.mrf.mxu0
      %2353 = vmatprep.mubr.f32.mxu0 0.0
      %2354 = vmatmul.mubr.f32.gmra.mxu0 %v2153
      %v2355 = vpop.f32.mrf.mxu0
      %v2356 = vadd.f32 %v2032, %v2355
      %v2357 = vpop.f32.mrf.mxu0
      %2358 = vmatprep.mubr.f32.mxu0 0.0
      %2359 = vmatmul.mubr.f32.gmra.mxu0 %v2156
      %v2360 = vpop.f32.mrf.mxu0
      %v2361 = vadd.f32 %v2037, %v2360
      %v2362 = vpop.f32.mrf.mxu0
      %2363 = vmatprep.mubr.f32.mxu0 0.0
      %2364 = vmatmul.mubr.f32.gmra.mxu0 %v2159
      %v2365 = vpop.f32.mrf.mxu0
      %v2366 = vadd.f32 %v2042, %v2365
      %v2367 = vpop.f32.mrf.mxu0
      %2368 = vmatprep.mubr.f32.mxu0 0.0
      %2369 = vmatmul.mubr.f32.gmra.mxu0 %v2162
      %v2370 = vpop.f32.mrf.mxu0
      %v2371 = vadd.f32 %v2047, %v2370
      %v2372 = vpop.f32.mrf.mxu0
      %2373 = vmatprep.mubr.f32.mxu0 0.0
      %2374 = vmatmul.mubr.f32.gmra.mxu0 %v2165
      %v2375 = vpop.f32.mrf.mxu0
      %v2376 = vadd.f32 %v2052, %v2375
      %v2377 = vpop.f32.mrf.mxu0
      %2378 = vmatprep.mubr.f32.mxu0 0.0
      %2379 = vmatmul.mubr.f32.gmra.mxu0 %v2168
      %v2380 = vpop.f32.mrf.mxu0
      %v2381 = vadd.f32 %v2057, %v2380
      %v2382 = vpop.f32.mrf.mxu0
      %2383 = vmatprep.mubr.f32.mxu0 0.0
      %2384 = vmatmul.mubr.f32.gmra.mxu0 %v2171
      %v2385 = vpop.f32.mrf.mxu0
      %v2386 = vadd.f32 %v2062, %v2385
      %v2387 = vpop.f32.mrf.mxu0
      %2388 = vmatprep.mubr.f32.mxu0 0.0
      %2389 = vmatmul.mubr.f32.gmra.mxu0 %v2174
      %v2390 = vpop.f32.mrf.mxu0
      %v2391 = vadd.f32 %v2067, %v2390
      %v2392 = vpop.f32.mrf.mxu0
      %2393 = vmatprep.mubr.f32.mxu0 0.0
      %2394 = vmatmul.mubr.f32.gmra.mxu0 %v2177
      %v2395 = vpop.f32.mrf.mxu0
      %v2396 = vadd.f32 %v2072, %v2395
      %v2397 = vpop.f32.mrf.mxu0
      %2398 = vmatprep.mubr.f32.mxu0 0.0
      %2399 = vmatmul.mubr.f32.gmra.mxu0 %v2180
      %v2400 = vpop.f32.mrf.mxu0
      %v2401 = vadd.f32 %v2077, %v2400
      %v2402 = vpop.f32.mrf.mxu0
      %2403 = vmatprep.mubr.f32.mxu0 0.0
      %2404 = vmatmul.mubr.f32.gmra.mxu0 %v2183
      %v2405 = vpop.f32.mrf.mxu0
      %v2406 = vadd.f32 %v2082, %v2405
      %v2407 = vpop.f32.mrf.mxu0
      %2408 = vmatprep.mubr.f32.mxu0 0.0
      %2409 = vmatmul.mubr.f32.gmra.mxu0 %v2186
      %v2410 = vpop.f32.mrf.mxu0
      %v2411 = vadd.f32 %v2087, %v2410
      %v2412 = vpop.f32.mrf.mxu0
      %2413 = vmatprep.mubr.f32.mxu0 0.0
      %2414 = vmatmul.mubr.f32.gmra.mxu0 %v2189
      %v2415 = vpop.f32.mrf.mxu0
      %v2416 = vadd.f32 %v2092, %v2415
      %v2417 = vpop.f32.mrf.mxu0
      %2418 = vdwg.mxu0
      %2419 = vst.msk [vmem:[%s239] sm:$0xff] %vm225, %v1736
      %2420 = vst.msk [vmem:[%s239 + $0x8] sm:$0xff] %vm225, %v1737
      %2421 = vst.msk [vmem:[%s239 + $0x18] sm:$0xff] %vm225, %v1738
      %2422 = vst.msk [vmem:[%s239 + $0x20] sm:$0xff] %vm225, %v1739
      %2423 = vst.msk [vmem:[%s239 + $0x30] sm:$0xff] %vm225, %v1740
      %2424 = vst.msk [vmem:[%s239 + $0x38] sm:$0xff] %vm225, %v1741
      %2425 = vst.msk [vmem:[%s239 + $0x48] sm:$0xff] %vm225, %v1742
      %2426 = vst.msk [vmem:[%s239 + $0x50] sm:$0xff] %vm225, %v1743
      %2427 = vst.msk [vmem:[%s239 + $0x60] sm:$0xff] %vm225, %v1744
      %2428 = vst.msk [vmem:[%s239 + $0x68] sm:$0xff] %vm225, %v1745
      %2429 = vst.msk [vmem:[%s239 + $0x78] sm:$0xff] %vm225, %v1746
      %2430 = vst.msk [vmem:[%s239 + $0x80] sm:$0xff] %vm225, %v1747
      %2431 = vst.msk [vmem:[%s239 + $0x90] sm:$0xff] %vm225, %v1748
      %2432 = vst.msk [vmem:[%s239 + $0x98] sm:$0xff] %vm225, %v1749
      %2433 = vst.msk [vmem:[%s239 + $0xa8] sm:$0xff] %vm225, %v1750
      %2434 = vst.msk [vmem:[%s239 + $0xb0] sm:$0xff] %vm225, %v1751
      %2435 = vst.msk [vmem:[%s239 + $0xc0] sm:$0xff] %vm225, %v1752
      %2436 = vst.msk [vmem:[%s239 + $0xc8] sm:$0xff] %vm225, %v1753
      %2437 = vst.msk [vmem:[%s239 + $0xd8] sm:$0xff] %vm225, %v1754
      %2438 = vst.msk [vmem:[%s239 + $0xe0] sm:$0xff] %vm225, %v1755
      %2439 = vst.msk [vmem:[%s239 + $0xf0] sm:$0xff] %vm225, %v1756
      %2440 = vst.msk [vmem:[%s239 + $0xf8] sm:$0xff] %vm225, %v1757
      %2441 = vst.msk [vmem:[%s239 + $0x108] sm:$0xff] %vm225, %v1758
      %2442 = vst.msk [vmem:[%s239 + $0x110] sm:$0xff] %vm225, %v1759
      %2443 = vst.msk [vmem:[%s239 + $0x120] sm:$0xff] %vm225, %v1760
      %2444 = vst.msk [vmem:[%s239 + $0x128] sm:$0xff] %vm225, %v1761
      %2445 = vst.msk [vmem:[%s239 + $0x138] sm:$0xff] %vm225, %v1762
      %2446 = vst.msk [vmem:[%s239 + $0x140] sm:$0xff] %vm225, %v1763
      %2447 = vst.msk [vmem:[%s239 + $0x150] sm:$0xff] %vm225, %v1764
      %2448 = vst.msk [vmem:[%s239 + $0x158] sm:$0xff] %vm225, %v1765
      %2449 = vst.msk [vmem:[%s239 + $0x168] sm:$0xff] %vm225, %v1766
      %2450 = vst.msk [vmem:[%s239 + $0x170] sm:$0xff] %vm225, %v1767
      %v2451 = vld [vmem:[#allocation2] sm:$0xff]
      %v2452 = vld [vmem:[#allocation2 + $0x8] sm:$0xff]
      %v2453 = vld [vmem:[#allocation2 + $0x10] sm:$0xff]
      %v2454 = vld [vmem:[#allocation2 + $0x18] sm:$0xff]
      %v2455 = vld [vmem:[#allocation2 + $0x20] sm:$0xff]
      %v2456 = vld [vmem:[#allocation2 + $0x28] sm:$0xff]
      %v2457 = vld [vmem:[#allocation2 + $0x30] sm:$0xff]
      %v2458 = vld [vmem:[#allocation2 + $0x38] sm:$0xff]
      %v2459 = vld [vmem:[#allocation2 + $0x40] sm:$0xff]
      %v2460 = vld [vmem:[#allocation2 + $0x48] sm:$0xff]
      %v2461 = vld [vmem:[#allocation2 + $0x50] sm:$0xff]
      %v2462 = vld [vmem:[#allocation2 + $0x58] sm:$0xff]
      %v2463 = vld [vmem:[#allocation2 + $0x60] sm:$0xff]
      %v2464 = vld [vmem:[#allocation2 + $0x68] sm:$0xff]
      %v2465 = vld [vmem:[#allocation2 + $0x70] sm:$0xff]
      %v2466 = vld [vmem:[#allocation2 + $0x78] sm:$0xff]
      %v2467 = vld [vmem:[#allocation2 + $0x80] sm:$0xff]
      %v2468 = vld [vmem:[#allocation2 + $0x88] sm:$0xff]
      %v2469 = vld [vmem:[#allocation2 + $0x90] sm:$0xff]
      %v2470 = vld [vmem:[#allocation2 + $0x98] sm:$0xff]
      %v2471 = vld [vmem:[#allocation2 + $0xa0] sm:$0xff]
      %v2472 = vld [vmem:[#allocation2 + $0xa8] sm:$0xff]
      %v2473 = vld [vmem:[#allocation2 + $0xb0] sm:$0xff]
      %v2474 = vld [vmem:[#allocation2 + $0xb8] sm:$0xff]
      %v2475 = vld [vmem:[#allocation2 + $0xc0] sm:$0xff]
      %v2476 = vld [vmem:[#allocation2 + $0xc8] sm:$0xff]
      %v2477 = vld [vmem:[#allocation2 + $0xd0] sm:$0xff]
      %v2478 = vld [vmem:[#allocation2 + $0xd8] sm:$0xff]
      %v2479 = vld [vmem:[#allocation2 + $0xe0] sm:$0xff]
      %v2480 = vld [vmem:[#allocation2 + $0xe8] sm:$0xff]
      %v2481 = vld [vmem:[#allocation2 + $0xf0] sm:$0xff]
      %v2482 = vld [vmem:[#allocation2 + $0xf8] sm:$0xff]
      %v2483 = vld [vmem:[#allocation2 + $0x100] sm:$0xff]
      %v2484 = vld [vmem:[#allocation2 + $0x108] sm:$0xff]
      %v2485 = vld [vmem:[#allocation2 + $0x110] sm:$0xff]
      %v2486 = vld [vmem:[#allocation2 + $0x118] sm:$0xff]
      %v2487 = vld [vmem:[#allocation2 + $0x120] sm:$0xff]
      %v2488 = vld [vmem:[#allocation2 + $0x128] sm:$0xff]
      %v2489 = vld [vmem:[#allocation2 + $0x130] sm:$0xff]
      %v2490 = vld [vmem:[#allocation2 + $0x138] sm:$0xff]
      %v2491 = vld [vmem:[#allocation2 + $0x140] sm:$0xff]
      %v2492 = vld [vmem:[#allocation2 + $0x148] sm:$0xff]
      %v2493 = vld [vmem:[#allocation2 + $0x150] sm:$0xff]
      %v2494 = vld [vmem:[#allocation2 + $0x158] sm:$0xff]
      %v2495 = vld [vmem:[#allocation2 + $0x160] sm:$0xff]
      %v2496 = vld [vmem:[#allocation2 + $0x168] sm:$0xff]
      %v2497 = vld [vmem:[#allocation2 + $0x170] sm:$0xff]
      %v2498 = vld [vmem:[#allocation2 + $0x178] sm:$0xff]
      %v2499 = vld [vmem:[%s927] sm:$0xff]
      %v2500 = vld [vmem:[%s927 + $0x8] sm:$0xff]
      %v2501 = vld [vmem:[%s927 + $0x10] sm:$0xff]
      %v2502 = vld [vmem:[%s927 + $0x18] sm:$0xff]
      %v2503 = vld [vmem:[%s927 + $0x20] sm:$0xff]
      %v2504 = vld [vmem:[%s927 + $0x28] sm:$0xff]
      %v2505 = vld [vmem:[%s927 + $0x30] sm:$0xff]
      %v2506 = vld [vmem:[%s927 + $0x38] sm:$0xff]
      %v2507 = vld [vmem:[%s927 + $0x40] sm:$0xff]
      %v2508 = vld [vmem:[%s927 + $0x48] sm:$0xff]
      %v2509 = vld [vmem:[%s927 + $0x50] sm:$0xff]
      %v2510 = vld [vmem:[%s927 + $0x58] sm:$0xff]
      %v2511 = vld [vmem:[%s927 + $0x60] sm:$0xff]
      %v2512 = vld [vmem:[%s927 + $0x68] sm:$0xff]
      %v2513 = vld [vmem:[%s927 + $0x70] sm:$0xff]
      %v2514 = vld [vmem:[%s927 + $0x78] sm:$0xff]
      %v2515 = vld [vmem:[%s927 + $0x80] sm:$0xff]
      %v2516 = vld [vmem:[%s927 + $0x88] sm:$0xff]
      %v2517 = vld [vmem:[%s927 + $0x90] sm:$0xff]
      %v2518 = vld [vmem:[%s927 + $0x98] sm:$0xff]
      %v2519 = vld [vmem:[%s927 + $0xa0] sm:$0xff]
      %v2520 = vld [vmem:[%s927 + $0xa8] sm:$0xff]
      %v2521 = vld [vmem:[%s927 + $0xb0] sm:$0xff]
      %v2522 = vld [vmem:[%s927 + $0xb8] sm:$0xff]
      %v2523 = vld [vmem:[%s927 + $0xc0] sm:$0xff]
      %v2524 = vld [vmem:[%s927 + $0xc8] sm:$0xff]
      %v2525 = vld [vmem:[%s927 + $0xd0] sm:$0xff]
      %v2526 = vld [vmem:[%s927 + $0xd8] sm:$0xff]
      %v2527 = vld [vmem:[%s927 + $0xe0] sm:$0xff]
      %v2528 = vld [vmem:[%s927 + $0xe8] sm:$0xff]
      %v2529 = vld [vmem:[%s927 + $0xf0] sm:$0xff]
      %v2530 = vld [vmem:[%s927 + $0xf8] sm:$0xff]
      %v2531 = vld [vmem:[%s927 + $0x100] sm:$0xff]
      %v2532 = vld [vmem:[%s927 + $0x108] sm:$0xff]
      %v2533 = vld [vmem:[%s927 + $0x110] sm:$0xff]
      %v2534 = vld [vmem:[%s927 + $0x118] sm:$0xff]
      %v2535 = vld [vmem:[%s927 + $0x120] sm:$0xff]
      %v2536 = vld [vmem:[%s927 + $0x128] sm:$0xff]
      %v2537 = vld [vmem:[%s927 + $0x130] sm:$0xff]
      %v2538 = vld [vmem:[%s927 + $0x138] sm:$0xff]
      %v2539 = vld [vmem:[%s927 + $0x140] sm:$0xff]
      %v2540 = vld [vmem:[%s927 + $0x148] sm:$0xff]
      %v2541 = vld [vmem:[%s927 + $0x150] sm:$0xff]
      %v2542 = vld [vmem:[%s927 + $0x158] sm:$0xff]
      %v2543 = vld [vmem:[%s927 + $0x160] sm:$0xff]
      %v2544 = vld [vmem:[%s927 + $0x168] sm:$0xff]
      %v2545 = vld [vmem:[%s927 + $0x170] sm:$0xff]
      %v2546 = vld [vmem:[%s927 + $0x178] sm:$0xff]
      %v2547 = vmax.f32 %v2451, %v2499
      %v2548 = vmax.f32 %v2452, %v2500
      %v2549 = vmax.f32 %v2453, %v2501
      %v2550 = vmax.f32 %v2454, %v2502
      %v2551 = vmax.f32 %v2455, %v2503
      %v2552 = vmax.f32 %v2456, %v2504
      %v2553 = vmax.f32 %v2457, %v2505
      %v2554 = vmax.f32 %v2458, %v2506
      %v2555 = vmax.f32 %v2459, %v2507
      %v2556 = vmax.f32 %v2460, %v2508
      %v2557 = vmax.f32 %v2461, %v2509
      %v2558 = vmax.f32 %v2462, %v2510
      %v2559 = vmax.f32 %v2463, %v2511
      %v2560 = vmax.f32 %v2464, %v2512
      %v2561 = vmax.f32 %v2465, %v2513
      %v2562 = vmax.f32 %v2466, %v2514
      %v2563 = vmax.f32 %v2467, %v2515
      %v2564 = vmax.f32 %v2468, %v2516
      %v2565 = vmax.f32 %v2469, %v2517
      %v2566 = vmax.f32 %v2470, %v2518
      %v2567 = vmax.f32 %v2471, %v2519
      %v2568 = vmax.f32 %v2472, %v2520
      %v2569 = vmax.f32 %v2473, %v2521
      %v2570 = vmax.f32 %v2474, %v2522
      %v2571 = vmax.f32 %v2475, %v2523
      %v2572 = vmax.f32 %v2476, %v2524
      %v2573 = vmax.f32 %v2477, %v2525
      %v2574 = vmax.f32 %v2478, %v2526
      %v2575 = vmax.f32 %v2479, %v2527
      %v2576 = vmax.f32 %v2480, %v2528
      %v2577 = vmax.f32 %v2481, %v2529
      %v2578 = vmax.f32 %v2482, %v2530
      %v2579 = vmax.f32 %v2483, %v2531
      %v2580 = vmax.f32 %v2484, %v2532
      %v2581 = vmax.f32 %v2485, %v2533
      %v2582 = vmax.f32 %v2486, %v2534
      %v2583 = vmax.f32 %v2487, %v2535
      %v2584 = vmax.f32 %v2488, %v2536
      %v2585 = vmax.f32 %v2489, %v2537
      %v2586 = vmax.f32 %v2490, %v2538
      %v2587 = vmax.f32 %v2491, %v2539
      %v2588 = vmax.f32 %v2492, %v2540
      %v2589 = vmax.f32 %v2493, %v2541
      %v2590 = vmax.f32 %v2494, %v2542
      %v2591 = vmax.f32 %v2495, %v2543
      %v2592 = vmax.f32 %v2496, %v2544
      %v2593 = vmax.f32 %v2497, %v2545
      %v2594 = vmax.f32 %v2498, %v2546
      %v2595 = vld [vmem:[%s239] sm:$0xff]
      %v2596 = vld [vmem:[%s239 + $0x8] sm:$0xff]
      %v2597 = vld [vmem:[%s239 + $0x10] sm:$0xff]
      %v2598 = vld [vmem:[%s239 + $0x18] sm:$0xff]
      %v2599 = vld [vmem:[%s239 + $0x20] sm:$0xff]
      %v2600 = vld [vmem:[%s239 + $0x28] sm:$0xff]
      %v2601 = vld [vmem:[%s239 + $0x30] sm:$0xff]
      %v2602 = vld [vmem:[%s239 + $0x38] sm:$0xff]
      %v2603 = vld [vmem:[%s239 + $0x40] sm:$0xff]
      %v2604 = vld [vmem:[%s239 + $0x48] sm:$0xff]
      %v2605 = vld [vmem:[%s239 + $0x50] sm:$0xff]
      %v2606 = vld [vmem:[%s239 + $0x58] sm:$0xff]
      %v2607 = vld [vmem:[%s239 + $0x60] sm:$0xff]
      %v2608 = vld [vmem:[%s239 + $0x68] sm:$0xff]
      %v2609 = vld [vmem:[%s239 + $0x70] sm:$0xff]
      %v2610 = vld [vmem:[%s239 + $0x78] sm:$0xff]
      %v2611 = vld [vmem:[%s239 + $0x80] sm:$0xff]
      %v2612 = vld [vmem:[%s239 + $0x88] sm:$0xff]
      %v2613 = vld [vmem:[%s239 + $0x90] sm:$0xff]
      %v2614 = vld [vmem:[%s239 + $0x98] sm:$0xff]
      %v2615 = vld [vmem:[%s239 + $0xa0] sm:$0xff]
      %v2616 = vld [vmem:[%s239 + $0xa8] sm:$0xff]
      %v2617 = vld [vmem:[%s239 + $0xb0] sm:$0xff]
      %v2618 = vld [vmem:[%s239 + $0xb8] sm:$0xff]
      %v2619 = vld [vmem:[%s239 + $0xc0] sm:$0xff]
      %v2620 = vld [vmem:[%s239 + $0xc8] sm:$0xff]
      %v2621 = vld [vmem:[%s239 + $0xd0] sm:$0xff]
      %v2622 = vld [vmem:[%s239 + $0xd8] sm:$0xff]
      %v2623 = vld [vmem:[%s239 + $0xe0] sm:$0xff]
      %v2624 = vld [vmem:[%s239 + $0xe8] sm:$0xff]
      %v2625 = vld [vmem:[%s239 + $0xf0] sm:$0xff]
      %v2626 = vld [vmem:[%s239 + $0xf8] sm:$0xff]
      %v2627 = vld [vmem:[%s239 + $0x100] sm:$0xff]
      %v2628 = vld [vmem:[%s239 + $0x108] sm:$0xff]
      %v2629 = vld [vmem:[%s239 + $0x110] sm:$0xff]
      %v2630 = vld [vmem:[%s239 + $0x118] sm:$0xff]
      %v2631 = vld [vmem:[%s239 + $0x120] sm:$0xff]
      %v2632 = vld [vmem:[%s239 + $0x128] sm:$0xff]
      %v2633 = vld [vmem:[%s239 + $0x130] sm:$0xff]
      %v2634 = vld [vmem:[%s239 + $0x138] sm:$0xff]
      %v2635 = vld [vmem:[%s239 + $0x140] sm:$0xff]
      %v2636 = vld [vmem:[%s239 + $0x148] sm:$0xff]
      %v2637 = vld [vmem:[%s239 + $0x150] sm:$0xff]
      %v2638 = vld [vmem:[%s239 + $0x158] sm:$0xff]
      %v2639 = vld [vmem:[%s239 + $0x160] sm:$0xff]
      %v2640 = vld [vmem:[%s239 + $0x168] sm:$0xff]
      %v2641 = vld [vmem:[%s239 + $0x170] sm:$0xff]
      %v2642 = vld [vmem:[%s239 + $0x178] sm:$0xff]
      %v2643 = vmax.f32 %v2547, %v2595
      %v2644 = vmax.f32 %v2548, %v2596
      %v2645 = vmax.f32 %v2549, %v2597
      %v2646 = vmax.f32 %v2550, %v2598
      %v2647 = vmax.f32 %v2551, %v2599
      %v2648 = vmax.f32 %v2552, %v2600
      %v2649 = vmax.f32 %v2553, %v2601
      %v2650 = vmax.f32 %v2554, %v2602
      %v2651 = vmax.f32 %v2555, %v2603
      %v2652 = vmax.f32 %v2556, %v2604
      %v2653 = vmax.f32 %v2557, %v2605
      %v2654 = vmax.f32 %v2558, %v2606
      %v2655 = vmax.f32 %v2559, %v2607
      %v2656 = vmax.f32 %v2560, %v2608
      %v2657 = vmax.f32 %v2561, %v2609
      %v2658 = vmax.f32 %v2562, %v2610
      %v2659 = vmax.f32 %v2563, %v2611
      %v2660 = vmax.f32 %v2564, %v2612
      %v2661 = vmax.f32 %v2565, %v2613
      %v2662 = vmax.f32 %v2566, %v2614
      %v2663 = vmax.f32 %v2567, %v2615
      %v2664 = vmax.f32 %v2568, %v2616
      %v2665 = vmax.f32 %v2569, %v2617
      %v2666 = vmax.f32 %v2570, %v2618
      %v2667 = vmax.f32 %v2571, %v2619
      %v2668 = vmax.f32 %v2572, %v2620
      %v2669 = vmax.f32 %v2573, %v2621
      %v2670 = vmax.f32 %v2574, %v2622
      %v2671 = vmax.f32 %v2575, %v2623
      %v2672 = vmax.f32 %v2576, %v2624
      %v2673 = vmax.f32 %v2577, %v2625
      %v2674 = vmax.f32 %v2578, %v2626
      %v2675 = vmax.f32 %v2579, %v2627
      %v2676 = vmax.f32 %v2580, %v2628
      %v2677 = vmax.f32 %v2581, %v2629
      %v2678 = vmax.f32 %v2582, %v2630
      %v2679 = vmax.f32 %v2583, %v2631
      %v2680 = vmax.f32 %v2584, %v2632
      %v2681 = vmax.f32 %v2585, %v2633
      %v2682 = vmax.f32 %v2586, %v2634
      %v2683 = vmax.f32 %v2587, %v2635
      %v2684 = vmax.f32 %v2588, %v2636
      %v2685 = vmax.f32 %v2589, %v2637
      %v2686 = vmax.f32 %v2590, %v2638
      %v2687 = vmax.f32 %v2591, %v2639
      %v2688 = vmax.f32 %v2592, %v2640
      %v2689 = vmax.f32 %v2593, %v2641
      %v2690 = vmax.f32 %v2594, %v2642
      %v2691 = vld [vmem:[%s1120] sm:$0xff]
      %v2692 = vld [vmem:[%s1120 + $0x8] sm:$0xff]
      %v2693 = vld [vmem:[%s1120 + $0x10] sm:$0xff]
      %v2694 = vld [vmem:[%s1120 + $0x18] sm:$0xff]
      %v2695 = vld [vmem:[%s1120 + $0x20] sm:$0xff]
      %v2696 = vld [vmem:[%s1120 + $0x28] sm:$0xff]
      %v2697 = vld [vmem:[%s1120 + $0x30] sm:$0xff]
      %v2698 = vld [vmem:[%s1120 + $0x38] sm:$0xff]
      %v2699 = vld [vmem:[%s1120 + $0x40] sm:$0xff]
      %v2700 = vld [vmem:[%s1120 + $0x48] sm:$0xff]
      %v2701 = vld [vmem:[%s1120 + $0x50] sm:$0xff]
      %v2702 = vld [vmem:[%s1120 + $0x58] sm:$0xff]
      %v2703 = vld [vmem:[%s1120 + $0x60] sm:$0xff]
      %v2704 = vld [vmem:[%s1120 + $0x68] sm:$0xff]
      %v2705 = vld [vmem:[%s1120 + $0x70] sm:$0xff]
      %v2706 = vld [vmem:[%s1120 + $0x78] sm:$0xff]
      %v2707 = vld [vmem:[%s1120 + $0x80] sm:$0xff]
      %v2708 = vld [vmem:[%s1120 + $0x88] sm:$0xff]
      %v2709 = vld [vmem:[%s1120 + $0x90] sm:$0xff]
      %v2710 = vld [vmem:[%s1120 + $0x98] sm:$0xff]
      %v2711 = vld [vmem:[%s1120 + $0xa0] sm:$0xff]
      %v2712 = vld [vmem:[%s1120 + $0xa8] sm:$0xff]
      %v2713 = vld [vmem:[%s1120 + $0xb0] sm:$0xff]
      %v2714 = vld [vmem:[%s1120 + $0xb8] sm:$0xff]
      %v2715 = vld [vmem:[%s1120 + $0xc0] sm:$0xff]
      %v2716 = vld [vmem:[%s1120 + $0xc8] sm:$0xff]
      %v2717 = vld [vmem:[%s1120 + $0xd0] sm:$0xff]
      %v2718 = vld [vmem:[%s1120 + $0xd8] sm:$0xff]
      %v2719 = vld [vmem:[%s1120 + $0xe0] sm:$0xff]
      %v2720 = vld [vmem:[%s1120 + $0xe8] sm:$0xff]
      %v2721 = vld [vmem:[%s1120 + $0xf0] sm:$0xff]
      %v2722 = vld [vmem:[%s1120 + $0xf8] sm:$0xff]
      %v2723 = vld [vmem:[%s1120 + $0x100] sm:$0xff]
      %v2724 = vld [vmem:[%s1120 + $0x108] sm:$0xff]
      %v2725 = vld [vmem:[%s1120 + $0x110] sm:$0xff]
      %v2726 = vld [vmem:[%s1120 + $0x118] sm:$0xff]
      %v2727 = vld [vmem:[%s1120 + $0x120] sm:$0xff]
      %v2728 = vld [vmem:[%s1120 + $0x128] sm:$0xff]
      %v2729 = vld [vmem:[%s1120 + $0x130] sm:$0xff]
      %v2730 = vld [vmem:[%s1120 + $0x138] sm:$0xff]
      %v2731 = vld [vmem:[%s1120 + $0x140] sm:$0xff]
      %v2732 = vld [vmem:[%s1120 + $0x148] sm:$0xff]
      %v2733 = vld [vmem:[%s1120 + $0x150] sm:$0xff]
      %v2734 = vld [vmem:[%s1120 + $0x158] sm:$0xff]
      %v2735 = vld [vmem:[%s1120 + $0x160] sm:$0xff]
      %v2736 = vld [vmem:[%s1120 + $0x168] sm:$0xff]
      %v2737 = vld [vmem:[%s1120 + $0x170] sm:$0xff]
      %v2738 = vld [vmem:[%s1120 + $0x178] sm:$0xff]
      %v2739 = vmax.f32 %v2643, %v2691
      %v2740 = vmax.f32 %v2644, %v2692
      %v2741 = vmax.f32 %v2645, %v2693
      %v2742 = vmax.f32 %v2646, %v2694
      %v2743 = vmax.f32 %v2647, %v2695
      %v2744 = vmax.f32 %v2648, %v2696
      %v2745 = vmax.f32 %v2649, %v2697
      %v2746 = vmax.f32 %v2650, %v2698
      %v2747 = vmax.f32 %v2651, %v2699
      %v2748 = vmax.f32 %v2652, %v2700
      %v2749 = vmax.f32 %v2653, %v2701
      %v2750 = vmax.f32 %v2654, %v2702
      %v2751 = vmax.f32 %v2655, %v2703
      %v2752 = vmax.f32 %v2656, %v2704
      %v2753 = vmax.f32 %v2657, %v2705
      %v2754 = vmax.f32 %v2658, %v2706
      %v2755 = vmax.f32 %v2659, %v2707
      %v2756 = vmax.f32 %v2660, %v2708
      %v2757 = vmax.f32 %v2661, %v2709
      %v2758 = vmax.f32 %v2662, %v2710
      %v2759 = vmax.f32 %v2663, %v2711
      %v2760 = vmax.f32 %v2664, %v2712
      %v2761 = vmax.f32 %v2665, %v2713
      %v2762 = vmax.f32 %v2666, %v2714
      %v2763 = vmax.f32 %v2667, %v2715
      %v2764 = vmax.f32 %v2668, %v2716
      %v2765 = vmax.f32 %v2669, %v2717
      %v2766 = vmax.f32 %v2670, %v2718
      %v2767 = vmax.f32 %v2671, %v2719
      %v2768 = vmax.f32 %v2672, %v2720
      %v2769 = vmax.f32 %v2673, %v2721
      %v2770 = vmax.f32 %v2674, %v2722
      %v2771 = vmax.f32 %v2675, %v2723
      %v2772 = vmax.f32 %v2676, %v2724
      %v2773 = vmax.f32 %v2677, %v2725
      %v2774 = vmax.f32 %v2678, %v2726
      %v2775 = vmax.f32 %v2679, %v2727
      %v2776 = vmax.f32 %v2680, %v2728
      %v2777 = vmax.f32 %v2681, %v2729
      %v2778 = vmax.f32 %v2682, %v2730
      %v2779 = vmax.f32 %v2683, %v2731
      %v2780 = vmax.f32 %v2684, %v2732
      %v2781 = vmax.f32 %v2685, %v2733
      %v2782 = vmax.f32 %v2686, %v2734
      %v2783 = vmax.f32 %v2687, %v2735
      %v2784 = vmax.f32 %v2688, %v2736
      %v2785 = vmax.f32 %v2689, %v2737
      %v2786 = vmax.f32 %v2690, %v2738
      %v2787 = vld [vmem:[%s1217] sm:$0xff]
      %v2788 = vld [vmem:[%s1217 + $0x8] sm:$0xff]
      %v2789 = vld [vmem:[%s1217 + $0x10] sm:$0xff]
      %v2790 = vld [vmem:[%s1217 + $0x18] sm:$0xff]
      %v2791 = vld [vmem:[%s1217 + $0x20] sm:$0xff]
      %v2792 = vld [vmem:[%s1217 + $0x28] sm:$0xff]
      %v2793 = vld [vmem:[%s1217 + $0x30] sm:$0xff]
      %v2794 = vld [vmem:[%s1217 + $0x38] sm:$0xff]
      %v2795 = vld [vmem:[%s1217 + $0x40] sm:$0xff]
      %v2796 = vld [vmem:[%s1217 + $0x48] sm:$0xff]
      %v2797 = vld [vmem:[%s1217 + $0x50] sm:$0xff]
      %v2798 = vld [vmem:[%s1217 + $0x58] sm:$0xff]
      %v2799 = vld [vmem:[%s1217 + $0x60] sm:$0xff]
      %v2800 = vld [vmem:[%s1217 + $0x68] sm:$0xff]
      %v2801 = vld [vmem:[%s1217 + $0x70] sm:$0xff]
      %v2802 = vld [vmem:[%s1217 + $0x78] sm:$0xff]
      %v2803 = vld [vmem:[%s1217 + $0x80] sm:$0xff]
      %v2804 = vld [vmem:[%s1217 + $0x88] sm:$0xff]
      %v2805 = vld [vmem:[%s1217 + $0x90] sm:$0xff]
      %v2806 = vld [vmem:[%s1217 + $0x98] sm:$0xff]
      %v2807 = vld [vmem:[%s1217 + $0xa0] sm:$0xff]
      %v2808 = vld [vmem:[%s1217 + $0xa8] sm:$0xff]
      %v2809 = vld [vmem:[%s1217 + $0xb0] sm:$0xff]
      %v2810 = vld [vmem:[%s1217 + $0xb8] sm:$0xff]
      %v2811 = vld [vmem:[%s1217 + $0xc0] sm:$0xff]
      %v2812 = vld [vmem:[%s1217 + $0xc8] sm:$0xff]
      %v2813 = vld [vmem:[%s1217 + $0xd0] sm:$0xff]
      %v2814 = vld [vmem:[%s1217 + $0xd8] sm:$0xff]
      %v2815 = vld [vmem:[%s1217 + $0xe0] sm:$0xff]
      %v2816 = vld [vmem:[%s1217 + $0xe8] sm:$0xff]
      %v2817 = vld [vmem:[%s1217 + $0xf0] sm:$0xff]
      %v2818 = vld [vmem:[%s1217 + $0xf8] sm:$0xff]
      %v2819 = vld [vmem:[%s1217 + $0x100] sm:$0xff]
      %v2820 = vld [vmem:[%s1217 + $0x108] sm:$0xff]
      %v2821 = vld [vmem:[%s1217 + $0x110] sm:$0xff]
      %v2822 = vld [vmem:[%s1217 + $0x118] sm:$0xff]
      %v2823 = vld [vmem:[%s1217 + $0x120] sm:$0xff]
      %v2824 = vld [vmem:[%s1217 + $0x128] sm:$0xff]
      %v2825 = vld [vmem:[%s1217 + $0x130] sm:$0xff]
      %v2826 = vld [vmem:[%s1217 + $0x138] sm:$0xff]
      %v2827 = vld [vmem:[%s1217 + $0x140] sm:$0xff]
      %v2828 = vld [vmem:[%s1217 + $0x148] sm:$0xff]
      %v2829 = vld [vmem:[%s1217 + $0x150] sm:$0xff]
      %v2830 = vld [vmem:[%s1217 + $0x158] sm:$0xff]
      %v2831 = vld [vmem:[%s1217 + $0x160] sm:$0xff]
      %v2832 = vld [vmem:[%s1217 + $0x168] sm:$0xff]
      %v2833 = vld [vmem:[%s1217 + $0x170] sm:$0xff]
      %v2834 = vld [vmem:[%s1217 + $0x178] sm:$0xff]
      %v2835 = vmax.f32 %v2739, %v2787
      %v2836 = vmax.f32 %v2740, %v2788
      %v2837 = vmax.f32 %v2741, %v2789
      %v2838 = vmax.f32 %v2742, %v2790
      %v2839 = vmax.f32 %v2743, %v2791
      %v2840 = vmax.f32 %v2744, %v2792
      %v2841 = vmax.f32 %v2745, %v2793
      %v2842 = vmax.f32 %v2746, %v2794
      %v2843 = vmax.f32 %v2747, %v2795
      %v2844 = vmax.f32 %v2748, %v2796
      %v2845 = vmax.f32 %v2749, %v2797
      %v2846 = vmax.f32 %v2750, %v2798
      %v2847 = vmax.f32 %v2751, %v2799
      %v2848 = vmax.f32 %v2752, %v2800
      %v2849 = vmax.f32 %v2753, %v2801
      %v2850 = vmax.f32 %v2754, %v2802
      %v2851 = vmax.f32 %v2755, %v2803
      %v2852 = vmax.f32 %v2756, %v2804
      %v2853 = vmax.f32 %v2757, %v2805
      %v2854 = vmax.f32 %v2758, %v2806
      %v2855 = vmax.f32 %v2759, %v2807
      %v2856 = vmax.f32 %v2760, %v2808
      %v2857 = vmax.f32 %v2761, %v2809
      %v2858 = vmax.f32 %v2762, %v2810
      %v2859 = vmax.f32 %v2763, %v2811
      %v2860 = vmax.f32 %v2764, %v2812
      %v2861 = vmax.f32 %v2765, %v2813
      %v2862 = vmax.f32 %v2766, %v2814
      %v2863 = vmax.f32 %v2767, %v2815
      %v2864 = vmax.f32 %v2768, %v2816
      %v2865 = vmax.f32 %v2769, %v2817
      %v2866 = vmax.f32 %v2770, %v2818
      %v2867 = vmax.f32 %v2771, %v2819
      %v2868 = vmax.f32 %v2772, %v2820
      %v2869 = vmax.f32 %v2773, %v2821
      %v2870 = vmax.f32 %v2774, %v2822
      %v2871 = vmax.f32 %v2775, %v2823
      %v2872 = vmax.f32 %v2776, %v2824
      %v2873 = vmax.f32 %v2777, %v2825
      %v2874 = vmax.f32 %v2778, %v2826
      %v2875 = vmax.f32 %v2779, %v2827
      %v2876 = vmax.f32 %v2780, %v2828
      %v2877 = vmax.f32 %v2781, %v2829
      %v2878 = vmax.f32 %v2782, %v2830
      %v2879 = vmax.f32 %v2783, %v2831
      %v2880 = vmax.f32 %v2784, %v2832
      %v2881 = vmax.f32 %v2785, %v2833
      %v2882 = vmax.f32 %v2786, %v2834
      %v2883 = vrot.slane %v2835, 7
      %v2884 = vrot.slane %v2838, 7
      %v2885 = vrot.slane %v2841, 7
      %v2886 = vrot.slane %v2844, 7
      %v2887 = vrot.slane %v2847, 7
      %v2888 = vrot.slane %v2850, 7
      %v2889 = vrot.slane %v2853, 7
      %v2890 = vrot.slane %v2856, 7
      %v2891 = vrot.slane %v2859, 7
      %v2892 = vrot.slane %v2862, 7
      %v2893 = vrot.slane %v2865, 7
      %v2894 = vrot.slane %v2868, 7
      %v2895 = vrot.slane %v2871, 7
      %v2896 = vrot.slane %v2874, 7
      %v2897 = vrot.slane %v2877, 7
      %v2898 = vrot.slane %v2880, 7
      %v2899 = vrot.slane %v2836, 7
      %v2900 = vrot.slane %v2839, 7
      %v2901 = vrot.slane %v2842, 7
      %v2902 = vrot.slane %v2845, 7
      %v2903 = vrot.slane %v2848, 7
      %v2904 = vrot.slane %v2851, 7
      %v2905 = vrot.slane %v2854, 7
      %v2906 = vrot.slane %v2857, 7
      %v2907 = vrot.slane %v2860, 7
      %v2908 = vrot.slane %v2863, 7
      %v2909 = vrot.slane %v2866, 7
      %v2910 = vrot.slane %v2869, 7
      %v2911 = vrot.slane %v2872, 7
      %v2912 = vrot.slane %v2875, 7
      %v2913 = vrot.slane %v2878, 7
      %v2914 = vrot.slane %v2881, 7
      %v2915 = vrot.slane %v2837, 7
      %v2916 = vrot.slane %v2840, 7
      %v2917 = vrot.slane %v2843, 7
      %v2918 = vrot.slane %v2846, 7
      %v2919 = vrot.slane %v2849, 7
      %v2920 = vrot.slane %v2852, 7
      %v2921 = vrot.slane %v2855, 7
      %v2922 = vrot.slane %v2858, 7
      %v2923 = vrot.slane %v2861, 7
      %v2924 = vrot.slane %v2864, 7
      %v2925 = vrot.slane %v2867, 7
      %v2926 = vrot.slane %v2870, 7
      %v2927 = vrot.slane %v2873, 7
      %v2928 = vrot.slane %v2876, 7
      %v2929 = vrot.slane %v2879, 7
      %v2930 = vrot.slane %v2882, 7
      %v2931 = vsel %vm1364, %v2883, %v2899
      %v2932 = vsel %vm1364, %v2884, %v2900
      %v2933 = vsel %vm1364, %v2885, %v2901
      %v2934 = vsel %vm1364, %v2886, %v2902
      %v2935 = vsel %vm1364, %v2887, %v2903
      %v2936 = vsel %vm1364, %v2888, %v2904
      %v2937 = vsel %vm1364, %v2889, %v2905
      %v2938 = vsel %vm1364, %v2890, %v2906
      %v2939 = vsel %vm1364, %v2891, %v2907
      %v2940 = vsel %vm1364, %v2892, %v2908
      %v2941 = vsel %vm1364, %v2893, %v2909
      %v2942 = vsel %vm1364, %v2894, %v2910
      %v2943 = vsel %vm1364, %v2895, %v2911
      %v2944 = vsel %vm1364, %v2896, %v2912
      %v2945 = vsel %vm1364, %v2897, %v2913
      %v2946 = vsel %vm1364, %v2898, %v2914
      %v2947 = vsel %vm1364, %v2915, %v2883
      %v2948 = vsel %vm1364, %v2916, %v2884
      %v2949 = vsel %vm1364, %v2917, %v2885
      %v2950 = vsel %vm1364, %v2918, %v2886
      %v2951 = vsel %vm1364, %v2919, %v2887
      %v2952 = vsel %vm1364, %v2920, %v2888
      %v2953 = vsel %vm1364, %v2921, %v2889
      %v2954 = vsel %vm1364, %v2922, %v2890
      %v2955 = vsel %vm1364, %v2923, %v2891
      %v2956 = vsel %vm1364, %v2924, %v2892
      %v2957 = vsel %vm1364, %v2925, %v2893
      %v2958 = vsel %vm1364, %v2926, %v2894
      %v2959 = vsel %vm1364, %v2927, %v2895
      %v2960 = vsel %vm1364, %v2928, %v2896
      %v2961 = vsel %vm1364, %v2929, %v2897
      %v2962 = vsel %vm1364, %v2930, %v2898
      %v2963 = vmax.f32 %v2835, %v2947
      %v2964 = vmax.f32 %v2836, %v2931
      %v2965 = vmax.f32 %v2838, %v2948
      %v2966 = vmax.f32 %v2839, %v2932
      %v2967 = vmax.f32 %v2841, %v2949
      %v2968 = vmax.f32 %v2842, %v2933
      %v2969 = vmax.f32 %v2844, %v2950
      %v2970 = vmax.f32 %v2845, %v2934
      %v2971 = vmax.f32 %v2847, %v2951
      %v2972 = vmax.f32 %v2848, %v2935
      %v2973 = vmax.f32 %v2850, %v2952
      %v2974 = vmax.f32 %v2851, %v2936
      %v2975 = vmax.f32 %v2853, %v2953
      %v2976 = vmax.f32 %v2854, %v2937
      %v2977 = vmax.f32 %v2856, %v2954
      %v2978 = vmax.f32 %v2857, %v2938
      %v2979 = vmax.f32 %v2859, %v2955
      %v2980 = vmax.f32 %v2860, %v2939
      %v2981 = vmax.f32 %v2862, %v2956
      %v2982 = vmax.f32 %v2863, %v2940
      %v2983 = vmax.f32 %v2865, %v2957
      %v2984 = vmax.f32 %v2866, %v2941
      %v2985 = vmax.f32 %v2868, %v2958
      %v2986 = vmax.f32 %v2869, %v2942
      %v2987 = vmax.f32 %v2871, %v2959
      %v2988 = vmax.f32 %v2872, %v2943
      %v2989 = vmax.f32 %v2874, %v2960
      %v2990 = vmax.f32 %v2875, %v2944
      %v2991 = vmax.f32 %v2877, %v2961
      %v2992 = vmax.f32 %v2878, %v2945
      %v2993 = vmax.f32 %v2880, %v2962
      %v2994 = vmax.f32 %v2881, %v2946
      %v2995 = vrot.slane %v2835, 1
      %v2996 = vrot.slane %v2838, 1
      %v2997 = vrot.slane %v2841, 1
      %v2998 = vrot.slane %v2844, 1
      %v2999 = vrot.slane %v2847, 1
      %v3000 = vrot.slane %v2850, 1
      %v3001 = vrot.slane %v2853, 1
      %v3002 = vrot.slane %v2856, 1
      %v3003 = vrot.slane %v2859, 1
      %v3004 = vrot.slane %v2862, 1
      %v3005 = vrot.slane %v2865, 1
      %v3006 = vrot.slane %v2868, 1
      %v3007 = vrot.slane %v2871, 1
      %v3008 = vrot.slane %v2874, 1
      %v3009 = vrot.slane %v2877, 1
      %v3010 = vrot.slane %v2880, 1
      %v3011 = vrot.slane %v2836, 1
      %v3012 = vrot.slane %v2839, 1
      %v3013 = vrot.slane %v2842, 1
      %v3014 = vrot.slane %v2845, 1
      %v3015 = vrot.slane %v2848, 1
      %v3016 = vrot.slane %v2851, 1
      %v3017 = vrot.slane %v2854, 1
      %v3018 = vrot.slane %v2857, 1
      %v3019 = vrot.slane %v2860, 1
      %v3020 = vrot.slane %v2863, 1
      %v3021 = vrot.slane %v2866, 1
      %v3022 = vrot.slane %v2869, 1
      %v3023 = vrot.slane %v2872, 1
      %v3024 = vrot.slane %v2875, 1
      %v3025 = vrot.slane %v2878, 1
      %v3026 = vrot.slane %v2881, 1
      %v3027 = vrot.slane %v2837, 1
      %v3028 = vrot.slane %v2840, 1
      %v3029 = vrot.slane %v2843, 1
      %v3030 = vrot.slane %v2846, 1
      %v3031 = vrot.slane %v2849, 1
      %v3032 = vrot.slane %v2852, 1
      %v3033 = vrot.slane %v2855, 1
      %v3034 = vrot.slane %v2858, 1
      %v3035 = vrot.slane %v2861, 1
      %v3036 = vrot.slane %v2864, 1
      %v3037 = vrot.slane %v2867, 1
      %v3038 = vrot.slane %v2870, 1
      %v3039 = vrot.slane %v2873, 1
      %v3040 = vrot.slane %v2876, 1
      %v3041 = vrot.slane %v2879, 1
      %v3042 = vrot.slane %v2882, 1
      %v3043 = vsel %vm1477, %v3011, %v3027
      %v3044 = vsel %vm1477, %v3012, %v3028
      %v3045 = vsel %vm1477, %v3013, %v3029
      %v3046 = vsel %vm1477, %v3014, %v3030
      %v3047 = vsel %vm1477, %v3015, %v3031
      %v3048 = vsel %vm1477, %v3016, %v3032
      %v3049 = vsel %vm1477, %v3017, %v3033
      %v3050 = vsel %vm1477, %v3018, %v3034
      %v3051 = vsel %vm1477, %v3019, %v3035
      %v3052 = vsel %vm1477, %v3020, %v3036
      %v3053 = vsel %vm1477, %v3021, %v3037
      %v3054 = vsel %vm1477, %v3022, %v3038
      %v3055 = vsel %vm1477, %v3023, %v3039
      %v3056 = vsel %vm1477, %v3024, %v3040
      %v3057 = vsel %vm1477, %v3025, %v3041
      %v3058 = vsel %vm1477, %v3026, %v3042
      %v3059 = vsel %vm1477, %v2995, %v3011
      %v3060 = vsel %vm1477, %v2996, %v3012
      %v3061 = vsel %vm1477, %v2997, %v3013
      %v3062 = vsel %vm1477, %v2998, %v3014
      %v3063 = vsel %vm1477, %v2999, %v3015
      %v3064 = vsel %vm1477, %v3000, %v3016
      %v3065 = vsel %vm1477, %v3001, %v3017
      %v3066 = vsel %vm1477, %v3002, %v3018
      %v3067 = vsel %vm1477, %v3003, %v3019
      %v3068 = vsel %vm1477, %v3004, %v3020
      %v3069 = vsel %vm1477, %v3005, %v3021
      %v3070 = vsel %vm1477, %v3006, %v3022
      %v3071 = vsel %vm1477, %v3007, %v3023
      %v3072 = vsel %vm1477, %v3008, %v3024
      %v3073 = vsel %vm1477, %v3009, %v3025
      %v3074 = vsel %vm1477, %v3010, %v3026
      %v3075 = vmax.f32 %v2963, %v3059
      %v3076 = vmax.f32 %v2964, %v3043
      %v3077 = vmax.f32 %v2965, %v3060
      %v3078 = vmax.f32 %v2966, %v3044
      %v3079 = vmax.f32 %v2967, %v3061
      %v3080 = vmax.f32 %v2968, %v3045
      %v3081 = vmax.f32 %v2969, %v3062
      %v3082 = vmax.f32 %v2970, %v3046
      %v3083 = vmax.f32 %v2971, %v3063
      %v3084 = vmax.f32 %v2972, %v3047
      %v3085 = vmax.f32 %v2973, %v3064
      %v3086 = vmax.f32 %v2974, %v3048
      %v3087 = vmax.f32 %v2975, %v3065
      %v3088 = vmax.f32 %v2976, %v3049
      %v3089 = vmax.f32 %v2977, %v3066
      %v3090 = vmax.f32 %v2978, %v3050
      %v3091 = vmax.f32 %v2979, %v3067
      %v3092 = vmax.f32 %v2980, %v3051
      %v3093 = vmax.f32 %v2981, %v3068
      %v3094 = vmax.f32 %v2982, %v3052
      %v3095 = vmax.f32 %v2983, %v3069
      %v3096 = vmax.f32 %v2984, %v3053
      %v3097 = vmax.f32 %v2985, %v3070
      %v3098 = vmax.f32 %v2986, %v3054
      %v3099 = vmax.f32 %v2987, %v3071
      %v3100 = vmax.f32 %v2988, %v3055
      %v3101 = vmax.f32 %v2989, %v3072
      %v3102 = vmax.f32 %v2990, %v3056
      %v3103 = vmax.f32 %v2991, %v3073
      %v3104 = vmax.f32 %v2992, %v3057
      %v3105 = vmax.f32 %v2993, %v3074
      %v3106 = vmax.f32 %v2994, %v3058
      %v3107 = vrot.slane %v2835, 6
      %v3108 = vrot.slane %v2838, 6
      %v3109 = vrot.slane %v2841, 6
      %v3110 = vrot.slane %v2844, 6
      %v3111 = vrot.slane %v2847, 6
      %v3112 = vrot.slane %v2850, 6
      %v3113 = vrot.slane %v2853, 6
      %v3114 = vrot.slane %v2856, 6
      %v3115 = vrot.slane %v2859, 6
      %v3116 = vrot.slane %v2862, 6
      %v3117 = vrot.slane %v2865, 6
      %v3118 = vrot.slane %v2868, 6
      %v3119 = vrot.slane %v2871, 6
      %v3120 = vrot.slane %v2874, 6
      %v3121 = vrot.slane %v2877, 6
      %v3122 = vrot.slane %v2880, 6
      %v3123 = vrot.slane %v2836, 6
      %v3124 = vrot.slane %v2839, 6
      %v3125 = vrot.slane %v2842, 6
      %v3126 = vrot.slane %v2845, 6
      %v3127 = vrot.slane %v2848, 6
      %v3128 = vrot.slane %v2851, 6
      %v3129 = vrot.slane %v2854, 6
      %v3130 = vrot.slane %v2857, 6
      %v3131 = vrot.slane %v2860, 6
      %v3132 = vrot.slane %v2863, 6
      %v3133 = vrot.slane %v2866, 6
      %v3134 = vrot.slane %v2869, 6
      %v3135 = vrot.slane %v2872, 6
      %v3136 = vrot.slane %v2875, 6
      %v3137 = vrot.slane %v2878, 6
      %v3138 = vrot.slane %v2881, 6
      %v3139 = vrot.slane %v2837, 6
      %v3140 = vrot.slane %v2840, 6
      %v3141 = vrot.slane %v2843, 6
      %v3142 = vrot.slane %v2846, 6
      %v3143 = vrot.slane %v2849, 6
      %v3144 = vrot.slane %v2852, 6
      %v3145 = vrot.slane %v2855, 6
      %v3146 = vrot.slane %v2858, 6
      %v3147 = vrot.slane %v2861, 6
      %v3148 = vrot.slane %v2864, 6
      %v3149 = vrot.slane %v2867, 6
      %v3150 = vrot.slane %v2870, 6
      %v3151 = vrot.slane %v2873, 6
      %v3152 = vrot.slane %v2876, 6
      %v3153 = vrot.slane %v2879, 6
      %v3154 = vrot.slane %v2882, 6
      %v3155 = vsel %vm1590, %v3107, %v3123
      %v3156 = vsel %vm1590, %v3108, %v3124
      %v3157 = vsel %vm1590, %v3109, %v3125
      %v3158 = vsel %vm1590, %v3110, %v3126
      %v3159 = vsel %vm1590, %v3111, %v3127
      %v3160 = vsel %vm1590, %v3112, %v3128
      %v3161 = vsel %vm1590, %v3113, %v3129
      %v3162 = vsel %vm1590, %v3114, %v3130
      %v3163 = vsel %vm1590, %v3115, %v3131
      %v3164 = vsel %vm1590, %v3116, %v3132
      %v3165 = vsel %vm1590, %v3117, %v3133
      %v3166 = vsel %vm1590, %v3118, %v3134
      %v3167 = vsel %vm1590, %v3119, %v3135
      %v3168 = vsel %vm1590, %v3120, %v3136
      %v3169 = vsel %vm1590, %v3121, %v3137
      %v3170 = vsel %vm1590, %v3122, %v3138
      %v3171 = vsel %vm1590, %v3139, %v3107
      %v3172 = vsel %vm1590, %v3140, %v3108
      %v3173 = vsel %vm1590, %v3141, %v3109
      %v3174 = vsel %vm1590, %v3142, %v3110
      %v3175 = vsel %vm1590, %v3143, %v3111
      %v3176 = vsel %vm1590, %v3144, %v3112
      %v3177 = vsel %vm1590, %v3145, %v3113
      %v3178 = vsel %vm1590, %v3146, %v3114
      %v3179 = vsel %vm1590, %v3147, %v3115
      %v3180 = vsel %vm1590, %v3148, %v3116
      %v3181 = vsel %vm1590, %v3149, %v3117
      %v3182 = vsel %vm1590, %v3150, %v3118
      %v3183 = vsel %vm1590, %v3151, %v3119
      %v3184 = vsel %vm1590, %v3152, %v3120
      %v3185 = vsel %vm1590, %v3153, %v3121
      %v3186 = vsel %vm1590, %v3154, %v3122
      %v3187 = vmax.f32 %v3075, %v3171
      %v3188 = vmax.f32 %v3076, %v3155
      %v3189 = vmax.f32 %v3077, %v3172
      %v3190 = vmax.f32 %v3078, %v3156
      %v3191 = vmax.f32 %v3079, %v3173
      %v3192 = vmax.f32 %v3080, %v3157
      %v3193 = vmax.f32 %v3081, %v3174
      %v3194 = vmax.f32 %v3082, %v3158
      %v3195 = vmax.f32 %v3083, %v3175
      %v3196 = vmax.f32 %v3084, %v3159
      %v3197 = vmax.f32 %v3085, %v3176
      %v3198 = vmax.f32 %v3086, %v3160
      %v3199 = vmax.f32 %v3087, %v3177
      %v3200 = vmax.f32 %v3088, %v3161
      %v3201 = vmax.f32 %v3089, %v3178
      %v3202 = vmax.f32 %v3090, %v3162
      %v3203 = vmax.f32 %v3091, %v3179
      %v3204 = vmax.f32 %v3092, %v3163
      %v3205 = vmax.f32 %v3093, %v3180
      %v3206 = vmax.f32 %v3094, %v3164
      %v3207 = vmax.f32 %v3095, %v3181
      %v3208 = vmax.f32 %v3096, %v3165
      %v3209 = vmax.f32 %v3097, %v3182
      %v3210 = vmax.f32 %v3098, %v3166
      %v3211 = vmax.f32 %v3099, %v3183
      %v3212 = vmax.f32 %v3100, %v3167
      %v3213 = vmax.f32 %v3101, %v3184
      %v3214 = vmax.f32 %v3102, %v3168
      %v3215 = vmax.f32 %v3103, %v3185
      %v3216 = vmax.f32 %v3104, %v3169
      %v3217 = vmax.f32 %v3105, %v3186
      %v3218 = vmax.f32 %v3106, %v3170
      %v3219 = vrot.slane %v2835, 2
      %v3220 = vrot.slane %v2838, 2
      %v3221 = vrot.slane %v2841, 2
      %v3222 = vrot.slane %v2844, 2
      %v3223 = vrot.slane %v2847, 2
      %v3224 = vrot.slane %v2850, 2
      %v3225 = vrot.slane %v2853, 2
      %v3226 = vrot.slane %v2856, 2
      %v3227 = vrot.slane %v2859, 2
      %v3228 = vrot.slane %v2862, 2
      %v3229 = vrot.slane %v2865, 2
      %v3230 = vrot.slane %v2868, 2
      %v3231 = vrot.slane %v2871, 2
      %v3232 = vrot.slane %v2874, 2
      %v3233 = vrot.slane %v2877, 2
      %v3234 = vrot.slane %v2880, 2
      %v3235 = vrot.slane %v2836, 2
      %v3236 = vrot.slane %v2839, 2
      %v3237 = vrot.slane %v2842, 2
      %v3238 = vrot.slane %v2845, 2
      %v3239 = vrot.slane %v2848, 2
      %v3240 = vrot.slane %v2851, 2
      %v3241 = vrot.slane %v2854, 2
      %v3242 = vrot.slane %v2857, 2
      %v3243 = vrot.slane %v2860, 2
      %v3244 = vrot.slane %v2863, 2
      %v3245 = vrot.slane %v2866, 2
      %v3246 = vrot.slane %v2869, 2
      %v3247 = vrot.slane %v2872, 2
      %v3248 = vrot.slane %v2875, 2
      %v3249 = vrot.slane %v2878, 2
      %v3250 = vrot.slane %v2881, 2
      %v3251 = vrot.slane %v2837, 2
      %v3252 = vrot.slane %v2840, 2
      %v3253 = vrot.slane %v2843, 2
      %v3254 = vrot.slane %v2846, 2
      %v3255 = vrot.slane %v2849, 2
      %v3256 = vrot.slane %v2852, 2
      %v3257 = vrot.slane %v2855, 2
      %v3258 = vrot.slane %v2858, 2
      %v3259 = vrot.slane %v2861, 2
      %v3260 = vrot.slane %v2864, 2
      %v3261 = vrot.slane %v2867, 2
      %v3262 = vrot.slane %v2870, 2
      %v3263 = vrot.slane %v2873, 2
      %v3264 = vrot.slane %v2876, 2
      %v3265 = vrot.slane %v2879, 2
      %v3266 = vrot.slane %v2882, 2
      %v3267 = vsel %vm1703, %v3235, %v3251
      %v3268 = vsel %vm1703, %v3236, %v3252
      %v3269 = vsel %vm1703, %v3237, %v3253
      %v3270 = vsel %vm1703, %v3238, %v3254
      %v3271 = vsel %vm1703, %v3239, %v3255
      %v3272 = vsel %vm1703, %v3240, %v3256
      %v3273 = vsel %vm1703, %v3241, %v3257
      %v3274 = vsel %vm1703, %v3242, %v3258
      %v3275 = vsel %vm1703, %v3243, %v3259
      %v3276 = vsel %vm1703, %v3244, %v3260
      %v3277 = vsel %vm1703, %v3245, %v3261
      %v3278 = vsel %vm1703, %v3246, %v3262
      %v3279 = vsel %vm1703, %v3247, %v3263
      %v3280 = vsel %vm1703, %v3248, %v3264
      %v3281 = vsel %vm1703, %v3249, %v3265
      %v3282 = vsel %vm1703, %v3250, %v3266
      %v3283 = vsel %vm1703, %v3219, %v3235
      %v3284 = vsel %vm1703, %v3220, %v3236
      %v3285 = vsel %vm1703, %v3221, %v3237
      %v3286 = vsel %vm1703, %v3222, %v3238
      %v3287 = vsel %vm1703, %v3223, %v3239
      %v3288 = vsel %vm1703, %v3224, %v3240
      %v3289 = vsel %vm1703, %v3225, %v3241
      %v3290 = vsel %vm1703, %v3226, %v3242
      %v3291 = vsel %vm1703, %v3227, %v3243
      %v3292 = vsel %vm1703, %v3228, %v3244
      %v3293 = vsel %vm1703, %v3229, %v3245
      %v3294 = vsel %vm1703, %v3230, %v3246
      %v3295 = vsel %vm1703, %v3231, %v3247
      %v3296 = vsel %vm1703, %v3232, %v3248
      %v3297 = vsel %vm1703, %v3233, %v3249
      %v3298 = vsel %vm1703, %v3234, %v3250
      %v3299 = vmax.f32 %v3187, %v3283
      %v3300 = vmax.f32 %v3188, %v3267
      %v3301 = vmax.f32 %v3189, %v3284
      %v3302 = vmax.f32 %v3190, %v3268
      %v3303 = vmax.f32 %v3191, %v3285
      %v3304 = vmax.f32 %v3192, %v3269
      %v3305 = vmax.f32 %v3193, %v3286
      %v3306 = vmax.f32 %v3194, %v3270
      %v3307 = vmax.f32 %v3195, %v3287
      %v3308 = vmax.f32 %v3196, %v3271
      %v3309 = vmax.f32 %v3197, %v3288
      %v3310 = vmax.f32 %v3198, %v3272
      %v3311 = vmax.f32 %v3199, %v3289
      %v3312 = vmax.f32 %v3200, %v3273
      %v3313 = vmax.f32 %v3201, %v3290
      %v3314 = vmax.f32 %v3202, %v3274
      %v3315 = vmax.f32 %v3203, %v3291
      %v3316 = vmax.f32 %v3204, %v3275
      %v3317 = vmax.f32 %v3205, %v3292
      %v3318 = vmax.f32 %v3206, %v3276
      %v3319 = vmax.f32 %v3207, %v3293
      %v3320 = vmax.f32 %v3208, %v3277
      %v3321 = vmax.f32 %v3209, %v3294
      %v3322 = vmax.f32 %v3210, %v3278
      %v3323 = vmax.f32 %v3211, %v3295
      %v3324 = vmax.f32 %v3212, %v3279
      %v3325 = vmax.f32 %v3213, %v3296
      %v3326 = vmax.f32 %v3214, %v3280
      %v3327 = vmax.f32 %v3215, %v3297
      %v3328 = vmax.f32 %v3216, %v3281
      %v3329 = vmax.f32 %v3217, %v3298
      %v3330 = vmax.f32 %v3218, %v3282
      %s3331 = scalar_lea.vmem %s3, 4
      %v3332 = vld [vmem:[%s3331] sm:$0x3]
      %v3334 = vsel %vm225, %v3299, 0
      %v3337 = vsel %vm225, %v3300, 0
      %v3340 = vsel %vm225, %v3301, 0
      %v3343 = vsel %vm225, %v3302, 0
      %v3346 = vsel %vm225, %v3303, 0
      %v3349 = vsel %vm225, %v3304, 0
      %v3352 = vsel %vm225, %v3305, 0
      %v3355 = vsel %vm225, %v3306, 0
      %v3358 = vsel %vm225, %v3307, 0
      %v3361 = vsel %vm225, %v3308, 0
      %v3364 = vsel %vm225, %v3309, 0
      %v3367 = vsel %vm225, %v3310, 0
      %v3370 = vsel %vm225, %v3311, 0
      %v3373 = vsel %vm225, %v3312, 0
      %v3376 = vsel %vm225, %v3313, 0
      %v3379 = vsel %vm225, %v3314, 0
      %v3382 = vsel %vm225, %v3315, 0
      %v3385 = vsel %vm225, %v3316, 0
      %v3388 = vsel %vm225, %v3317, 0
      %v3391 = vsel %vm225, %v3318, 0
      %v3394 = vsel %vm225, %v3319, 0
      %v3397 = vsel %vm225, %v3320, 0
      %v3400 = vsel %vm225, %v3321, 0
      %v3403 = vsel %vm225, %v3322, 0
      %v3406 = vsel %vm225, %v3323, 0
      %v3409 = vsel %vm225, %v3324, 0
      %v3412 = vsel %vm225, %v3325, 0
      %v3415 = vsel %vm225, %v3326, 0
      %v3418 = vsel %vm225, %v3327, 0
      %v3421 = vsel %vm225, %v3328, 0
      %v3424 = vsel %vm225, %v3329, 0
      %v3427 = vsel %vm225, %v3330, 0
      %v3430 = vsel %vm1866, %v3332, 0
      %3432 = vmatprep.subr.mxu0 0.0
      %3433 = vmatpush1.msra.mxu0 0.0
      %3434 = vmatprep.subr.mxu0 0.0
      %3435 = vmatpush1.msra.mxu0 0.0
      %3436 = vmatprep.subr.mxu0 0.0
      %3437 = vmatpush1.msra.mxu0 0.0
      %3438 = vmatprep.subr.mxu0 0.0
      %3439 = vmatpush1.msra.mxu0 0.0
      %3440 = vmatprep.subr.mxu0 0.0
      %3441 = vmatpush1.msra.mxu0 0.0
      %3442 = vmatprep.subr.mxu0 0.0
      %3443 = vmatpush1.msra.mxu0 0.0
      %3444 = vmatprep.subr.mxu0 0.0
      %3445 = vmatpush1.msra.mxu0 0.0
      %3446 = vmatprep.subr.mxu0 0.0
      %3447 = vmatpush1.msra.mxu0 0.0
      %3448 = vmatprep.subr.mxu0 0.0
      %3449 = vmatpush1.msra.mxu0 0.0
      %3450 = vmatprep.subr.mxu0 0.0
      %3451 = vmatpush1.msra.mxu0 0.0
      %3452 = vmatprep.subr.mxu0 0.0
      %3453 = vmatpush1.msra.mxu0 0.0
      %3454 = vmatprep.subr.mxu0 0.0
      %3455 = vmatpush1.msra.mxu0 0.0
      %3456 = vmatprep.subr.mxu0 0.0
      %3457 = vmatpush1.msra.mxu0 0.0
      %3458 = vmatprep.subr.mxu0 0.0
      %3459 = vmatpush1.msra.mxu0 0.0
      %3460 = vmatprep.subr.mxu0 0.0
      %3461 = vmatpush1.msra.mxu0 0.0
      %3462 = vmatprep.subr.mxu0 0.0
      %3463 = vmatpush1.msra.mxu0 %v3430
      %3464 = vmatprep.subr.mxu0 0.0
      %3465 = vmatpush2.msra.mxu0 0.0
      %3466 = vmatprep.subr.mxu0 0.0
      %3467 = vmatpush2.msra.mxu0 0.0
      %3468 = vmatprep.subr.mxu0 0.0
      %3469 = vmatpush2.msra.mxu0 0.0
      %3470 = vmatprep.subr.mxu0 0.0
      %3471 = vmatpush2.msra.mxu0 0.0
      %3472 = vmatprep.subr.mxu0 0.0
      %3473 = vmatpush2.msra.mxu0 0.0
      %3474 = vmatprep.subr.mxu0 0.0
      %3475 = vmatpush2.msra.mxu0 0.0
      %3476 = vmatprep.subr.mxu0 0.0
      %3477 = vmatpush2.msra.mxu0 0.0
      %3478 = vmatprep.subr.mxu0 0.0
      %3479 = vmatpush2.msra.mxu0 0.0
      %3480 = vmatprep.subr.mxu0 0.0
      %3481 = vmatpush2.msra.mxu0 0.0
      %3482 = vmatprep.subr.mxu0 0.0
      %3483 = vmatpush2.msra.mxu0 0.0
      %3484 = vmatprep.subr.mxu0 0.0
      %3485 = vmatpush2.msra.mxu0 0.0
      %3486 = vmatprep.subr.mxu0 0.0
      %3487 = vmatpush2.msra.mxu0 0.0
      %3488 = vmatprep.subr.mxu0 0.0
      %3489 = vmatpush2.msra.mxu0 0.0
      %3490 = vmatprep.subr.mxu0 0.0
      %3491 = vmatpush2.msra.mxu0 0.0
      %3492 = vmatprep.subr.mxu0 0.0
      %3493 = vmatpush2.msra.mxu0 0.0
      %3494 = vmatprep.subr.mxu0 0.0
      %3495 = vmatpush2.msra.mxu0 0.0
      %3496 = vmatprep.mubr.f32.mxu0 0.0
      %3497 = vmatmul.mubr.f32.gmra.mxu0 %v3334
      %v3498 = vpop.f32.mrf.mxu0
      %v3499 = vadd.f32 0.0, %v3498
      %v3500 = vpop.f32.mrf.mxu0
      %3501 = vmatprep.mubr.f32.mxu0 0.0
      %3502 = vmatmul.mubr.f32.gmra.mxu0 %v3337
      %v3503 = vpop.f32.mrf.mxu0
      %v3504 = vadd.f32 0.0, %v3503
      %v3505 = vpop.f32.mrf.mxu0
      %3506 = vmatprep.mubr.f32.mxu0 0.0
      %3507 = vmatmul.mubr.f32.gmra.mxu0 %v3340
      %v3508 = vpop.f32.mrf.mxu0
      %v3509 = vadd.f32 0.0, %v3508
      %v3510 = vpop.f32.mrf.mxu0
      %3511 = vmatprep.mubr.f32.mxu0 0.0
      %3512 = vmatmul.mubr.f32.gmra.mxu0 %v3343
      %v3513 = vpop.f32.mrf.mxu0
      %v3514 = vadd.f32 0.0, %v3513
      %v3515 = vpop.f32.mrf.mxu0
      %3516 = vmatprep.mubr.f32.mxu0 0.0
      %3517 = vmatmul.mubr.f32.gmra.mxu0 %v3346
      %v3518 = vpop.f32.mrf.mxu0
      %v3519 = vadd.f32 0.0, %v3518
      %v3520 = vpop.f32.mrf.mxu0
      %3521 = vmatprep.mubr.f32.mxu0 0.0
      %3522 = vmatmul.mubr.f32.gmra.mxu0 %v3349
      %v3523 = vpop.f32.mrf.mxu0
      %v3524 = vadd.f32 0.0, %v3523
      %v3525 = vpop.f32.mrf.mxu0
      %3526 = vmatprep.mubr.f32.mxu0 0.0
      %3527 = vmatmul.mubr.f32.gmra.mxu0 %v3352
      %v3528 = vpop.f32.mrf.mxu0
      %v3529 = vadd.f32 0.0, %v3528
      %v3530 = vpop.f32.mrf.mxu0
      %3531 = vmatprep.mubr.f32.mxu0 0.0
      %3532 = vmatmul.mubr.f32.gmra.mxu0 %v3355
      %v3533 = vpop.f32.mrf.mxu0
      %v3534 = vadd.f32 0.0, %v3533
      %v3535 = vpop.f32.mrf.mxu0
      %3536 = vmatprep.mubr.f32.mxu0 0.0
      %3537 = vmatmul.mubr.f32.gmra.mxu0 %v3358
      %v3538 = vpop.f32.mrf.mxu0
      %v3539 = vadd.f32 0.0, %v3538
      %v3540 = vpop.f32.mrf.mxu0
      %3541 = vmatprep.mubr.f32.mxu0 0.0
      %3542 = vmatmul.mubr.f32.gmra.mxu0 %v3361
      %v3543 = vpop.f32.mrf.mxu0
      %v3544 = vadd.f32 0.0, %v3543
      %v3545 = vpop.f32.mrf.mxu0
      %3546 = vmatprep.mubr.f32.mxu0 0.0
      %3547 = vmatmul.mubr.f32.gmra.mxu0 %v3364
      %v3548 = vpop.f32.mrf.mxu0
      %v3549 = vadd.f32 0.0, %v3548
      %v3550 = vpop.f32.mrf.mxu0
      %3551 = vmatprep.mubr.f32.mxu0 0.0
      %3552 = vmatmul.mubr.f32.gmra.mxu0 %v3367
      %v3553 = vpop.f32.mrf.mxu0
      %v3554 = vadd.f32 0.0, %v3553
      %v3555 = vpop.f32.mrf.mxu0
      %3556 = vmatprep.mubr.f32.mxu0 0.0
      %3557 = vmatmul.mubr.f32.gmra.mxu0 %v3370
      %v3558 = vpop.f32.mrf.mxu0
      %v3559 = vadd.f32 0.0, %v3558
      %v3560 = vpop.f32.mrf.mxu0
      %3561 = vmatprep.mubr.f32.mxu0 0.0
      %3562 = vmatmul.mubr.f32.gmra.mxu0 %v3373
      %v3563 = vpop.f32.mrf.mxu0
      %v3564 = vadd.f32 0.0, %v3563
      %v3565 = vpop.f32.mrf.mxu0
      %3566 = vmatprep.mubr.f32.mxu0 0.0
      %3567 = vmatmul.mubr.f32.gmra.mxu0 %v3376
      %v3568 = vpop.f32.mrf.mxu0
      %v3569 = vadd.f32 0.0, %v3568
      %v3570 = vpop.f32.mrf.mxu0
      %3571 = vmatprep.mubr.f32.mxu0 0.0
      %3572 = vmatmul.mubr.f32.gmra.mxu0 %v3379
      %v3573 = vpop.f32.mrf.mxu0
      %v3574 = vadd.f32 0.0, %v3573
      %v3575 = vpop.f32.mrf.mxu0
      %3576 = vmatprep.mubr.f32.mxu0 0.0
      %3577 = vmatmul.mubr.f32.gmra.mxu0 %v3382
      %v3578 = vpop.f32.mrf.mxu0
      %v3579 = vadd.f32 0.0, %v3578
      %v3580 = vpop.f32.mrf.mxu0
      %3581 = vmatprep.mubr.f32.mxu0 0.0
      %3582 = vmatmul.mubr.f32.gmra.mxu0 %v3385
      %v3583 = vpop.f32.mrf.mxu0
      %v3584 = vadd.f32 0.0, %v3583
      %v3585 = vpop.f32.mrf.mxu0
      %3586 = vmatprep.mubr.f32.mxu0 0.0
      %3587 = vmatmul.mubr.f32.gmra.mxu0 %v3388
      %v3588 = vpop.f32.mrf.mxu0
      %v3589 = vadd.f32 0.0, %v3588
      %v3590 = vpop.f32.mrf.mxu0
      %3591 = vmatprep.mubr.f32.mxu0 0.0
      %3592 = vmatmul.mubr.f32.gmra.mxu0 %v3391
      %v3593 = vpop.f32.mrf.mxu0
      %v3594 = vadd.f32 0.0, %v3593
      %v3595 = vpop.f32.mrf.mxu0
      %3596 = vmatprep.mubr.f32.mxu0 0.0
      %3597 = vmatmul.mubr.f32.gmra.mxu0 %v3394
      %v3598 = vpop.f32.mrf.mxu0
      %v3599 = vadd.f32 0.0, %v3598
      %v3600 = vpop.f32.mrf.mxu0
      %3601 = vmatprep.mubr.f32.mxu0 0.0
      %3602 = vmatmul.mubr.f32.gmra.mxu0 %v3397
      %v3603 = vpop.f32.mrf.mxu0
      %v3604 = vadd.f32 0.0, %v3603
      %v3605 = vpop.f32.mrf.mxu0
      %3606 = vmatprep.mubr.f32.mxu0 0.0
      %3607 = vmatmul.mubr.f32.gmra.mxu0 %v3400
      %v3608 = vpop.f32.mrf.mxu0
      %v3609 = vadd.f32 0.0, %v3608
      %v3610 = vpop.f32.mrf.mxu0
      %3611 = vmatprep.mubr.f32.mxu0 0.0
      %3612 = vmatmul.mubr.f32.gmra.mxu0 %v3403
      %v3613 = vpop.f32.mrf.mxu0
      %v3614 = vadd.f32 0.0, %v3613
      %v3615 = vpop.f32.mrf.mxu0
      %3616 = vmatprep.mubr.f32.mxu0 0.0
      %3617 = vmatmul.mubr.f32.gmra.mxu0 %v3406
      %v3618 = vpop.f32.mrf.mxu0
      %v3619 = vadd.f32 0.0, %v3618
      %v3620 = vpop.f32.mrf.mxu0
      %3621 = vmatprep.mubr.f32.mxu0 0.0
      %3622 = vmatmul.mubr.f32.gmra.mxu0 %v3409
      %v3623 = vpop.f32.mrf.mxu0
      %v3624 = vadd.f32 0.0, %v3623
      %v3625 = vpop.f32.mrf.mxu0
      %3626 = vmatprep.mubr.f32.mxu0 0.0
      %3627 = vmatmul.mubr.f32.gmra.mxu0 %v3412
      %v3628 = vpop.f32.mrf.mxu0
      %v3629 = vadd.f32 0.0, %v3628
      %v3630 = vpop.f32.mrf.mxu0
      %3631 = vmatprep.mubr.f32.mxu0 0.0
      %3632 = vmatmul.mubr.f32.gmra.mxu0 %v3415
      %v3633 = vpop.f32.mrf.mxu0
      %v3634 = vadd.f32 0.0, %v3633
      %v3635 = vpop.f32.mrf.mxu0
      %3636 = vmatprep.mubr.f32.mxu0 0.0
      %3637 = vmatmul.mubr.f32.gmra.mxu0 %v3418
      %v3638 = vpop.f32.mrf.mxu0
      %v3639 = vadd.f32 0.0, %v3638
      %v3640 = vpop.f32.mrf.mxu0
      %3641 = vmatprep.mubr.f32.mxu0 0.0
      %3642 = vmatmul.mubr.f32.gmra.mxu0 %v3421
      %v3643 = vpop.f32.mrf.mxu0
      %v3644 = vadd.f32 0.0, %v3643
      %v3645 = vpop.f32.mrf.mxu0
      %3646 = vmatprep.mubr.f32.mxu0 0.0
      %3647 = vmatmul.mubr.f32.gmra.mxu0 %v3424
      %v3648 = vpop.f32.mrf.mxu0
      %v3649 = vadd.f32 0.0, %v3648
      %v3650 = vpop.f32.mrf.mxu0
      %3651 = vmatprep.mubr.f32.mxu0 0.0
      %3652 = vmatmul.mubr.f32.gmra.mxu0 %v3427
      %v3653 = vpop.f32.mrf.mxu0
      %v3654 = vadd.f32 0.0, %v3653
      %v3655 = vpop.f32.mrf.mxu0
      %3656 = vdwg.mxu0
      %v3657 = vadd.f32 %v2261, %v3499
      %v3658 = vadd.f32 %v2266, %v3504
      %v3659 = vadd.f32 %v2271, %v3509
      %v3660 = vadd.f32 %v2276, %v3514
      %v3661 = vadd.f32 %v2281, %v3519
      %v3662 = vadd.f32 %v2286, %v3524
      %v3663 = vadd.f32 %v2291, %v3529
      %v3664 = vadd.f32 %v2296, %v3534
      %v3665 = vadd.f32 %v2301, %v3539
      %v3666 = vadd.f32 %v2306, %v3544
      %v3667 = vadd.f32 %v2311, %v3549
      %v3668 = vadd.f32 %v2316, %v3554
      %v3669 = vadd.f32 %v2321, %v3559
      %v3670 = vadd.f32 %v2326, %v3564
      %v3671 = vadd.f32 %v2331, %v3569
      %v3672 = vadd.f32 %v2336, %v3574
      %v3673 = vadd.f32 %v2341, %v3579
      %v3674 = vadd.f32 %v2346, %v3584
      %v3675 = vadd.f32 %v2351, %v3589
      %v3676 = vadd.f32 %v2356, %v3594
      %v3677 = vadd.f32 %v2361, %v3599
      %v3678 = vadd.f32 %v2366, %v3604
      %v3679 = vadd.f32 %v2371, %v3609
      %v3680 = vadd.f32 %v2376, %v3614
      %v3681 = vadd.f32 %v2381, %v3619
      %v3682 = vadd.f32 %v2386, %v3624
      %v3683 = vadd.f32 %v2391, %v3629
      %v3684 = vadd.f32 %v2396, %v3634
      %v3685 = vadd.f32 %v2401, %v3639
      %v3686 = vadd.f32 %v2406, %v3644
      %v3687 = vadd.f32 %v2411, %v3649
      %v3688 = vadd.f32 %v2416, %v3654
      %3689 = vst.msk [vmem:[%s239] sm:$0xff] %vm225, %v3299
      %3690 = vst.msk [vmem:[%s239 + $0x8] sm:$0xff] %vm225, %v3300
      %3691 = vst.msk [vmem:[%s239 + $0x18] sm:$0xff] %vm225, %v3301
      %3692 = vst.msk [vmem:[%s239 + $0x20] sm:$0xff] %vm225, %v3302
      %3693 = vst.msk [vmem:[%s239 + $0x30] sm:$0xff] %vm225, %v3303
      %3694 = vst.msk [vmem:[%s239 + $0x38] sm:$0xff] %vm225, %v3304
      %3695 = vst.msk [vmem:[%s239 + $0x48] sm:$0xff] %vm225, %v3305
      %3696 = vst.msk [vmem:[%s239 + $0x50] sm:$0xff] %vm225, %v3306
      %3697 = vst.msk [vmem:[%s239 + $0x60] sm:$0xff] %vm225, %v3307
      %3698 = vst.msk [vmem:[%s239 + $0x68] sm:$0xff] %vm225, %v3308
      %3699 = vst.msk [vmem:[%s239 + $0x78] sm:$0xff] %vm225, %v3309
      %3700 = vst.msk [vmem:[%s239 + $0x80] sm:$0xff] %vm225, %v3310
      %3701 = vst.msk [vmem:[%s239 + $0x90] sm:$0xff] %vm225, %v3311
      %3702 = vst.msk [vmem:[%s239 + $0x98] sm:$0xff] %vm225, %v3312
      %3703 = vst.msk [vmem:[%s239 + $0xa8] sm:$0xff] %vm225, %v3313
      %3704 = vst.msk [vmem:[%s239 + $0xb0] sm:$0xff] %vm225, %v3314
      %3705 = vst.msk [vmem:[%s239 + $0xc0] sm:$0xff] %vm225, %v3315
      %3706 = vst.msk [vmem:[%s239 + $0xc8] sm:$0xff] %vm225, %v3316
      %3707 = vst.msk [vmem:[%s239 + $0xd8] sm:$0xff] %vm225, %v3317
      %3708 = vst.msk [vmem:[%s239 + $0xe0] sm:$0xff] %vm225, %v3318
      %3709 = vst.msk [vmem:[%s239 + $0xf0] sm:$0xff] %vm225, %v3319
      %3710 = vst.msk [vmem:[%s239 + $0xf8] sm:$0xff] %vm225, %v3320
      %3711 = vst.msk [vmem:[%s239 + $0x108] sm:$0xff] %vm225, %v3321
      %3712 = vst.msk [vmem:[%s239 + $0x110] sm:$0xff] %vm225, %v3322
      %3713 = vst.msk [vmem:[%s239 + $0x120] sm:$0xff] %vm225, %v3323
      %3714 = vst.msk [vmem:[%s239 + $0x128] sm:$0xff] %vm225, %v3324
      %3715 = vst.msk [vmem:[%s239 + $0x138] sm:$0xff] %vm225, %v3325
      %3716 = vst.msk [vmem:[%s239 + $0x140] sm:$0xff] %vm225, %v3326
      %3717 = vst.msk [vmem:[%s239 + $0x150] sm:$0xff] %vm225, %v3327
      %3718 = vst.msk [vmem:[%s239 + $0x158] sm:$0xff] %vm225, %v3328
      %3719 = vst.msk [vmem:[%s239 + $0x168] sm:$0xff] %vm225, %v3329
      %3720 = vst.msk [vmem:[%s239 + $0x170] sm:$0xff] %vm225, %v3330
      %v3721 = vld [vmem:[#allocation2] sm:$0xff]
      %v3722 = vld [vmem:[#allocation2 + $0x8] sm:$0xff]
      %v3723 = vld [vmem:[#allocation2 + $0x10] sm:$0xff]
      %v3724 = vld [vmem:[#allocation2 + $0x18] sm:$0xff]
      %v3725 = vld [vmem:[#allocation2 + $0x20] sm:$0xff]
      %v3726 = vld [vmem:[#allocation2 + $0x28] sm:$0xff]
      %v3727 = vld [vmem:[#allocation2 + $0x30] sm:$0xff]
      %v3728 = vld [vmem:[#allocation2 + $0x38] sm:$0xff]
      %v3729 = vld [vmem:[#allocation2 + $0x40] sm:$0xff]
      %v3730 = vld [vmem:[#allocation2 + $0x48] sm:$0xff]
      %v3731 = vld [vmem:[#allocation2 + $0x50] sm:$0xff]
      %v3732 = vld [vmem:[#allocation2 + $0x58] sm:$0xff]
      %v3733 = vld [vmem:[#allocation2 + $0x60] sm:$0xff]
      %v3734 = vld [vmem:[#allocation2 + $0x68] sm:$0xff]
      %v3735 = vld [vmem:[#allocation2 + $0x70] sm:$0xff]
      %v3736 = vld [vmem:[#allocation2 + $0x78] sm:$0xff]
      %v3737 = vld [vmem:[#allocation2 + $0x80] sm:$0xff]
      %v3738 = vld [vmem:[#allocation2 + $0x88] sm:$0xff]
      %v3739 = vld [vmem:[#allocation2 + $0x90] sm:$0xff]
      %v3740 = vld [vmem:[#allocation2 + $0x98] sm:$0xff]
      %v3741 = vld [vmem:[#allocation2 + $0xa0] sm:$0xff]
      %v3742 = vld [vmem:[#allocation2 + $0xa8] sm:$0xff]
      %v3743 = vld [vmem:[#allocation2 + $0xb0] sm:$0xff]
      %v3744 = vld [vmem:[#allocation2 + $0xb8] sm:$0xff]
      %v3745 = vld [vmem:[#allocation2 + $0xc0] sm:$0xff]
      %v3746 = vld [vmem:[#allocation2 + $0xc8] sm:$0xff]
      %v3747 = vld [vmem:[#allocation2 + $0xd0] sm:$0xff]
      %v3748 = vld [vmem:[#allocation2 + $0xd8] sm:$0xff]
      %v3749 = vld [vmem:[#allocation2 + $0xe0] sm:$0xff]
      %v3750 = vld [vmem:[#allocation2 + $0xe8] sm:$0xff]
      %v3751 = vld [vmem:[#allocation2 + $0xf0] sm:$0xff]
      %v3752 = vld [vmem:[#allocation2 + $0xf8] sm:$0xff]
      %v3753 = vld [vmem:[#allocation2 + $0x100] sm:$0xff]
      %v3754 = vld [vmem:[#allocation2 + $0x108] sm:$0xff]
      %v3755 = vld [vmem:[#allocation2 + $0x110] sm:$0xff]
      %v3756 = vld [vmem:[#allocation2 + $0x118] sm:$0xff]
      %v3757 = vld [vmem:[#allocation2 + $0x120] sm:$0xff]
      %v3758 = vld [vmem:[#allocation2 + $0x128] sm:$0xff]
      %v3759 = vld [vmem:[#allocation2 + $0x130] sm:$0xff]
      %v3760 = vld [vmem:[#allocation2 + $0x138] sm:$0xff]
      %v3761 = vld [vmem:[#allocation2 + $0x140] sm:$0xff]
      %v3762 = vld [vmem:[#allocation2 + $0x148] sm:$0xff]
      %v3763 = vld [vmem:[#allocation2 + $0x150] sm:$0xff]
      %v3764 = vld [vmem:[#allocation2 + $0x158] sm:$0xff]
      %v3765 = vld [vmem:[#allocation2 + $0x160] sm:$0xff]
      %v3766 = vld [vmem:[#allocation2 + $0x168] sm:$0xff]
      %v3767 = vld [vmem:[#allocation2 + $0x170] sm:$0xff]
      %v3768 = vld [vmem:[#allocation2 + $0x178] sm:$0xff]
      %v3769 = vld [vmem:[%s927] sm:$0xff]
      %v3770 = vld [vmem:[%s927 + $0x8] sm:$0xff]
      %v3771 = vld [vmem:[%s927 + $0x10] sm:$0xff]
      %v3772 = vld [vmem:[%s927 + $0x18] sm:$0xff]
      %v3773 = vld [vmem:[%s927 + $0x20] sm:$0xff]
      %v3774 = vld [vmem:[%s927 + $0x28] sm:$0xff]
      %v3775 = vld [vmem:[%s927 + $0x30] sm:$0xff]
      %v3776 = vld [vmem:[%s927 + $0x38] sm:$0xff]
      %v3777 = vld [vmem:[%s927 + $0x40] sm:$0xff]
      %v3778 = vld [vmem:[%s927 + $0x48] sm:$0xff]
      %v3779 = vld [vmem:[%s927 + $0x50] sm:$0xff]
      %v3780 = vld [vmem:[%s927 + $0x58] sm:$0xff]
      %v3781 = vld [vmem:[%s927 + $0x60] sm:$0xff]
      %v3782 = vld [vmem:[%s927 + $0x68] sm:$0xff]
      %v3783 = vld [vmem:[%s927 + $0x70] sm:$0xff]
      %v3784 = vld [vmem:[%s927 + $0x78] sm:$0xff]
      %v3785 = vld [vmem:[%s927 + $0x80] sm:$0xff]
      %v3786 = vld [vmem:[%s927 + $0x88] sm:$0xff]
      %v3787 = vld [vmem:[%s927 + $0x90] sm:$0xff]
      %v3788 = vld [vmem:[%s927 + $0x98] sm:$0xff]
      %v3789 = vld [vmem:[%s927 + $0xa0] sm:$0xff]
      %v3790 = vld [vmem:[%s927 + $0xa8] sm:$0xff]
      %v3791 = vld [vmem:[%s927 + $0xb0] sm:$0xff]
      %v3792 = vld [vmem:[%s927 + $0xb8] sm:$0xff]
      %v3793 = vld [vmem:[%s927 + $0xc0] sm:$0xff]
      %v3794 = vld [vmem:[%s927 + $0xc8] sm:$0xff]
      %v3795 = vld [vmem:[%s927 + $0xd0] sm:$0xff]
      %v3796 = vld [vmem:[%s927 + $0xd8] sm:$0xff]
      %v3797 = vld [vmem:[%s927 + $0xe0] sm:$0xff]
      %v3798 = vld [vmem:[%s927 + $0xe8] sm:$0xff]
      %v3799 = vld [vmem:[%s927 + $0xf0] sm:$0xff]
      %v3800 = vld [vmem:[%s927 + $0xf8] sm:$0xff]
      %v3801 = vld [vmem:[%s927 + $0x100] sm:$0xff]
      %v3802 = vld [vmem:[%s927 + $0x108] sm:$0xff]
      %v3803 = vld [vmem:[%s927 + $0x110] sm:$0xff]
      %v3804 = vld [vmem:[%s927 + $0x118] sm:$0xff]
      %v3805 = vld [vmem:[%s927 + $0x120] sm:$0xff]
      %v3806 = vld [vmem:[%s927 + $0x128] sm:$0xff]
      %v3807 = vld [vmem:[%s927 + $0x130] sm:$0xff]
      %v3808 = vld [vmem:[%s927 + $0x138] sm:$0xff]
      %v3809 = vld [vmem:[%s927 + $0x140] sm:$0xff]
      %v3810 = vld [vmem:[%s927 + $0x148] sm:$0xff]
      %v3811 = vld [vmem:[%s927 + $0x150] sm:$0xff]
      %v3812 = vld [vmem:[%s927 + $0x158] sm:$0xff]
      %v3813 = vld [vmem:[%s927 + $0x160] sm:$0xff]
      %v3814 = vld [vmem:[%s927 + $0x168] sm:$0xff]
      %v3815 = vld [vmem:[%s927 + $0x170] sm:$0xff]
      %v3816 = vld [vmem:[%s927 + $0x178] sm:$0xff]
      %v3817 = vmax.f32 %v3721, %v3769
      %v3818 = vmax.f32 %v3722, %v3770
      %v3819 = vmax.f32 %v3723, %v3771
      %v3820 = vmax.f32 %v3724, %v3772
      %v3821 = vmax.f32 %v3725, %v3773
      %v3822 = vmax.f32 %v3726, %v3774
      %v3823 = vmax.f32 %v3727, %v3775
      %v3824 = vmax.f32 %v3728, %v3776
      %v3825 = vmax.f32 %v3729, %v3777
      %v3826 = vmax.f32 %v3730, %v3778
      %v3827 = vmax.f32 %v3731, %v3779
      %v3828 = vmax.f32 %v3732, %v3780
      %v3829 = vmax.f32 %v3733, %v3781
      %v3830 = vmax.f32 %v3734, %v3782
      %v3831 = vmax.f32 %v3735, %v3783
      %v3832 = vmax.f32 %v3736, %v3784
      %v3833 = vmax.f32 %v3737, %v3785
      %v3834 = vmax.f32 %v3738, %v3786
      %v3835 = vmax.f32 %v3739, %v3787
      %v3836 = vmax.f32 %v3740, %v3788
      %v3837 = vmax.f32 %v3741, %v3789
      %v3838 = vmax.f32 %v3742, %v3790
      %v3839 = vmax.f32 %v3743, %v3791
      %v3840 = vmax.f32 %v3744, %v3792
      %v3841 = vmax.f32 %v3745, %v3793
      %v3842 = vmax.f32 %v3746, %v3794
      %v3843 = vmax.f32 %v3747, %v3795
      %v3844 = vmax.f32 %v3748, %v3796
      %v3845 = vmax.f32 %v3749, %v3797
      %v3846 = vmax.f32 %v3750, %v3798
      %v3847 = vmax.f32 %v3751, %v3799
      %v3848 = vmax.f32 %v3752, %v3800
      %v3849 = vmax.f32 %v3753, %v3801
      %v3850 = vmax.f32 %v3754, %v3802
      %v3851 = vmax.f32 %v3755, %v3803
      %v3852 = vmax.f32 %v3756, %v3804
      %v3853 = vmax.f32 %v3757, %v3805
      %v3854 = vmax.f32 %v3758, %v3806
      %v3855 = vmax.f32 %v3759, %v3807
      %v3856 = vmax.f32 %v3760, %v3808
      %v3857 = vmax.f32 %v3761, %v3809
      %v3858 = vmax.f32 %v3762, %v3810
      %v3859 = vmax.f32 %v3763, %v3811
      %v3860 = vmax.f32 %v3764, %v3812
      %v3861 = vmax.f32 %v3765, %v3813
      %v3862 = vmax.f32 %v3766, %v3814
      %v3863 = vmax.f32 %v3767, %v3815
      %v3864 = vmax.f32 %v3768, %v3816
      %v3865 = vld [vmem:[%s239] sm:$0xff]
      %v3866 = vld [vmem:[%s239 + $0x8] sm:$0xff]
      %v3867 = vld [vmem:[%s239 + $0x10] sm:$0xff]
      %v3868 = vld [vmem:[%s239 + $0x18] sm:$0xff]
      %v3869 = vld [vmem:[%s239 + $0x20] sm:$0xff]
      %v3870 = vld [vmem:[%s239 + $0x28] sm:$0xff]
      %v3871 = vld [vmem:[%s239 + $0x30] sm:$0xff]
      %v3872 = vld [vmem:[%s239 + $0x38] sm:$0xff]
      %v3873 = vld [vmem:[%s239 + $0x40] sm:$0xff]
      %v3874 = vld [vmem:[%s239 + $0x48] sm:$0xff]
      %v3875 = vld [vmem:[%s239 + $0x50] sm:$0xff]
      %v3876 = vld [vmem:[%s239 + $0x58] sm:$0xff]
      %v3877 = vld [vmem:[%s239 + $0x60] sm:$0xff]
      %v3878 = vld [vmem:[%s239 + $0x68] sm:$0xff]
      %v3879 = vld [vmem:[%s239 + $0x70] sm:$0xff]
      %v3880 = vld [vmem:[%s239 + $0x78] sm:$0xff]
      %v3881 = vld [vmem:[%s239 + $0x80] sm:$0xff]
      %v3882 = vld [vmem:[%s239 + $0x88] sm:$0xff]
      %v3883 = vld [vmem:[%s239 + $0x90] sm:$0xff]
      %v3884 = vld [vmem:[%s239 + $0x98] sm:$0xff]
      %v3885 = vld [vmem:[%s239 + $0xa0] sm:$0xff]
      %v3886 = vld [vmem:[%s239 + $0xa8] sm:$0xff]
      %v3887 = vld [vmem:[%s239 + $0xb0] sm:$0xff]
      %v3888 = vld [vmem:[%s239 + $0xb8] sm:$0xff]
      %v3889 = vld [vmem:[%s239 + $0xc0] sm:$0xff]
      %v3890 = vld [vmem:[%s239 + $0xc8] sm:$0xff]
      %v3891 = vld [vmem:[%s239 + $0xd0] sm:$0xff]
      %v3892 = vld [vmem:[%s239 + $0xd8] sm:$0xff]
      %v3893 = vld [vmem:[%s239 + $0xe0] sm:$0xff]
      %v3894 = vld [vmem:[%s239 + $0xe8] sm:$0xff]
      %v3895 = vld [vmem:[%s239 + $0xf0] sm:$0xff]
      %v3896 = vld [vmem:[%s239 + $0xf8] sm:$0xff]
      %v3897 = vld [vmem:[%s239 + $0x100] sm:$0xff]
      %v3898 = vld [vmem:[%s239 + $0x108] sm:$0xff]
      %v3899 = vld [vmem:[%s239 + $0x110] sm:$0xff]
      %v3900 = vld [vmem:[%s239 + $0x118] sm:$0xff]
      %v3901 = vld [vmem:[%s239 + $0x120] sm:$0xff]
      %v3902 = vld [vmem:[%s239 + $0x128] sm:$0xff]
      %v3903 = vld [vmem:[%s239 + $0x130] sm:$0xff]
      %v3904 = vld [vmem:[%s239 + $0x138] sm:$0xff]
      %v3905 = vld [vmem:[%s239 + $0x140] sm:$0xff]
      %v3906 = vld [vmem:[%s239 + $0x148] sm:$0xff]
      %v3907 = vld [vmem:[%s239 + $0x150] sm:$0xff]
      %v3908 = vld [vmem:[%s239 + $0x158] sm:$0xff]
      %v3909 = vld [vmem:[%s239 + $0x160] sm:$0xff]
      %v3910 = vld [vmem:[%s239 + $0x168] sm:$0xff]
      %v3911 = vld [vmem:[%s239 + $0x170] sm:$0xff]
      %v3912 = vld [vmem:[%s239 + $0x178] sm:$0xff]
      %v3913 = vmax.f32 %v3817, %v3865
      %v3914 = vmax.f32 %v3818, %v3866
      %v3915 = vmax.f32 %v3819, %v3867
      %v3916 = vmax.f32 %v3820, %v3868
      %v3917 = vmax.f32 %v3821, %v3869
      %v3918 = vmax.f32 %v3822, %v3870
      %v3919 = vmax.f32 %v3823, %v3871
      %v3920 = vmax.f32 %v3824, %v3872
      %v3921 = vmax.f32 %v3825, %v3873
      %v3922 = vmax.f32 %v3826, %v3874
      %v3923 = vmax.f32 %v3827, %v3875
      %v3924 = vmax.f32 %v3828, %v3876
      %v3925 = vmax.f32 %v3829, %v3877
      %v3926 = vmax.f32 %v3830, %v3878
      %v3927 = vmax.f32 %v3831, %v3879
      %v3928 = vmax.f32 %v3832, %v3880
      %v3929 = vmax.f32 %v3833, %v3881
      %v3930 = vmax.f32 %v3834, %v3882
      %v3931 = vmax.f32 %v3835, %v3883
      %v3932 = vmax.f32 %v3836, %v3884
      %v3933 = vmax.f32 %v3837, %v3885
      %v3934 = vmax.f32 %v3838, %v3886
      %v3935 = vmax.f32 %v3839, %v3887
      %v3936 = vmax.f32 %v3840, %v3888
      %v3937 = vmax.f32 %v3841, %v3889
      %v3938 = vmax.f32 %v3842, %v3890
      %v3939 = vmax.f32 %v3843, %v3891
      %v3940 = vmax.f32 %v3844, %v3892
      %v3941 = vmax.f32 %v3845, %v3893
      %v3942 = vmax.f32 %v3846, %v3894
      %v3943 = vmax.f32 %v3847, %v3895
      %v3944 = vmax.f32 %v3848, %v3896
      %v3945 = vmax.f32 %v3849, %v3897
      %v3946 = vmax.f32 %v3850, %v3898
      %v3947 = vmax.f32 %v3851, %v3899
      %v3948 = vmax.f32 %v3852, %v3900
      %v3949 = vmax.f32 %v3853, %v3901
      %v3950 = vmax.f32 %v3854, %v3902
      %v3951 = vmax.f32 %v3855, %v3903
      %v3952 = vmax.f32 %v3856, %v3904
      %v3953 = vmax.f32 %v3857, %v3905
      %v3954 = vmax.f32 %v3858, %v3906
      %v3955 = vmax.f32 %v3859, %v3907
      %v3956 = vmax.f32 %v3860, %v3908
      %v3957 = vmax.f32 %v3861, %v3909
      %v3958 = vmax.f32 %v3862, %v3910
      %v3959 = vmax.f32 %v3863, %v3911
      %v3960 = vmax.f32 %v3864, %v3912
      %v3961 = vld [vmem:[%s1120] sm:$0xff]
      %v3962 = vld [vmem:[%s1120 + $0x8] sm:$0xff]
      %v3963 = vld [vmem:[%s1120 + $0x10] sm:$0xff]
      %v3964 = vld [vmem:[%s1120 + $0x18] sm:$0xff]
      %v3965 = vld [vmem:[%s1120 + $0x20] sm:$0xff]
      %v3966 = vld [vmem:[%s1120 + $0x28] sm:$0xff]
      %v3967 = vld [vmem:[%s1120 + $0x30] sm:$0xff]
      %v3968 = vld [vmem:[%s1120 + $0x38] sm:$0xff]
      %v3969 = vld [vmem:[%s1120 + $0x40] sm:$0xff]
      %v3970 = vld [vmem:[%s1120 + $0x48] sm:$0xff]
      %v3971 = vld [vmem:[%s1120 + $0x50] sm:$0xff]
      %v3972 = vld [vmem:[%s1120 + $0x58] sm:$0xff]
      %v3973 = vld [vmem:[%s1120 + $0x60] sm:$0xff]
      %v3974 = vld [vmem:[%s1120 + $0x68] sm:$0xff]
      %v3975 = vld [vmem:[%s1120 + $0x70] sm:$0xff]
      %v3976 = vld [vmem:[%s1120 + $0x78] sm:$0xff]
      %v3977 = vld [vmem:[%s1120 + $0x80] sm:$0xff]
      %v3978 = vld [vmem:[%s1120 + $0x88] sm:$0xff]
      %v3979 = vld [vmem:[%s1120 + $0x90] sm:$0xff]
      %v3980 = vld [vmem:[%s1120 + $0x98] sm:$0xff]
      %v3981 = vld [vmem:[%s1120 + $0xa0] sm:$0xff]
      %v3982 = vld [vmem:[%s1120 + $0xa8] sm:$0xff]
      %v3983 = vld [vmem:[%s1120 + $0xb0] sm:$0xff]
      %v3984 = vld [vmem:[%s1120 + $0xb8] sm:$0xff]
      %v3985 = vld [vmem:[%s1120 + $0xc0] sm:$0xff]
      %v3986 = vld [vmem:[%s1120 + $0xc8] sm:$0xff]
      %v3987 = vld [vmem:[%s1120 + $0xd0] sm:$0xff]
      %v3988 = vld [vmem:[%s1120 + $0xd8] sm:$0xff]
      %v3989 = vld [vmem:[%s1120 + $0xe0] sm:$0xff]
      %v3990 = vld [vmem:[%s1120 + $0xe8] sm:$0xff]
      %v3991 = vld [vmem:[%s1120 + $0xf0] sm:$0xff]
      %v3992 = vld [vmem:[%s1120 + $0xf8] sm:$0xff]
      %v3993 = vld [vmem:[%s1120 + $0x100] sm:$0xff]
      %v3994 = vld [vmem:[%s1120 + $0x108] sm:$0xff]
      %v3995 = vld [vmem:[%s1120 + $0x110] sm:$0xff]
      %v3996 = vld [vmem:[%s1120 + $0x118] sm:$0xff]
      %v3997 = vld [vmem:[%s1120 + $0x120] sm:$0xff]
      %v3998 = vld [vmem:[%s1120 + $0x128] sm:$0xff]
      %v3999 = vld [vmem:[%s1120 + $0x130] sm:$0xff]
      %v4000 = vld [vmem:[%s1120 + $0x138] sm:$0xff]
      %v4001 = vld [vmem:[%s1120 + $0x140] sm:$0xff]
      %v4002 = vld [vmem:[%s1120 + $0x148] sm:$0xff]
      %v4003 = vld [vmem:[%s1120 + $0x150] sm:$0xff]
      %v4004 = vld [vmem:[%s1120 + $0x158] sm:$0xff]
      %v4005 = vld [vmem:[%s1120 + $0x160] sm:$0xff]
      %v4006 = vld [vmem:[%s1120 + $0x168] sm:$0xff]
      %v4007 = vld [vmem:[%s1120 + $0x170] sm:$0xff]
      %v4008 = vld [vmem:[%s1120 + $0x178] sm:$0xff]
      %v4009 = vmax.f32 %v3913, %v3961
      %v4010 = vmax.f32 %v3914, %v3962
      %v4011 = vmax.f32 %v3915, %v3963
      %v4012 = vmax.f32 %v3916, %v3964
      %v4013 = vmax.f32 %v3917, %v3965
      %v4014 = vmax.f32 %v3918, %v3966
      %v4015 = vmax.f32 %v3919, %v3967
      %v4016 = vmax.f32 %v3920, %v3968
      %v4017 = vmax.f32 %v3921, %v3969
      %v4018 = vmax.f32 %v3922, %v3970
      %v4019 = vmax.f32 %v3923, %v3971
      %v4020 = vmax.f32 %v3924, %v3972
      %v4021 = vmax.f32 %v3925, %v3973
      %v4022 = vmax.f32 %v3926, %v3974
      %v4023 = vmax.f32 %v3927, %v3975
      %v4024 = vmax.f32 %v3928, %v3976
      %v4025 = vmax.f32 %v3929, %v3977
      %v4026 = vmax.f32 %v3930, %v3978
      %v4027 = vmax.f32 %v3931, %v3979
      %v4028 = vmax.f32 %v3932, %v3980
      %v4029 = vmax.f32 %v3933, %v3981
      %v4030 = vmax.f32 %v3934, %v3982
      %v4031 = vmax.f32 %v3935, %v3983
      %v4032 = vmax.f32 %v3936, %v3984
      %v4033 = vmax.f32 %v3937, %v3985
      %v4034 = vmax.f32 %v3938, %v3986
      %v4035 = vmax.f32 %v3939, %v3987
      %v4036 = vmax.f32 %v3940, %v3988
      %v4037 = vmax.f32 %v3941, %v3989
      %v4038 = vmax.f32 %v3942, %v3990
      %v4039 = vmax.f32 %v3943, %v3991
      %v4040 = vmax.f32 %v3944, %v3992
      %v4041 = vmax.f32 %v3945, %v3993
      %v4042 = vmax.f32 %v3946, %v3994
      %v4043 = vmax.f32 %v3947, %v3995
      %v4044 = vmax.f32 %v3948, %v3996
      %v4045 = vmax.f32 %v3949, %v3997
      %v4046 = vmax.f32 %v3950, %v3998
      %v4047 = vmax.f32 %v3951, %v3999
      %v4048 = vmax.f32 %v3952, %v4000
      %v4049 = vmax.f32 %v3953, %v4001
      %v4050 = vmax.f32 %v3954, %v4002
      %v4051 = vmax.f32 %v3955, %v4003
      %v4052 = vmax.f32 %v3956, %v4004
      %v4053 = vmax.f32 %v3957, %v4005
      %v4054 = vmax.f32 %v3958, %v4006
      %v4055 = vmax.f32 %v3959, %v4007
      %v4056 = vmax.f32 %v3960, %v4008
      %v4057 = vld [vmem:[%s1217] sm:$0xff]
      %v4058 = vld [vmem:[%s1217 + $0x8] sm:$0xff]
      %v4059 = vld [vmem:[%s1217 + $0x10] sm:$0xff]
      %v4060 = vld [vmem:[%s1217 + $0x18] sm:$0xff]
      %v4061 = vld [vmem:[%s1217 + $0x20] sm:$0xff]
      %v4062 = vld [vmem:[%s1217 + $0x28] sm:$0xff]
      %v4063 = vld [vmem:[%s1217 + $0x30] sm:$0xff]
      %v4064 = vld [vmem:[%s1217 + $0x38] sm:$0xff]
      %v4065 = vld [vmem:[%s1217 + $0x40] sm:$0xff]
      %v4066 = vld [vmem:[%s1217 + $0x48] sm:$0xff]
      %v4067 = vld [vmem:[%s1217 + $0x50] sm:$0xff]
      %v4068 = vld [vmem:[%s1217 + $0x58] sm:$0xff]
      %v4069 = vld [vmem:[%s1217 + $0x60] sm:$0xff]
      %v4070 = vld [vmem:[%s1217 + $0x68] sm:$0xff]
      %v4071 = vld [vmem:[%s1217 + $0x70] sm:$0xff]
      %v4072 = vld [vmem:[%s1217 + $0x78] sm:$0xff]
      %v4073 = vld [vmem:[%s1217 + $0x80] sm:$0xff]
      %v4074 = vld [vmem:[%s1217 + $0x88] sm:$0xff]
      %v4075 = vld [vmem:[%s1217 + $0x90] sm:$0xff]
      %v4076 = vld [vmem:[%s1217 + $0x98] sm:$0xff]
      %v4077 = vld [vmem:[%s1217 + $0xa0] sm:$0xff]
      %v4078 = vld [vmem:[%s1217 + $0xa8] sm:$0xff]
      %v4079 = vld [vmem:[%s1217 + $0xb0] sm:$0xff]
      %v4080 = vld [vmem:[%s1217 + $0xb8] sm:$0xff]
      %v4081 = vld [vmem:[%s1217 + $0xc0] sm:$0xff]
      %v4082 = vld [vmem:[%s1217 + $0xc8] sm:$0xff]
      %v4083 = vld [vmem:[%s1217 + $0xd0] sm:$0xff]
      %v4084 = vld [vmem:[%s1217 + $0xd8] sm:$0xff]
      %v4085 = vld [vmem:[%s1217 + $0xe0] sm:$0xff]
      %v4086 = vld [vmem:[%s1217 + $0xe8] sm:$0xff]
      %v4087 = vld [vmem:[%s1217 + $0xf0] sm:$0xff]
      %v4088 = vld [vmem:[%s1217 + $0xf8] sm:$0xff]
      %v4089 = vld [vmem:[%s1217 + $0x100] sm:$0xff]
      %v4090 = vld [vmem:[%s1217 + $0x108] sm:$0xff]
      %v4091 = vld [vmem:[%s1217 + $0x110] sm:$0xff]
      %v4092 = vld [vmem:[%s1217 + $0x118] sm:$0xff]
      %v4093 = vld [vmem:[%s1217 + $0x120] sm:$0xff]
      %v4094 = vld [vmem:[%s1217 + $0x128] sm:$0xff]
      %v4095 = vld [vmem:[%s1217 + $0x130] sm:$0xff]
      %v4096 = vld [vmem:[%s1217 + $0x138] sm:$0xff]
      %v4097 = vld [vmem:[%s1217 + $0x140] sm:$0xff]
      %v4098 = vld [vmem:[%s1217 + $0x148] sm:$0xff]
      %v4099 = vld [vmem:[%s1217 + $0x150] sm:$0xff]
      %v4100 = vld [vmem:[%s1217 + $0x158] sm:$0xff]
      %v4101 = vld [vmem:[%s1217 + $0x160] sm:$0xff]
      %v4102 = vld [vmem:[%s1217 + $0x168] sm:$0xff]
      %v4103 = vld [vmem:[%s1217 + $0x170] sm:$0xff]
      %v4104 = vld [vmem:[%s1217 + $0x178] sm:$0xff]
      %v4105 = vmax.f32 %v4009, %v4057
      %v4106 = vmax.f32 %v4010, %v4058
      %v4107 = vmax.f32 %v4011, %v4059
      %v4108 = vmax.f32 %v4012, %v4060
      %v4109 = vmax.f32 %v4013, %v4061
      %v4110 = vmax.f32 %v4014, %v4062
      %v4111 = vmax.f32 %v4015, %v4063
      %v4112 = vmax.f32 %v4016, %v4064
      %v4113 = vmax.f32 %v4017, %v4065
      %v4114 = vmax.f32 %v4018, %v4066
      %v4115 = vmax.f32 %v4019, %v4067
      %v4116 = vmax.f32 %v4020, %v4068
      %v4117 = vmax.f32 %v4021, %v4069
      %v4118 = vmax.f32 %v4022, %v4070
      %v4119 = vmax.f32 %v4023, %v4071
      %v4120 = vmax.f32 %v4024, %v4072
      %v4121 = vmax.f32 %v4025, %v4073
      %v4122 = vmax.f32 %v4026, %v4074
      %v4123 = vmax.f32 %v4027, %v4075
      %v4124 = vmax.f32 %v4028, %v4076
      %v4125 = vmax.f32 %v4029, %v4077
      %v4126 = vmax.f32 %v4030, %v4078
      %v4127 = vmax.f32 %v4031, %v4079
      %v4128 = vmax.f32 %v4032, %v4080
      %v4129 = vmax.f32 %v4033, %v4081
      %v4130 = vmax.f32 %v4034, %v4082
      %v4131 = vmax.f32 %v4035, %v4083
      %v4132 = vmax.f32 %v4036, %v4084
      %v4133 = vmax.f32 %v4037, %v4085
      %v4134 = vmax.f32 %v4038, %v4086
      %v4135 = vmax.f32 %v4039, %v4087
      %v4136 = vmax.f32 %v4040, %v4088
      %v4137 = vmax.f32 %v4041, %v4089
      %v4138 = vmax.f32 %v4042, %v4090
      %v4139 = vmax.f32 %v4043, %v4091
      %v4140 = vmax.f32 %v4044, %v4092
      %v4141 = vmax.f32 %v4045, %v4093
      %v4142 = vmax.f32 %v4046, %v4094
      %v4143 = vmax.f32 %v4047, %v4095
      %v4144 = vmax.f32 %v4048, %v4096
      %v4145 = vmax.f32 %v4049, %v4097
      %v4146 = vmax.f32 %v4050, %v4098
      %v4147 = vmax.f32 %v4051, %v4099
      %v4148 = vmax.f32 %v4052, %v4100
      %v4149 = vmax.f32 %v4053, %v4101
      %v4150 = vmax.f32 %v4054, %v4102
      %v4151 = vmax.f32 %v4055, %v4103
      %v4152 = vmax.f32 %v4056, %v4104
      %v4153 = vrot.slane %v4105, 7
      %v4154 = vrot.slane %v4108, 7
      %v4155 = vrot.slane %v4111, 7
      %v4156 = vrot.slane %v4114, 7
      %v4157 = vrot.slane %v4117, 7
      %v4158 = vrot.slane %v4120, 7
      %v4159 = vrot.slane %v4123, 7
      %v4160 = vrot.slane %v4126, 7
      %v4161 = vrot.slane %v4129, 7
      %v4162 = vrot.slane %v4132, 7
      %v4163 = vrot.slane %v4135, 7
      %v4164 = vrot.slane %v4138, 7
      %v4165 = vrot.slane %v4141, 7
      %v4166 = vrot.slane %v4144, 7
      %v4167 = vrot.slane %v4147, 7
      %v4168 = vrot.slane %v4150, 7
      %v4169 = vrot.slane %v4106, 7
      %v4170 = vrot.slane %v4109, 7
      %v4171 = vrot.slane %v4112, 7
      %v4172 = vrot.slane %v4115, 7
      %v4173 = vrot.slane %v4118, 7
      %v4174 = vrot.slane %v4121, 7
      %v4175 = vrot.slane %v4124, 7
      %v4176 = vrot.slane %v4127, 7
      %v4177 = vrot.slane %v4130, 7
      %v4178 = vrot.slane %v4133, 7
      %v4179 = vrot.slane %v4136, 7
      %v4180 = vrot.slane %v4139, 7
      %v4181 = vrot.slane %v4142, 7
      %v4182 = vrot.slane %v4145, 7
      %v4183 = vrot.slane %v4148, 7
      %v4184 = vrot.slane %v4151, 7
      %v4185 = vrot.slane %v4107, 7
      %v4186 = vrot.slane %v4110, 7
      %v4187 = vrot.slane %v4113, 7
      %v4188 = vrot.slane %v4116, 7
      %v4189 = vrot.slane %v4119, 7
      %v4190 = vrot.slane %v4122, 7
      %v4191 = vrot.slane %v4125, 7
      %v4192 = vrot.slane %v4128, 7
      %v4193 = vrot.slane %v4131, 7
      %v4194 = vrot.slane %v4134, 7
      %v4195 = vrot.slane %v4137, 7
      %v4196 = vrot.slane %v4140, 7
      %v4197 = vrot.slane %v4143, 7
      %v4198 = vrot.slane %v4146, 7
      %v4199 = vrot.slane %v4149, 7
      %v4200 = vrot.slane %v4152, 7
      %v4201 = vsel %vm1364, %v4153, %v4169
      %v4202 = vsel %vm1364, %v4154, %v4170
      %v4203 = vsel %vm1364, %v4155, %v4171
      %v4204 = vsel %vm1364, %v4156, %v4172
      %v4205 = vsel %vm1364, %v4157, %v4173
      %v4206 = vsel %vm1364, %v4158, %v4174
      %v4207 = vsel %vm1364, %v4159, %v4175
      %v4208 = vsel %vm1364, %v4160, %v4176
      %v4209 = vsel %vm1364, %v4161, %v4177
      %v4210 = vsel %vm1364, %v4162, %v4178
      %v4211 = vsel %vm1364, %v4163, %v4179
      %v4212 = vsel %vm1364, %v4164, %v4180
      %v4213 = vsel %vm1364, %v4165, %v4181
      %v4214 = vsel %vm1364, %v4166, %v4182
      %v4215 = vsel %vm1364, %v4167, %v4183
      %v4216 = vsel %vm1364, %v4168, %v4184
      %v4217 = vsel %vm1364, %v4185, %v4153
      %v4218 = vsel %vm1364, %v4186, %v4154
      %v4219 = vsel %vm1364, %v4187, %v4155
      %v4220 = vsel %vm1364, %v4188, %v4156
      %v4221 = vsel %vm1364, %v4189, %v4157
      %v4222 = vsel %vm1364, %v4190, %v4158
      %v4223 = vsel %vm1364, %v4191, %v4159
      %v4224 = vsel %vm1364, %v4192, %v4160
      %v4225 = vsel %vm1364, %v4193, %v4161
      %v4226 = vsel %vm1364, %v4194, %v4162
      %v4227 = vsel %vm1364, %v4195, %v4163
      %v4228 = vsel %vm1364, %v4196, %v4164
      %v4229 = vsel %vm1364, %v4197, %v4165
      %v4230 = vsel %vm1364, %v4198, %v4166
      %v4231 = vsel %vm1364, %v4199, %v4167
      %v4232 = vsel %vm1364, %v4200, %v4168
      %v4233 = vmax.f32 %v4105, %v4217
      %v4234 = vmax.f32 %v4106, %v4201
      %v4235 = vmax.f32 %v4108, %v4218
      %v4236 = vmax.f32 %v4109, %v4202
      %v4237 = vmax.f32 %v4111, %v4219
      %v4238 = vmax.f32 %v4112, %v4203
      %v4239 = vmax.f32 %v4114, %v4220
      %v4240 = vmax.f32 %v4115, %v4204
      %v4241 = vmax.f32 %v4117, %v4221
      %v4242 = vmax.f32 %v4118, %v4205
      %v4243 = vmax.f32 %v4120, %v4222
      %v4244 = vmax.f32 %v4121, %v4206
      %v4245 = vmax.f32 %v4123, %v4223
      %v4246 = vmax.f32 %v4124, %v4207
      %v4247 = vmax.f32 %v4126, %v4224
      %v4248 = vmax.f32 %v4127, %v4208
      %v4249 = vmax.f32 %v4129, %v4225
      %v4250 = vmax.f32 %v4130, %v4209
      %v4251 = vmax.f32 %v4132, %v4226
      %v4252 = vmax.f32 %v4133, %v4210
      %v4253 = vmax.f32 %v4135, %v4227
      %v4254 = vmax.f32 %v4136, %v4211
      %v4255 = vmax.f32 %v4138, %v4228
      %v4256 = vmax.f32 %v4139, %v4212
      %v4257 = vmax.f32 %v4141, %v4229
      %v4258 = vmax.f32 %v4142, %v4213
      %v4259 = vmax.f32 %v4144, %v4230
      %v4260 = vmax.f32 %v4145, %v4214
      %v4261 = vmax.f32 %v4147, %v4231
      %v4262 = vmax.f32 %v4148, %v4215
      %v4263 = vmax.f32 %v4150, %v4232
      %v4264 = vmax.f32 %v4151, %v4216
      %v4265 = vrot.slane %v4105, 1
      %v4266 = vrot.slane %v4108, 1
      %v4267 = vrot.slane %v4111, 1
      %v4268 = vrot.slane %v4114, 1
      %v4269 = vrot.slane %v4117, 1
      %v4270 = vrot.slane %v4120, 1
      %v4271 = vrot.slane %v4123, 1
      %v4272 = vrot.slane %v4126, 1
      %v4273 = vrot.slane %v4129, 1
      %v4274 = vrot.slane %v4132, 1
      %v4275 = vrot.slane %v4135, 1
      %v4276 = vrot.slane %v4138, 1
      %v4277 = vrot.slane %v4141, 1
      %v4278 = vrot.slane %v4144, 1
      %v4279 = vrot.slane %v4147, 1
      %v4280 = vrot.slane %v4150, 1
      %v4281 = vrot.slane %v4106, 1
      %v4282 = vrot.slane %v4109, 1
      %v4283 = vrot.slane %v4112, 1
      %v4284 = vrot.slane %v4115, 1
      %v4285 = vrot.slane %v4118, 1
      %v4286 = vrot.slane %v4121, 1
      %v4287 = vrot.slane %v4124, 1
      %v4288 = vrot.slane %v4127, 1
      %v4289 = vrot.slane %v4130, 1
      %v4290 = vrot.slane %v4133, 1
      %v4291 = vrot.slane %v4136, 1
      %v4292 = vrot.slane %v4139, 1
      %v4293 = vrot.slane %v4142, 1
      %v4294 = vrot.slane %v4145, 1
      %v4295 = vrot.slane %v4148, 1
      %v4296 = vrot.slane %v4151, 1
      %v4297 = vrot.slane %v4107, 1
      %v4298 = vrot.slane %v4110, 1
      %v4299 = vrot.slane %v4113, 1
      %v4300 = vrot.slane %v4116, 1
      %v4301 = vrot.slane %v4119, 1
      %v4302 = vrot.slane %v4122, 1
      %v4303 = vrot.slane %v4125, 1
      %v4304 = vrot.slane %v4128, 1
      %v4305 = vrot.slane %v4131, 1
      %v4306 = vrot.slane %v4134, 1
      %v4307 = vrot.slane %v4137, 1
      %v4308 = vrot.slane %v4140, 1
      %v4309 = vrot.slane %v4143, 1
      %v4310 = vrot.slane %v4146, 1
      %v4311 = vrot.slane %v4149, 1
      %v4312 = vrot.slane %v4152, 1
      %v4313 = vsel %vm1477, %v4281, %v4297
      %v4314 = vsel %vm1477, %v4282, %v4298
      %v4315 = vsel %vm1477, %v4283, %v4299
      %v4316 = vsel %vm1477, %v4284, %v4300
      %v4317 = vsel %vm1477, %v4285, %v4301
      %v4318 = vsel %vm1477, %v4286, %v4302
      %v4319 = vsel %vm1477, %v4287, %v4303
      %v4320 = vsel %vm1477, %v4288, %v4304
      %v4321 = vsel %vm1477, %v4289, %v4305
      %v4322 = vsel %vm1477, %v4290, %v4306
      %v4323 = vsel %vm1477, %v4291, %v4307
      %v4324 = vsel %vm1477, %v4292, %v4308
      %v4325 = vsel %vm1477, %v4293, %v4309
      %v4326 = vsel %vm1477, %v4294, %v4310
      %v4327 = vsel %vm1477, %v4295, %v4311
      %v4328 = vsel %vm1477, %v4296, %v4312
      %v4329 = vsel %vm1477, %v4265, %v4281
      %v4330 = vsel %vm1477, %v4266, %v4282
      %v4331 = vsel %vm1477, %v4267, %v4283
      %v4332 = vsel %vm1477, %v4268, %v4284
      %v4333 = vsel %vm1477, %v4269, %v4285
      %v4334 = vsel %vm1477, %v4270, %v4286
      %v4335 = vsel %vm1477, %v4271, %v4287
      %v4336 = vsel %vm1477, %v4272, %v4288
      %v4337 = vsel %vm1477, %v4273, %v4289
      %v4338 = vsel %vm1477, %v4274, %v4290
      %v4339 = vsel %vm1477, %v4275, %v4291
      %v4340 = vsel %vm1477, %v4276, %v4292
      %v4341 = vsel %vm1477, %v4277, %v4293
      %v4342 = vsel %vm1477, %v4278, %v4294
      %v4343 = vsel %vm1477, %v4279, %v4295
      %v4344 = vsel %vm1477, %v4280, %v4296
      %v4345 = vmax.f32 %v4233, %v4329
      %v4346 = vmax.f32 %v4234, %v4313
      %v4347 = vmax.f32 %v4235, %v4330
      %v4348 = vmax.f32 %v4236, %v4314
      %v4349 = vmax.f32 %v4237, %v4331
      %v4350 = vmax.f32 %v4238, %v4315
      %v4351 = vmax.f32 %v4239, %v4332
      %v4352 = vmax.f32 %v4240, %v4316
      %v4353 = vmax.f32 %v4241, %v4333
      %v4354 = vmax.f32 %v4242, %v4317
      %v4355 = vmax.f32 %v4243, %v4334
      %v4356 = vmax.f32 %v4244, %v4318
      %v4357 = vmax.f32 %v4245, %v4335
      %v4358 = vmax.f32 %v4246, %v4319
      %v4359 = vmax.f32 %v4247, %v4336
      %v4360 = vmax.f32 %v4248, %v4320
      %v4361 = vmax.f32 %v4249, %v4337
      %v4362 = vmax.f32 %v4250, %v4321
      %v4363 = vmax.f32 %v4251, %v4338
      %v4364 = vmax.f32 %v4252, %v4322
      %v4365 = vmax.f32 %v4253, %v4339
      %v4366 = vmax.f32 %v4254, %v4323
      %v4367 = vmax.f32 %v4255, %v4340
      %v4368 = vmax.f32 %v4256, %v4324
      %v4369 = vmax.f32 %v4257, %v4341
      %v4370 = vmax.f32 %v4258, %v4325
      %v4371 = vmax.f32 %v4259, %v4342
      %v4372 = vmax.f32 %v4260, %v4326
      %v4373 = vmax.f32 %v4261, %v4343
      %v4374 = vmax.f32 %v4262, %v4327
      %v4375 = vmax.f32 %v4263, %v4344
      %v4376 = vmax.f32 %v4264, %v4328
      %v4377 = vrot.slane %v4105, 6
      %v4378 = vrot.slane %v4108, 6
      %v4379 = vrot.slane %v4111, 6
      %v4380 = vrot.slane %v4114, 6
      %v4381 = vrot.slane %v4117, 6
      %v4382 = vrot.slane %v4120, 6
      %v4383 = vrot.slane %v4123, 6
      %v4384 = vrot.slane %v4126, 6
      %v4385 = vrot.slane %v4129, 6
      %v4386 = vrot.slane %v4132, 6
      %v4387 = vrot.slane %v4135, 6
      %v4388 = vrot.slane %v4138, 6
      %v4389 = vrot.slane %v4141, 6
      %v4390 = vrot.slane %v4144, 6
      %v4391 = vrot.slane %v4147, 6
      %v4392 = vrot.slane %v4150, 6
      %v4393 = vrot.slane %v4106, 6
      %v4394 = vrot.slane %v4109, 6
      %v4395 = vrot.slane %v4112, 6
      %v4396 = vrot.slane %v4115, 6
      %v4397 = vrot.slane %v4118, 6
      %v4398 = vrot.slane %v4121, 6
      %v4399 = vrot.slane %v4124, 6
      %v4400 = vrot.slane %v4127, 6
      %v4401 = vrot.slane %v4130, 6
      %v4402 = vrot.slane %v4133, 6
      %v4403 = vrot.slane %v4136, 6
      %v4404 = vrot.slane %v4139, 6
      %v4405 = vrot.slane %v4142, 6
      %v4406 = vrot.slane %v4145, 6
      %v4407 = vrot.slane %v4148, 6
      %v4408 = vrot.slane %v4151, 6
      %v4409 = vrot.slane %v4107, 6
      %v4410 = vrot.slane %v4110, 6
      %v4411 = vrot.slane %v4113, 6
      %v4412 = vrot.slane %v4116, 6
      %v4413 = vrot.slane %v4119, 6
      %v4414 = vrot.slane %v4122, 6
      %v4415 = vrot.slane %v4125, 6
      %v4416 = vrot.slane %v4128, 6
      %v4417 = vrot.slane %v4131, 6
      %v4418 = vrot.slane %v4134, 6
      %v4419 = vrot.slane %v4137, 6
      %v4420 = vrot.slane %v4140, 6
      %v4421 = vrot.slane %v4143, 6
      %v4422 = vrot.slane %v4146, 6
      %v4423 = vrot.slane %v4149, 6
      %v4424 = vrot.slane %v4152, 6
      %v4425 = vsel %vm1590, %v4377, %v4393
      %v4426 = vsel %vm1590, %v4378, %v4394
      %v4427 = vsel %vm1590, %v4379, %v4395
      %v4428 = vsel %vm1590, %v4380, %v4396
      %v4429 = vsel %vm1590, %v4381, %v4397
      %v4430 = vsel %vm1590, %v4382, %v4398
      %v4431 = vsel %vm1590, %v4383, %v4399
      %v4432 = vsel %vm1590, %v4384, %v4400
      %v4433 = vsel %vm1590, %v4385, %v4401
      %v4434 = vsel %vm1590, %v4386, %v4402
      %v4435 = vsel %vm1590, %v4387, %v4403
      %v4436 = vsel %vm1590, %v4388, %v4404
      %v4437 = vsel %vm1590, %v4389, %v4405
      %v4438 = vsel %vm1590, %v4390, %v4406
      %v4439 = vsel %vm1590, %v4391, %v4407
      %v4440 = vsel %vm1590, %v4392, %v4408
      %v4441 = vsel %vm1590, %v4409, %v4377
      %v4442 = vsel %vm1590, %v4410, %v4378
      %v4443 = vsel %vm1590, %v4411, %v4379
      %v4444 = vsel %vm1590, %v4412, %v4380
      %v4445 = vsel %vm1590, %v4413, %v4381
      %v4446 = vsel %vm1590, %v4414, %v4382
      %v4447 = vsel %vm1590, %v4415, %v4383
      %v4448 = vsel %vm1590, %v4416, %v4384
      %v4449 = vsel %vm1590, %v4417, %v4385
      %v4450 = vsel %vm1590, %v4418, %v4386
      %v4451 = vsel %vm1590, %v4419, %v4387
      %v4452 = vsel %vm1590, %v4420, %v4388
      %v4453 = vsel %vm1590, %v4421, %v4389
      %v4454 = vsel %vm1590, %v4422, %v4390
      %v4455 = vsel %vm1590, %v4423, %v4391
      %v4456 = vsel %vm1590, %v4424, %v4392
      %v4457 = vmax.f32 %v4345, %v4441
      %v4458 = vmax.f32 %v4346, %v4425
      %v4459 = vmax.f32 %v4347, %v4442
      %v4460 = vmax.f32 %v4348, %v4426
      %v4461 = vmax.f32 %v4349, %v4443
      %v4462 = vmax.f32 %v4350, %v4427
      %v4463 = vmax.f32 %v4351, %v4444
      %v4464 = vmax.f32 %v4352, %v4428
      %v4465 = vmax.f32 %v4353, %v4445
      %v4466 = vmax.f32 %v4354, %v4429
      %v4467 = vmax.f32 %v4355, %v4446
      %v4468 = vmax.f32 %v4356, %v4430
      %v4469 = vmax.f32 %v4357, %v4447
      %v4470 = vmax.f32 %v4358, %v4431
      %v4471 = vmax.f32 %v4359, %v4448
      %v4472 = vmax.f32 %v4360, %v4432
      %v4473 = vmax.f32 %v4361, %v4449
      %v4474 = vmax.f32 %v4362, %v4433
      %v4475 = vmax.f32 %v4363, %v4450
      %v4476 = vmax.f32 %v4364, %v4434
      %v4477 = vmax.f32 %v4365, %v4451
      %v4478 = vmax.f32 %v4366, %v4435
      %v4479 = vmax.f32 %v4367, %v4452
      %v4480 = vmax.f32 %v4368, %v4436
      %v4481 = vmax.f32 %v4369, %v4453
      %v4482 = vmax.f32 %v4370, %v4437
      %v4483 = vmax.f32 %v4371, %v4454
      %v4484 = vmax.f32 %v4372, %v4438
      %v4485 = vmax.f32 %v4373, %v4455
      %v4486 = vmax.f32 %v4374, %v4439
      %v4487 = vmax.f32 %v4375, %v4456
      %v4488 = vmax.f32 %v4376, %v4440
      %v4489 = vrot.slane %v4105, 2
      %v4490 = vrot.slane %v4108, 2
      %v4491 = vrot.slane %v4111, 2
      %v4492 = vrot.slane %v4114, 2
      %v4493 = vrot.slane %v4117, 2
      %v4494 = vrot.slane %v4120, 2
      %v4495 = vrot.slane %v4123, 2
      %v4496 = vrot.slane %v4126, 2
      %v4497 = vrot.slane %v4129, 2
      %v4498 = vrot.slane %v4132, 2
      %v4499 = vrot.slane %v4135, 2
      %v4500 = vrot.slane %v4138, 2
      %v4501 = vrot.slane %v4141, 2
      %v4502 = vrot.slane %v4144, 2
      %v4503 = vrot.slane %v4147, 2
      %v4504 = vrot.slane %v4150, 2
      %v4505 = vrot.slane %v4106, 2
      %v4506 = vrot.slane %v4109, 2
      %v4507 = vrot.slane %v4112, 2
      %v4508 = vrot.slane %v4115, 2
      %v4509 = vrot.slane %v4118, 2
      %v4510 = vrot.slane %v4121, 2
      %v4511 = vrot.slane %v4124, 2
      %v4512 = vrot.slane %v4127, 2
      %v4513 = vrot.slane %v4130, 2
      %v4514 = vrot.slane %v4133, 2
      %v4515 = vrot.slane %v4136, 2
      %v4516 = vrot.slane %v4139, 2
      %v4517 = vrot.slane %v4142, 2
      %v4518 = vrot.slane %v4145, 2
      %v4519 = vrot.slane %v4148, 2
      %v4520 = vrot.slane %v4151, 2
      %v4521 = vrot.slane %v4107, 2
      %v4522 = vrot.slane %v4110, 2
      %v4523 = vrot.slane %v4113, 2
      %v4524 = vrot.slane %v4116, 2
      %v4525 = vrot.slane %v4119, 2
      %v4526 = vrot.slane %v4122, 2
      %v4527 = vrot.slane %v4125, 2
      %v4528 = vrot.slane %v4128, 2
      %v4529 = vrot.slane %v4131, 2
      %v4530 = vrot.slane %v4134, 2
      %v4531 = vrot.slane %v4137, 2
      %v4532 = vrot.slane %v4140, 2
      %v4533 = vrot.slane %v4143, 2
      %v4534 = vrot.slane %v4146, 2
      %v4535 = vrot.slane %v4149, 2
      %v4536 = vrot.slane %v4152, 2
      %v4537 = vsel %vm1703, %v4505, %v4521
      %v4538 = vsel %vm1703, %v4506, %v4522
      %v4539 = vsel %vm1703, %v4507, %v4523
      %v4540 = vsel %vm1703, %v4508, %v4524
      %v4541 = vsel %vm1703, %v4509, %v4525
      %v4542 = vsel %vm1703, %v4510, %v4526
      %v4543 = vsel %vm1703, %v4511, %v4527
      %v4544 = vsel %vm1703, %v4512, %v4528
      %v4545 = vsel %vm1703, %v4513, %v4529
      %v4546 = vsel %vm1703, %v4514, %v4530
      %v4547 = vsel %vm1703, %v4515, %v4531
      %v4548 = vsel %vm1703, %v4516, %v4532
      %v4549 = vsel %vm1703, %v4517, %v4533
      %v4550 = vsel %vm1703, %v4518, %v4534
      %v4551 = vsel %vm1703, %v4519, %v4535
      %v4552 = vsel %vm1703, %v4520, %v4536
      %v4553 = vsel %vm1703, %v4489, %v4505
      %v4554 = vsel %vm1703, %v4490, %v4506
      %v4555 = vsel %vm1703, %v4491, %v4507
      %v4556 = vsel %vm1703, %v4492, %v4508
      %v4557 = vsel %vm1703, %v4493, %v4509
      %v4558 = vsel %vm1703, %v4494, %v4510
      %v4559 = vsel %vm1703, %v4495, %v4511
      %v4560 = vsel %vm1703, %v4496, %v4512
      %v4561 = vsel %vm1703, %v4497, %v4513
      %v4562 = vsel %vm1703, %v4498, %v4514
      %v4563 = vsel %vm1703, %v4499, %v4515
      %v4564 = vsel %vm1703, %v4500, %v4516
      %v4565 = vsel %vm1703, %v4501, %v4517
      %v4566 = vsel %vm1703, %v4502, %v4518
      %v4567 = vsel %vm1703, %v4503, %v4519
      %v4568 = vsel %vm1703, %v4504, %v4520
      %v4569 = vmax.f32 %v4457, %v4553
      %v4570 = vmax.f32 %v4458, %v4537
      %v4571 = vmax.f32 %v4459, %v4554
      %v4572 = vmax.f32 %v4460, %v4538
      %v4573 = vmax.f32 %v4461, %v4555
      %v4574 = vmax.f32 %v4462, %v4539
      %v4575 = vmax.f32 %v4463, %v4556
      %v4576 = vmax.f32 %v4464, %v4540
      %v4577 = vmax.f32 %v4465, %v4557
      %v4578 = vmax.f32 %v4466, %v4541
      %v4579 = vmax.f32 %v4467, %v4558
      %v4580 = vmax.f32 %v4468, %v4542
      %v4581 = vmax.f32 %v4469, %v4559
      %v4582 = vmax.f32 %v4470, %v4543
      %v4583 = vmax.f32 %v4471, %v4560
      %v4584 = vmax.f32 %v4472, %v4544
      %v4585 = vmax.f32 %v4473, %v4561
      %v4586 = vmax.f32 %v4474, %v4545
      %v4587 = vmax.f32 %v4475, %v4562
      %v4588 = vmax.f32 %v4476, %v4546
      %v4589 = vmax.f32 %v4477, %v4563
      %v4590 = vmax.f32 %v4478, %v4547
      %v4591 = vmax.f32 %v4479, %v4564
      %v4592 = vmax.f32 %v4480, %v4548
      %v4593 = vmax.f32 %v4481, %v4565
      %v4594 = vmax.f32 %v4482, %v4549
      %v4595 = vmax.f32 %v4483, %v4566
      %v4596 = vmax.f32 %v4484, %v4550
      %v4597 = vmax.f32 %v4485, %v4567
      %v4598 = vmax.f32 %v4486, %v4551
      %v4599 = vmax.f32 %v4487, %v4568
      %v4600 = vmax.f32 %v4488, %v4552
      %s4601 = scalar_lea.vmem %s3, 6
      %v4602 = vld [vmem:[%s4601] sm:$0x3]
      %v4604 = vsel %vm225, %v4569, 0
      %v4607 = vsel %vm225, %v4570, 0
      %v4610 = vsel %vm225, %v4571, 0
      %v4613 = vsel %vm225, %v4572, 0
      %v4616 = vsel %vm225, %v4573, 0
      %v4619 = vsel %vm225, %v4574, 0
      %v4622 = vsel %vm225, %v4575, 0
      %v4625 = vsel %vm225, %v4576, 0
      %v4628 = vsel %vm225, %v4577, 0
      %v4631 = vsel %vm225, %v4578, 0
      %v4634 = vsel %vm225, %v4579, 0
      %v4637 = vsel %vm225, %v4580, 0
      %v4640 = vsel %vm225, %v4581, 0
      %v4643 = vsel %vm225, %v4582, 0
      %v4646 = vsel %vm225, %v4583, 0
      %v4649 = vsel %vm225, %v4584, 0
      %v4652 = vsel %vm225, %v4585, 0
      %v4655 = vsel %vm225, %v4586, 0
      %v4658 = vsel %vm225, %v4587, 0
      %v4661 = vsel %vm225, %v4588, 0
      %v4664 = vsel %vm225, %v4589, 0
      %v4667 = vsel %vm225, %v4590, 0
      %v4670 = vsel %vm225, %v4591, 0
      %v4673 = vsel %vm225, %v4592, 0
      %v4676 = vsel %vm225, %v4593, 0
      %v4679 = vsel %vm225, %v4594, 0
      %v4682 = vsel %vm225, %v4595, 0
      %v4685 = vsel %vm225, %v4596, 0
      %v4688 = vsel %vm225, %v4597, 0
      %v4691 = vsel %vm225, %v4598, 0
      %v4694 = vsel %vm225, %v4599, 0
      %v4697 = vsel %vm225, %v4600, 0
      %v4700 = vsel %vm1866, %v4602, 0
      %4702 = vmatprep.subr.mxu0 0.0
      %4703 = vmatpush1.msra.mxu0 0.0
      %4704 = vmatprep.subr.mxu0 0.0
      %4705 = vmatpush1.msra.mxu0 0.0
      %4706 = vmatprep.subr.mxu0 0.0
      %4707 = vmatpush1.msra.mxu0 0.0
      %4708 = vmatprep.subr.mxu0 0.0
      %4709 = vmatpush1.msra.mxu0 0.0
      %4710 = vmatprep.subr.mxu0 0.0
      %4711 = vmatpush1.msra.mxu0 0.0
      %4712 = vmatprep.subr.mxu0 0.0
      %4713 = vmatpush1.msra.mxu0 0.0
      %4714 = vmatprep.subr.mxu0 0.0
      %4715 = vmatpush1.msra.mxu0 0.0
      %4716 = vmatprep.subr.mxu0 0.0
      %4717 = vmatpush1.msra.mxu0 0.0
      %4718 = vmatprep.subr.mxu0 0.0
      %4719 = vmatpush1.msra.mxu0 0.0
      %4720 = vmatprep.subr.mxu0 0.0
      %4721 = vmatpush1.msra.mxu0 0.0
      %4722 = vmatprep.subr.mxu0 0.0
      %4723 = vmatpush1.msra.mxu0 0.0
      %4724 = vmatprep.subr.mxu0 0.0
      %4725 = vmatpush1.msra.mxu0 0.0
      %4726 = vmatprep.subr.mxu0 0.0
      %4727 = vmatpush1.msra.mxu0 0.0
      %4728 = vmatprep.subr.mxu0 0.0
      %4729 = vmatpush1.msra.mxu0 0.0
      %4730 = vmatprep.subr.mxu0 0.0
      %4731 = vmatpush1.msra.mxu0 0.0
      %4732 = vmatprep.subr.mxu0 0.0
      %4733 = vmatpush1.msra.mxu0 %v4700
      %4734 = vmatprep.subr.mxu0 0.0
      %4735 = vmatpush2.msra.mxu0 0.0
      %4736 = vmatprep.subr.mxu0 0.0
      %4737 = vmatpush2.msra.mxu0 0.0
      %4738 = vmatprep.subr.mxu0 0.0
      %4739 = vmatpush2.msra.mxu0 0.0
      %4740 = vmatprep.subr.mxu0 0.0
      %4741 = vmatpush2.msra.mxu0 0.0
      %4742 = vmatprep.subr.mxu0 0.0
      %4743 = vmatpush2.msra.mxu0 0.0
      %4744 = vmatprep.subr.mxu0 0.0
      %4745 = vmatpush2.msra.mxu0 0.0
      %4746 = vmatprep.subr.mxu0 0.0
      %4747 = vmatpush2.msra.mxu0 0.0
      %4748 = vmatprep.subr.mxu0 0.0
      %4749 = vmatpush2.msra.mxu0 0.0
      %4750 = vmatprep.subr.mxu0 0.0
      %4751 = vmatpush2.msra.mxu0 0.0
      %4752 = vmatprep.subr.mxu0 0.0
      %4753 = vmatpush2.msra.mxu0 0.0
      %4754 = vmatprep.subr.mxu0 0.0
      %4755 = vmatpush2.msra.mxu0 0.0
      %4756 = vmatprep.subr.mxu0 0.0
      %4757 = vmatpush2.msra.mxu0 0.0
      %4758 = vmatprep.subr.mxu0 0.0
      %4759 = vmatpush2.msra.mxu0 0.0
      %4760 = vmatprep.subr.mxu0 0.0
      %4761 = vmatpush2.msra.mxu0 0.0
      %4762 = vmatprep.subr.mxu0 0.0
      %4763 = vmatpush2.msra.mxu0 0.0
      %4764 = vmatprep.subr.mxu0 0.0
      %4765 = vmatpush2.msra.mxu0 0.0
      %4766 = vmatprep.mubr.f32.mxu0 0.0
      %4767 = vmatmul.mubr.f32.gmra.mxu0 %v4604
      %v4768 = vpop.f32.mrf.mxu0
      %v4769 = vadd.f32 0.0, %v4768
      %v4770 = vpop.f32.mrf.mxu0
      %4771 = vmatprep.mubr.f32.mxu0 0.0
      %4772 = vmatmul.mubr.f32.gmra.mxu0 %v4607
      %v4773 = vpop.f32.mrf.mxu0
      %v4774 = vadd.f32 0.0, %v4773
      %v4775 = vpop.f32.mrf.mxu0
      %4776 = vmatprep.mubr.f32.mxu0 0.0
      %4777 = vmatmul.mubr.f32.gmra.mxu0 %v4610
      %v4778 = vpop.f32.mrf.mxu0
      %v4779 = vadd.f32 0.0, %v4778
      %v4780 = vpop.f32.mrf.mxu0
      %4781 = vmatprep.mubr.f32.mxu0 0.0
      %4782 = vmatmul.mubr.f32.gmra.mxu0 %v4613
      %v4783 = vpop.f32.mrf.mxu0
      %v4784 = vadd.f32 0.0, %v4783
      %v4785 = vpop.f32.mrf.mxu0
      %4786 = vmatprep.mubr.f32.mxu0 0.0
      %4787 = vmatmul.mubr.f32.gmra.mxu0 %v4616
      %v4788 = vpop.f32.mrf.mxu0
      %v4789 = vadd.f32 0.0, %v4788
      %v4790 = vpop.f32.mrf.mxu0
      %4791 = vmatprep.mubr.f32.mxu0 0.0
      %4792 = vmatmul.mubr.f32.gmra.mxu0 %v4619
      %v4793 = vpop.f32.mrf.mxu0
      %v4794 = vadd.f32 0.0, %v4793
      %v4795 = vpop.f32.mrf.mxu0
      %4796 = vmatprep.mubr.f32.mxu0 0.0
      %4797 = vmatmul.mubr.f32.gmra.mxu0 %v4622
      %v4798 = vpop.f32.mrf.mxu0
      %v4799 = vadd.f32 0.0, %v4798
      %v4800 = vpop.f32.mrf.mxu0
      %4801 = vmatprep.mubr.f32.mxu0 0.0
      %4802 = vmatmul.mubr.f32.gmra.mxu0 %v4625
      %v4803 = vpop.f32.mrf.mxu0
      %v4804 = vadd.f32 0.0, %v4803
      %v4805 = vpop.f32.mrf.mxu0
      %4806 = vmatprep.mubr.f32.mxu0 0.0
      %4807 = vmatmul.mubr.f32.gmra.mxu0 %v4628
      %v4808 = vpop.f32.mrf.mxu0
      %v4809 = vadd.f32 0.0, %v4808
      %v4810 = vpop.f32.mrf.mxu0
      %4811 = vmatprep.mubr.f32.mxu0 0.0
      %4812 = vmatmul.mubr.f32.gmra.mxu0 %v4631
      %v4813 = vpop.f32.mrf.mxu0
      %v4814 = vadd.f32 0.0, %v4813
      %v4815 = vpop.f32.mrf.mxu0
      %4816 = vmatprep.mubr.f32.mxu0 0.0
      %4817 = vmatmul.mubr.f32.gmra.mxu0 %v4634
      %v4818 = vpop.f32.mrf.mxu0
      %v4819 = vadd.f32 0.0, %v4818
      %v4820 = vpop.f32.mrf.mxu0
      %4821 = vmatprep.mubr.f32.mxu0 0.0
      %4822 = vmatmul.mubr.f32.gmra.mxu0 %v4637
      %v4823 = vpop.f32.mrf.mxu0
      %v4824 = vadd.f32 0.0, %v4823
      %v4825 = vpop.f32.mrf.mxu0
      %4826 = vmatprep.mubr.f32.mxu0 0.0
      %4827 = vmatmul.mubr.f32.gmra.mxu0 %v4640
      %v4828 = vpop.f32.mrf.mxu0
      %v4829 = vadd.f32 0.0, %v4828
      %v4830 = vpop.f32.mrf.mxu0
      %4831 = vmatprep.mubr.f32.mxu0 0.0
      %4832 = vmatmul.mubr.f32.gmra.mxu0 %v4643
      %v4833 = vpop.f32.mrf.mxu0
      %v4834 = vadd.f32 0.0, %v4833
      %v4835 = vpop.f32.mrf.mxu0
      %4836 = vmatprep.mubr.f32.mxu0 0.0
      %4837 = vmatmul.mubr.f32.gmra.mxu0 %v4646
      %v4838 = vpop.f32.mrf.mxu0
      %v4839 = vadd.f32 0.0, %v4838
      %v4840 = vpop.f32.mrf.mxu0
      %4841 = vmatprep.mubr.f32.mxu0 0.0
      %4842 = vmatmul.mubr.f32.gmra.mxu0 %v4649
      %v4843 = vpop.f32.mrf.mxu0
      %v4844 = vadd.f32 0.0, %v4843
      %v4845 = vpop.f32.mrf.mxu0
      %4846 = vmatprep.mubr.f32.mxu0 0.0
      %4847 = vmatmul.mubr.f32.gmra.mxu0 %v4652
      %v4848 = vpop.f32.mrf.mxu0
      %v4849 = vadd.f32 0.0, %v4848
      %v4850 = vpop.f32.mrf.mxu0
      %4851 = vmatprep.mubr.f32.mxu0 0.0
      %4852 = vmatmul.mubr.f32.gmra.mxu0 %v4655
      %v4853 = vpop.f32.mrf.mxu0
      %v4854 = vadd.f32 0.0, %v4853
      %v4855 = vpop.f32.mrf.mxu0
      %4856 = vmatprep.mubr.f32.mxu0 0.0
      %4857 = vmatmul.mubr.f32.gmra.mxu0 %v4658
      %v4858 = vpop.f32.mrf.mxu0
      %v4859 = vadd.f32 0.0, %v4858
      %v4860 = vpop.f32.mrf.mxu0
      %4861 = vmatprep.mubr.f32.mxu0 0.0
      %4862 = vmatmul.mubr.f32.gmra.mxu0 %v4661
      %v4863 = vpop.f32.mrf.mxu0
      %v4864 = vadd.f32 0.0, %v4863
      %v4865 = vpop.f32.mrf.mxu0
      %4866 = vmatprep.mubr.f32.mxu0 0.0
      %4867 = vmatmul.mubr.f32.gmra.mxu0 %v4664
      %v4868 = vpop.f32.mrf.mxu0
      %v4869 = vadd.f32 0.0, %v4868
      %v4870 = vpop.f32.mrf.mxu0
      %4871 = vmatprep.mubr.f32.mxu0 0.0
      %4872 = vmatmul.mubr.f32.gmra.mxu0 %v4667
      %v4873 = vpop.f32.mrf.mxu0
      %v4874 = vadd.f32 0.0, %v4873
      %v4875 = vpop.f32.mrf.mxu0
      %4876 = vmatprep.mubr.f32.mxu0 0.0
      %4877 = vmatmul.mubr.f32.gmra.mxu0 %v4670
      %v4878 = vpop.f32.mrf.mxu0
      %v4879 = vadd.f32 0.0, %v4878
      %v4880 = vpop.f32.mrf.mxu0
      %4881 = vmatprep.mubr.f32.mxu0 0.0
      %4882 = vmatmul.mubr.f32.gmra.mxu0 %v4673
      %v4883 = vpop.f32.mrf.mxu0
      %v4884 = vadd.f32 0.0, %v4883
      %v4885 = vpop.f32.mrf.mxu0
      %4886 = vmatprep.mubr.f32.mxu0 0.0
      %4887 = vmatmul.mubr.f32.gmra.mxu0 %v4676
      %v4888 = vpop.f32.mrf.mxu0
      %v4889 = vadd.f32 0.0, %v4888
      %v4890 = vpop.f32.mrf.mxu0
      %4891 = vmatprep.mubr.f32.mxu0 0.0
      %4892 = vmatmul.mubr.f32.gmra.mxu0 %v4679
      %v4893 = vpop.f32.mrf.mxu0
      %v4894 = vadd.f32 0.0, %v4893
      %v4895 = vpop.f32.mrf.mxu0
      %4896 = vmatprep.mubr.f32.mxu0 0.0
      %4897 = vmatmul.mubr.f32.gmra.mxu0 %v4682
      %v4898 = vpop.f32.mrf.mxu0
      %v4899 = vadd.f32 0.0, %v4898
      %v4900 = vpop.f32.mrf.mxu0
      %4901 = vmatprep.mubr.f32.mxu0 0.0
      %4902 = vmatmul.mubr.f32.gmra.mxu0 %v4685
      %v4903 = vpop.f32.mrf.mxu0
      %v4904 = vadd.f32 0.0, %v4903
      %v4905 = vpop.f32.mrf.mxu0
      %4906 = vmatprep.mubr.f32.mxu0 0.0
      %4907 = vmatmul.mubr.f32.gmra.mxu0 %v4688
      %v4908 = vpop.f32.mrf.mxu0
      %v4909 = vadd.f32 0.0, %v4908
      %v4910 = vpop.f32.mrf.mxu0
      %4911 = vmatprep.mubr.f32.mxu0 0.0
      %4912 = vmatmul.mubr.f32.gmra.mxu0 %v4691
      %v4913 = vpop.f32.mrf.mxu0
      %v4914 = vadd.f32 0.0, %v4913
      %v4915 = vpop.f32.mrf.mxu0
      %4916 = vmatprep.mubr.f32.mxu0 0.0
      %4917 = vmatmul.mubr.f32.gmra.mxu0 %v4694
      %v4918 = vpop.f32.mrf.mxu0
      %v4919 = vadd.f32 0.0, %v4918
      %v4920 = vpop.f32.mrf.mxu0
      %4921 = vmatprep.mubr.f32.mxu0 0.0
      %4922 = vmatmul.mubr.f32.gmra.mxu0 %v4697
      %v4923 = vpop.f32.mrf.mxu0
      %v4924 = vadd.f32 0.0, %v4923
      %v4925 = vpop.f32.mrf.mxu0
      %4926 = vdwg.mxu0
      %v4927 = vadd.f32 %v3657, %v4769
      %v4928 = vadd.f32 %v3658, %v4774
      %v4929 = vadd.f32 %v3659, %v4779
      %v4930 = vadd.f32 %v3660, %v4784
      %v4931 = vadd.f32 %v3661, %v4789
      %v4932 = vadd.f32 %v3662, %v4794
      %v4933 = vadd.f32 %v3663, %v4799
      %v4934 = vadd.f32 %v3664, %v4804
      %v4935 = vadd.f32 %v3665, %v4809
      %v4936 = vadd.f32 %v3666, %v4814
      %v4937 = vadd.f32 %v3667, %v4819
      %v4938 = vadd.f32 %v3668, %v4824
      %v4939 = vadd.f32 %v3669, %v4829
      %v4940 = vadd.f32 %v3670, %v4834
      %v4941 = vadd.f32 %v3671, %v4839
      %v4942 = vadd.f32 %v3672, %v4844
      %v4943 = vadd.f32 %v3673, %v4849
      %v4944 = vadd.f32 %v3674, %v4854
      %v4945 = vadd.f32 %v3675, %v4859
      %v4946 = vadd.f32 %v3676, %v4864
      %v4947 = vadd.f32 %v3677, %v4869
      %v4948 = vadd.f32 %v3678, %v4874
      %v4949 = vadd.f32 %v3679, %v4879
      %v4950 = vadd.f32 %v3680, %v4884
      %v4951 = vadd.f32 %v3681, %v4889
      %v4952 = vadd.f32 %v3682, %v4894
      %v4953 = vadd.f32 %v3683, %v4899
      %v4954 = vadd.f32 %v3684, %v4904
      %v4955 = vadd.f32 %v3685, %v4909
      %v4956 = vadd.f32 %v3686, %v4914
      %v4957 = vadd.f32 %v3687, %v4919
      %v4958 = vadd.f32 %v3688, %v4924
      %v4959 = vld [vmem:[%s4] sm:$0x1]
      %v4961 = vlaneseq
      %v4962 = vshrl.u32 %v4961, 7
      %v4963 = vsub.s32 0, %v4962
      %v4964 = vrot.slane %v4959, %v4963
      %v4966 = vadd.f32 %v4927, %v4964
      %v4967 = vadd.f32 %v4928, %v4964
      %v4968 = vadd.f32 %v4929, %v4964
      %v4969 = vadd.f32 %v4930, %v4964
      %v4970 = vadd.f32 %v4931, %v4964
      %v4971 = vadd.f32 %v4932, %v4964
      %v4972 = vadd.f32 %v4933, %v4964
      %v4973 = vadd.f32 %v4934, %v4964
      %v4974 = vadd.f32 %v4935, %v4964
      %v4975 = vadd.f32 %v4936, %v4964
      %v4976 = vadd.f32 %v4937, %v4964
      %v4977 = vadd.f32 %v4938, %v4964
      %v4978 = vadd.f32 %v4939, %v4964
      %v4979 = vadd.f32 %v4940, %v4964
      %v4980 = vadd.f32 %v4941, %v4964
      %v4981 = vadd.f32 %v4942, %v4964
      %v4982 = vadd.f32 %v4943, %v4964
      %v4983 = vadd.f32 %v4944, %v4964
      %v4984 = vadd.f32 %v4945, %v4964
      %v4985 = vadd.f32 %v4946, %v4964
      %v4986 = vadd.f32 %v4947, %v4964
      %v4987 = vadd.f32 %v4948, %v4964
      %v4988 = vadd.f32 %v4949, %v4964
      %v4989 = vadd.f32 %v4950, %v4964
      %v4990 = vadd.f32 %v4951, %v4964
      %v4991 = vadd.f32 %v4952, %v4964
      %v4992 = vadd.f32 %v4953, %v4964
      %v4993 = vadd.f32 %v4954, %v4964
      %v4994 = vadd.f32 %v4955, %v4964
      %v4995 = vadd.f32 %v4956, %v4964
      %v4996 = vadd.f32 %v4957, %v4964
      %v4997 = vadd.f32 %v4958, %v4964
      %v4998 = vxor.u32 %v4966, 2147483648
      %v4999 = vxor.u32 %v4967, 2147483648
      %v5000 = vxor.u32 %v4968, 2147483648
      %v5001 = vxor.u32 %v4969, 2147483648
      %v5002 = vxor.u32 %v4970, 2147483648
      %v5003 = vxor.u32 %v4971, 2147483648
      %v5004 = vxor.u32 %v4972, 2147483648
      %v5005 = vxor.u32 %v4973, 2147483648
      %v5006 = vxor.u32 %v4974, 2147483648
      %v5007 = vxor.u32 %v4975, 2147483648
      %v5008 = vxor.u32 %v4976, 2147483648
      %v5009 = vxor.u32 %v4977, 2147483648
      %v5010 = vxor.u32 %v4978, 2147483648
      %v5011 = vxor.u32 %v4979, 2147483648
      %v5012 = vxor.u32 %v4980, 2147483648
      %v5013 = vxor.u32 %v4981, 2147483648
      %v5014 = vxor.u32 %v4982, 2147483648
      %v5015 = vxor.u32 %v4983, 2147483648
      %v5016 = vxor.u32 %v4984, 2147483648
      %v5017 = vxor.u32 %v4985, 2147483648
      %v5018 = vxor.u32 %v4986, 2147483648
      %v5019 = vxor.u32 %v4987, 2147483648
      %v5020 = vxor.u32 %v4988, 2147483648
      %v5021 = vxor.u32 %v4989, 2147483648
      %v5022 = vxor.u32 %v4990, 2147483648
      %v5023 = vxor.u32 %v4991, 2147483648
      %v5024 = vxor.u32 %v4992, 2147483648
      %v5025 = vxor.u32 %v4993, 2147483648
      %v5026 = vxor.u32 %v4994, 2147483648
      %v5027 = vxor.u32 %v4995, 2147483648
      %v5028 = vxor.u32 %v4996, 2147483648
      %v5029 = vxor.u32 %v4997, 2147483648
      %v5030 = vmul.f32 %v4998, 1.442695
      %v5031 = vpow.pop %v5030
      %v5032 = vmul.f32 %v4999, 1.442695
      %v5033 = vpow.pop %v5032
      %v5034 = vmul.f32 %v5000, 1.442695
      %v5035 = vpow.pop %v5034
      %v5036 = vmul.f32 %v5001, 1.442695
      %v5037 = vpow.pop %v5036
      %v5038 = vmul.f32 %v5002, 1.442695
      %v5039 = vpow.pop %v5038
      %v5040 = vmul.f32 %v5003, 1.442695
      %v5041 = vpow.pop %v5040
      %v5042 = vmul.f32 %v5004, 1.442695
      %v5043 = vpow.pop %v5042
      %v5044 = vmul.f32 %v5005, 1.442695
      %v5045 = vpow.pop %v5044
      %v5046 = vmul.f32 %v5006, 1.442695
      %v5047 = vpow.pop %v5046
      %v5048 = vmul.f32 %v5007, 1.442695
      %v5049 = vpow.pop %v5048
      %v5050 = vmul.f32 %v5008, 1.442695
      %v5051 = vpow.pop %v5050
      %v5052 = vmul.f32 %v5009, 1.442695
      %v5053 = vpow.pop %v5052
      %v5054 = vmul.f32 %v5010, 1.442695
      %v5055 = vpow.pop %v5054
      %v5056 = vmul.f32 %v5011, 1.442695
      %v5057 = vpow.pop %v5056
      %v5058 = vmul.f32 %v5012, 1.442695
      %v5059 = vpow.pop %v5058
      %v5060 = vmul.f32 %v5013, 1.442695
      %v5061 = vpow.pop %v5060
      %v5062 = vmul.f32 %v5014, 1.442695
      %v5063 = vpow.pop %v5062
      %v5064 = vmul.f32 %v5015, 1.442695
      %v5065 = vpow.pop %v5064
      %v5066 = vmul.f32 %v5016, 1.442695
      %v5067 = vpow.pop %v5066
      %v5068 = vmul.f32 %v5017, 1.442695
      %v5069 = vpow.pop %v5068
      %v5070 = vmul.f32 %v5018, 1.442695
      %v5071 = vpow.pop %v5070
      %v5072 = vmul.f32 %v5019, 1.442695
      %v5073 = vpow.pop %v5072
      %v5074 = vmul.f32 %v5020, 1.442695
      %v5075 = vpow.pop %v5074
      %v5076 = vmul.f32 %v5021, 1.442695
      %v5077 = vpow.pop %v5076
      %v5078 = vmul.f32 %v5022, 1.442695
      %v5079 = vpow.pop %v5078
      %v5080 = vmul.f32 %v5023, 1.442695
      %v5081 = vpow.pop %v5080
      %v5082 = vmul.f32 %v5024, 1.442695
      %v5083 = vpow.pop %v5082
      %v5084 = vmul.f32 %v5025, 1.442695
      %v5085 = vpow.pop %v5084
      %v5086 = vmul.f32 %v5026, 1.442695
      %v5087 = vpow.pop %v5086
      %v5088 = vmul.f32 %v5027, 1.442695
      %v5089 = vpow.pop %v5088
      %v5090 = vmul.f32 %v5028, 1.442695
      %v5091 = vpow.pop %v5090
      %v5092 = vmul.f32 %v5029, 1.442695
      %v5093 = vpow.pop %v5092
      %v5094 = vadd.f32 %v5031, 1.0
      %v5095 = vadd.f32 %v5033, 1.0
      %v5096 = vadd.f32 %v5035, 1.0
      %v5097 = vadd.f32 %v5037, 1.0
      %v5098 = vadd.f32 %v5039, 1.0
      %v5099 = vadd.f32 %v5041, 1.0
      %v5100 = vadd.f32 %v5043, 1.0
      %v5101 = vadd.f32 %v5045, 1.0
      %v5102 = vadd.f32 %v5047, 1.0
      %v5103 = vadd.f32 %v5049, 1.0
      %v5104 = vadd.f32 %v5051, 1.0
      %v5105 = vadd.f32 %v5053, 1.0
      %v5106 = vadd.f32 %v5055, 1.0
      %v5107 = vadd.f32 %v5057, 1.0
      %v5108 = vadd.f32 %v5059, 1.0
      %v5109 = vadd.f32 %v5061, 1.0
      %v5110 = vadd.f32 %v5063, 1.0
      %v5111 = vadd.f32 %v5065, 1.0
      %v5112 = vadd.f32 %v5067, 1.0
      %v5113 = vadd.f32 %v5069, 1.0
      %v5114 = vadd.f32 %v5071, 1.0
      %v5115 = vadd.f32 %v5073, 1.0
      %v5116 = vadd.f32 %v5075, 1.0
      %v5117 = vadd.f32 %v5077, 1.0
      %v5118 = vadd.f32 %v5079, 1.0
      %v5119 = vadd.f32 %v5081, 1.0
      %v5120 = vadd.f32 %v5083, 1.0
      %v5121 = vadd.f32 %v5085, 1.0
      %v5122 = vadd.f32 %v5087, 1.0
      %v5123 = vadd.f32 %v5089, 1.0
      %v5124 = vadd.f32 %v5091, 1.0
      %v5125 = vadd.f32 %v5093, 1.0
      %v5126 = vrcp.pop %v5094
      %v5127 = vmul.f32 1.0, %v5126
      %v5128 = vrcp.pop %v5095
      %v5129 = vmul.f32 1.0, %v5128
      %v5130 = vrcp.pop %v5096
      %v5131 = vmul.f32 1.0, %v5130
      %v5132 = vrcp.pop %v5097
      %v5133 = vmul.f32 1.0, %v5132
      %v5134 = vrcp.pop %v5098
      %v5135 = vmul.f32 1.0, %v5134
      %v5136 = vrcp.pop %v5099
      %v5137 = vmul.f32 1.0, %v5136
      %v5138 = vrcp.pop %v5100
      %v5139 = vmul.f32 1.0, %v5138
      %v5140 = vrcp.pop %v5101
      %v5141 = vmul.f32 1.0, %v5140
      %v5142 = vrcp.pop %v5102
      %v5143 = vmul.f32 1.0, %v5142
      %v5144 = vrcp.pop %v5103
      %v5145 = vmul.f32 1.0, %v5144
      %v5146 = vrcp.pop %v5104
      %v5147 = vmul.f32 1.0, %v5146
      %v5148 = vrcp.pop %v5105
      %v5149 = vmul.f32 1.0, %v5148
      %v5150 = vrcp.pop %v5106
      %v5151 = vmul.f32 1.0, %v5150
      %v5152 = vrcp.pop %v5107
      %v5153 = vmul.f32 1.0, %v5152
      %v5154 = vrcp.pop %v5108
      %v5155 = vmul.f32 1.0, %v5154
      %v5156 = vrcp.pop %v5109
      %v5157 = vmul.f32 1.0, %v5156
      %v5158 = vrcp.pop %v5110
      %v5159 = vmul.f32 1.0, %v5158
      %v5160 = vrcp.pop %v5111
      %v5161 = vmul.f32 1.0, %v5160
      %v5162 = vrcp.pop %v5112
      %v5163 = vmul.f32 1.0, %v5162
      %v5164 = vrcp.pop %v5113
      %v5165 = vmul.f32 1.0, %v5164
      %v5166 = vrcp.pop %v5114
      %v5167 = vmul.f32 1.0, %v5166
      %v5168 = vrcp.pop %v5115
      %v5169 = vmul.f32 1.0, %v5168
      %v5170 = vrcp.pop %v5116
      %v5171 = vmul.f32 1.0, %v5170
      %v5172 = vrcp.pop %v5117
      %v5173 = vmul.f32 1.0, %v5172
      %v5174 = vrcp.pop %v5118
      %v5175 = vmul.f32 1.0, %v5174
      %v5176 = vrcp.pop %v5119
      %v5177 = vmul.f32 1.0, %v5176
      %v5178 = vrcp.pop %v5120
      %v5179 = vmul.f32 1.0, %v5178
      %v5180 = vrcp.pop %v5121
      %v5181 = vmul.f32 1.0, %v5180
      %v5182 = vrcp.pop %v5122
      %v5183 = vmul.f32 1.0, %v5182
      %v5184 = vrcp.pop %v5123
      %v5185 = vmul.f32 1.0, %v5184
      %v5186 = vrcp.pop %v5124
      %v5187 = vmul.f32 1.0, %v5186
      %v5188 = vrcp.pop %v5125
      %v5189 = vmul.f32 1.0, %v5188
      %v5190 = vmul.f32 %v4966, %v5127
      %v5191 = vmul.f32 %v4967, %v5129
      %v5192 = vmul.f32 %v4968, %v5131
      %v5193 = vmul.f32 %v4969, %v5133
      %v5194 = vmul.f32 %v4970, %v5135
      %v5195 = vmul.f32 %v4971, %v5137
      %v5196 = vmul.f32 %v4972, %v5139
      %v5197 = vmul.f32 %v4973, %v5141
      %v5198 = vmul.f32 %v4974, %v5143
      %v5199 = vmul.f32 %v4975, %v5145
      %v5200 = vmul.f32 %v4976, %v5147
      %v5201 = vmul.f32 %v4977, %v5149
      %v5202 = vmul.f32 %v4978, %v5151
      %v5203 = vmul.f32 %v4979, %v5153
      %v5204 = vmul.f32 %v4980, %v5155
      %v5205 = vmul.f32 %v4981, %v5157
      %v5206 = vmul.f32 %v4982, %v5159
      %v5207 = vmul.f32 %v4983, %v5161
      %v5208 = vmul.f32 %v4984, %v5163
      %v5209 = vmul.f32 %v4985, %v5165
      %v5210 = vmul.f32 %v4986, %v5167
      %v5211 = vmul.f32 %v4987, %v5169
      %v5212 = vmul.f32 %v4988, %v5171
      %v5213 = vmul.f32 %v4989, %v5173
      %v5214 = vmul.f32 %v4990, %v5175
      %v5215 = vmul.f32 %v4991, %v5177
      %v5216 = vmul.f32 %v4992, %v5179
      %v5217 = vmul.f32 %v4993, %v5181
      %v5218 = vmul.f32 %v4994, %v5183
      %v5219 = vmul.f32 %v4995, %v5185
      %v5220 = vmul.f32 %v4996, %v5187
      %v5221 = vmul.f32 %v4997, %v5189
      %vm5222 = vcmask 64512
      %5223 = vst.msk [vmem:[%s224] sm:$0xff] %vm5222, %v5190
      %5224 = vst.msk [vmem:[%s224 + $0x8] sm:$0xff] %vm5222, %v5191
      %5225 = vst.msk [vmem:[%s224 + $0x10] sm:$0xff] %vm5222, %v5192
      %5226 = vst.msk [vmem:[%s224 + $0x18] sm:$0xff] %vm5222, %v5193
      %5227 = vst.msk [vmem:[%s224 + $0x20] sm:$0xff] %vm5222, %v5194
      %5228 = vst.msk [vmem:[%s224 + $0x28] sm:$0xff] %vm5222, %v5195
      %5229 = vst.msk [vmem:[%s224 + $0x30] sm:$0xff] %vm5222, %v5196
      %5230 = vst.msk [vmem:[%s224 + $0x38] sm:$0xff] %vm5222, %v5197
      %5231 = vst.msk [vmem:[%s224 + $0x40] sm:$0xff] %vm5222, %v5198
      %5232 = vst.msk [vmem:[%s224 + $0x48] sm:$0xff] %vm5222, %v5199
      %5233 = vst.msk [vmem:[%s224 + $0x50] sm:$0xff] %vm5222, %v5200
      %5234 = vst.msk [vmem:[%s224 + $0x58] sm:$0xff] %vm5222, %v5201
      %5235 = vst.msk [vmem:[%s224 + $0x60] sm:$0xff] %vm5222, %v5202
      %5236 = vst.msk [vmem:[%s224 + $0x68] sm:$0xff] %vm5222, %v5203
      %5237 = vst.msk [vmem:[%s224 + $0x70] sm:$0xff] %vm5222, %v5204
      %5238 = vst.msk [vmem:[%s224 + $0x78] sm:$0xff] %vm5222, %v5205
      %5239 = vst.msk [vmem:[%s224 + $0x80] sm:$0xff] %vm5222, %v5206
      %5240 = vst.msk [vmem:[%s224 + $0x88] sm:$0xff] %vm5222, %v5207
      %5241 = vst.msk [vmem:[%s224 + $0x90] sm:$0xff] %vm5222, %v5208
      %5242 = vst.msk [vmem:[%s224 + $0x98] sm:$0xff] %vm5222, %v5209
      %5243 = vst.msk [vmem:[%s224 + $0xa0] sm:$0xff] %vm5222, %v5210
      %5244 = vst.msk [vmem:[%s224 + $0xa8] sm:$0xff] %vm5222, %v5211
      %5245 = vst.msk [vmem:[%s224 + $0xb0] sm:$0xff] %vm5222, %v5212
      %5246 = vst.msk [vmem:[%s224 + $0xb8] sm:$0xff] %vm5222, %v5213
      %5247 = vst.msk [vmem:[%s224 + $0xc0] sm:$0xff] %vm5222, %v5214
      %5248 = vst.msk [vmem:[%s224 + $0xc8] sm:$0xff] %vm5222, %v5215
      %5249 = vst.msk [vmem:[%s224 + $0xd0] sm:$0xff] %vm5222, %v5216
      %5250 = vst.msk [vmem:[%s224 + $0xd8] sm:$0xff] %vm5222, %v5217
      %5251 = vst.msk [vmem:[%s224 + $0xe0] sm:$0xff] %vm5222, %v5218
      %5252 = vst.msk [vmem:[%s224 + $0xe8] sm:$0xff] %vm5222, %v5219
      %5253 = vst.msk [vmem:[%s224 + $0xf0] sm:$0xff] %vm5222, %v5220
      %5254 = vst.msk [vmem:[%s224 + $0xf8] sm:$0xff] %vm5222, %v5221
      %p5255 = scmp.lt.s32.totalorder %s16, 1
      %s5256 = scalar_select %p5255, %s16, 1
      %s5257 = smul.addr %s5256, 32
      %s5258 = smul.addr %s5257, 8
      %s5259 = scalar_lea.vmem %s5, %s5258
      // Predicated region
      $region41: #{tpu_custom_call.1} parent=39 // pred_check
        %p5260 = pneg %p144
      $region42: #{tpu_custom_call.1} parent=39 // pred_check_branch
        %5262 = sbr.rel (%p5260) target = $region44
      $region43: #{tpu_custom_call.1} parent=39 // pred_region
        _
      $region44: #{tpu_custom_call.1} parent=39 // pred_fallthru
        _
    $region40: #{tpu_custom_call.1} parent=5 // pred_fallthru
      _
    %p5263 = scmp.le.s32.totalorder 2, %s11
    // Predicated region
    $region45: #{tpu_custom_call.1} parent=5 // pred_check
      %p5264 = pneg %p5263
    $region46: #{tpu_custom_call.1} parent=5 // pred_check_branch
      %5266 = sbr.rel (%p5264) target = $region48
    $region47: #{tpu_custom_call.1} parent=5 // pred_region
      %s5267 = ssub.s32 %s11, 2
      // Predicated region
      $region49: #{tpu_custom_call.1} parent=47 // pred_check
        %p5268 = pneg %p150
      $region50: #{tpu_custom_call.1} parent=47 // pred_check_branch
        %5270 = sbr.rel (%p5268) target = $region52
      $region51: #{tpu_custom_call.1} parent=47 // pred_region
        %p5271 = scmp.lt.s32.totalorder %s17, 1
        %s5272 = scalar_select %p5271, %s17, 1
        %s5273 = smul.addr %s5272, 32
        %s5274 = smul.addr %s5273, 8
        %s5275 = scalar_lea.vmem %s5, %s5274
      $region52: #{tpu_custom_call.1} parent=47 // pred_fallthru
        _
    $region48: #{tpu_custom_call.1} parent=5 // pred_fallthru
      _
  $region6: #{tpu_custom_call.1} parent=0 // loop_footer
    %s15 = sadd.s32 1, %s11
  $region7: #{tpu_custom_call.1} parent=0 // loop_footer_branch
    %10 = sbr.rel target = $region3
  $region8: #{tpu_custom_call.1} parent=0 // loop_exit
    _

</llo_original>
